<compile_context>
chip_gen: v6e
topology: v6e:2x2x1
jax: 0.10.0
libtpu: 0.0.40
codegen_flags: <defaults>
</compile_context>

<pallas_src>
import jax
import jax.numpy as jnp
from jax import lax
from jax.experimental import pallas as pl
from jax.experimental.pallas import tpu as pltpu
import numpy as np

# DAPOConfig defaults
CLIP_LOWER = 0.8
CLIP_UPPER = 1.28
ENTROPY_COEF = 0.01
VALUE_LOSS_COEF = 0.5


def _dapo_kernel(logits_ref, old_ref, actions_ref, tok_ref,
                 pg_out, msk_out, vl_out, ent_out, kl_out,
                 m_ref, s_ref, t_ref, mo_ref, so_ref, sd_ref,
                 pg_acc, msk_acc, vl_acc, ent_acc, kl_acc):
    i = pl.program_id(1)                     # token tile within this core
    j = pl.program_id(2)                     # vocab chunk
    nt = pl.num_programs(1)
    nv = pl.num_programs(2)

    # Reset the global (per-core) accumulators at the start of this core's run.
    @pl.when(jnp.logical_and(i == 0, j == 0))
    def _init_global():
        pg_acc[...] = jnp.zeros_like(pg_acc)
        msk_acc[...] = jnp.zeros_like(msk_acc)
        vl_acc[...] = jnp.zeros_like(vl_acc)
        ent_acc[...] = jnp.zeros_like(ent_acc)
        kl_acc[...] = jnp.zeros_like(kl_acc)

    # Reset the online-LSE carry at the start of every token tile.
    @pl.when(j == 0)
    def _init_tile():
        m_ref[...] = jnp.full(m_ref.shape, -jnp.inf, jnp.float32)
        mo_ref[...] = jnp.full(mo_ref.shape, -jnp.inf, jnp.float32)
        s_ref[...] = jnp.zeros_like(s_ref)
        t_ref[...] = jnp.zeros_like(t_ref)
        so_ref[...] = jnp.zeros_like(so_ref)
        sd_ref[...] = jnp.zeros_like(sd_ref)

    x = logits_ref[...].astype(jnp.float32)    # (T, Vc)  per-chunk upcast only
    xo = old_ref[...].astype(jnp.float32)      # (T, Vc)
    tt, vc = x.shape

    # ---- fused selected-action gather on the logit DIFFERENCE --------------
    # (one select + one lane-reduce instead of two of each)
    actions = actions_ref[...]                 # (T, 1) int32, global vocab id
    local_act = actions - j * vc               # id within this vocab chunk
    ids = lax.broadcasted_iota(jnp.int32, (tt, vc), 1)
    onehot = ids == local_act
    sd_ref[...] += jnp.sum(jnp.where(onehot, x - xo, 0.0), axis=-1, keepdims=True)

    # ---- online LSE + entropy carry, new policy -----------------------------
    # carries: m (running max), s = sum e^(x-m), t = sum e^(x-m) * x
    m_old = m_ref[...]
    m_new = jnp.maximum(m_old, jnp.max(x, axis=-1, keepdims=True))
    alpha = jnp.exp(m_old - m_new)             # exp(-inf)=0 handles the init
    ez = jnp.exp(x - m_new)
    s_ref[...] = s_ref[...] * alpha + jnp.sum(ez, axis=-1, keepdims=True)
    t_ref[...] = t_ref[...] * alpha + jnp.sum(ez * x, axis=-1, keepdims=True)
    m_ref[...] = m_new

    # ---- online LSE, old policy ---------------------------------------------
    mo_old = mo_ref[...]
    mo_new = jnp.maximum(mo_old, jnp.max(xo, axis=-1, keepdims=True))
    alpha_o = jnp.exp(mo_old - mo_new)
    so_ref[...] = so_ref[...] * alpha_o + \
        jnp.sum(jnp.exp(xo - mo_new), axis=-1, keepdims=True)
    mo_ref[...] = mo_new

    # ---- per-token tail, once per token tile (last vocab chunk) -------------
    @pl.when(j == nv - 1)
    def _tile_final():
        s = s_ref[...]
        log_s = jnp.log(s)
        lse = m_ref[...] + log_s
        # entropy = lse - E_p[x] = m + log s - t/s
        entropy = log_s - (t_ref[...] / s - m_ref[...])
        old_lse = mo_ref[...] + jnp.log(so_ref[...])

        d = sd_ref[...] - (lse - old_lse)      # = log(ratio)
        ratio = jnp.exp(d)

        tok = tok_ref[...].astype(jnp.float32)  # (T, 4): adv, ret, val, mask
        adv = tok[:, 0:1]
        rets = tok[:, 1:2]
        vals = tok[:, 2:3]
        mask = tok[:, 3:4]

        lo = 1.0 - CLIP_LOWER
        clipped = jnp.where(adv > 0.0,
                            jnp.clip(ratio, lo, 1.0 + CLIP_UPPER),
                            jnp.clip(ratio, lo, 1.0 + CLIP_LOWER))
        pg = jnp.maximum(-adv * ratio, -adv * clipped) * mask

        pg_acc[...] += pg
        msk_acc[...] += mask
        vl_acc[...] += (vals - rets) ** 2 * mask
        ent_acc[...] += entropy * mask
        kl_acc[...] += ratio - 1.0 - d          # unmasked (mean over all tokens)

    # ---- single writeback at the very end of this core's portion ------------
    @pl.when(jnp.logical_and(i == nt - 1, j == nv - 1))
    def _final():
        pg_out[0] = jnp.sum(pg_acc[...], axis=0, keepdims=True)
        msk_out[0] = jnp.sum(msk_acc[...], axis=0, keepdims=True)
        vl_out[0] = jnp.sum(vl_acc[...], axis=0, keepdims=True)
        ent_out[0] = jnp.sum(ent_acc[...], axis=0, keepdims=True)
        kl_out[0] = jnp.sum(kl_acc[...], axis=0, keepdims=True)


def _pick_token_tile(per_core_tokens, granule, requested):
    """Largest multiple of `granule` <= requested that divides per_core_tokens."""
    t = min(int(requested), per_core_tokens)
    t = max(granule, (t // granule) * granule)
    while t >= granule:
        if per_core_tokens % t == 0:
            return t
        t -= granule
    return None


def _pick_vocab_tile(V, target):
    """Largest multiple of 128 dividing V that is <= target (or V itself)."""
    if V <= target:
        return V
    tv = (target // 128) * 128
    while tv >= 128:
        if V % tv == 0:
            return tv
        tv -= 128
    return V  # no multiple-of-128 divisor; fall back to full vocab per step


def _default_core_splits():
    """2 token shards on two-TensorCore parts (v7x / v4 / v5p), 1 on v5e/v6e."""
    try:
        kind = jax.devices()[0].device_kind.lower()
    except Exception:
        return 1
    if "v7" in kind or "7x" in kind:
        return 2
    if "v4" in kind or "v5p" in kind:
        return 2
    return 1


def _vmem_budget_bytes():
    cap = 64 << 20
    try:
        cap = int(pltpu.get_tpu_info().vmem_capacity_bytes)
    except Exception:
        pass
    # ~48 MiB on 64 MiB parts (v7x), ~96 MiB on 128 MiB parts (v5e/v6e).
    return min(int(cap * 0.75), 100 << 20)


def dapo_loss_pallas(logits, old_logits, actions, advantages, returns, values,
                     attention_mask, *, token_tile=None, vocab_tile=None,
                     num_core_splits=None):
    B, S, V = logits.shape
    N = B * S
    itemsize = jnp.dtype(logits.dtype).itemsize
    # sublane-packing granule: 8 rows for 32-bit, 16 for 16-bit, 32 for 8-bit
    granule = max(8, 32 // itemsize)
    assert N % granule == 0, f"B*S must be a multiple of {granule} for {logits.dtype}"

    if num_core_splits is None:
        num_core_splits = _default_core_splits()
    if num_core_splits < 1 or N % (num_core_splits * granule) != 0:
        num_core_splits = 1

    if vocab_tile is None:
        vocab_tile = _pick_vocab_tile(V, 4096)
    assert V % vocab_tile == 0, "vocab_tile must divide vocab size"
    nv = V // vocab_tile

    vmem_budget = _vmem_budget_bytes()
    per_core = N // num_core_splits

    if token_tile is None:
        # per token row (per vocab chunk): ~8 live f32 (T, Vc) temporaries +
        # double-buffered native-dtype input blocks + lane-padded sidecars/scratch
        bytes_per_row = vocab_tile * (32 + 4 * itemsize) + 16 * 128 * 4
        token_tile = max(granule, (vmem_budget - (4 << 20)) // bytes_per_row)

    tile_t = _pick_token_tile(per_core, granule, token_tile)
    if tile_t is None and num_core_splits > 1:
        num_core_splits = 1
        per_core = N
        tile_t = _pick_token_tile(per_core, granule, token_tile)
    assert tile_t is not None, "could not find a valid token tile"
    nt = per_core // tile_t

    # Big tensors stream in their native dtype (no f32 copies in HBM).
    logits2 = logits.reshape(N, V)
    old2 = old_logits.reshape(N, V)
    actions2 = actions.reshape(N, 1).astype(jnp.int32)
    tok = jnp.stack([advantages.reshape(N).astype(jnp.float32),
                     returns.reshape(N).astype(jnp.float32),
                     values.reshape(N).astype(jnp.float32),
                     attention_mask.reshape(N).astype(jnp.float32)], axis=-1)

    logit_spec = pl.BlockSpec((tile_t, vocab_tile), lambda c, i, j: (c * nt + i, j))
    act_spec = pl.BlockSpec((tile_t, 1), lambda c, i, j: (c * nt + i, 0))
    tok_spec = pl.BlockSpec((tile_t, 4), lambda c, i, j: (c * nt + i, 0))
    out_spec = pl.BlockSpec((1, 1, 1), lambda c, i, j: (c, 0, 0))
    out_shape = jax.ShapeDtypeStruct((num_core_splits, 1, 1), jnp.float32)

    carry = [pltpu.VMEM((tile_t, 1), jnp.float32) for _ in range(6)]   # m,s,t,mo,so,sd
    accs = [pltpu.VMEM((tile_t, 1), jnp.float32) for _ in range(5)]    # pg,msk,vl,ent,kl

    pg_s, m_s, v_s, e_s, k_s = pl.pallas_call(
        _dapo_kernel,
        out_shape=(out_shape,) * 5,
        grid=(num_core_splits, nt, nv),
        in_specs=[logit_spec, logit_spec, act_spec, tok_spec],
        out_specs=(out_spec,) * 5,
        scratch_shapes=carry + accs,
        compiler_params=pltpu.CompilerParams(
            dimension_semantics=("parallel", "arbitrary", "arbitrary"),
            vmem_limit_bytes=int(vmem_budget)),
    )(logits2, old2, actions2, tok)

    mask_sum = jnp.sum(m_s)
    pg_loss = jnp.sum(pg_s) / mask_sum
    value_loss = jnp.sum(v_s) / mask_sum
    entropy = jnp.sum(e_s) / mask_sum
    approx_kl = jnp.sum(k_s) / jnp.float32(N)
    total = pg_loss + VALUE_LOSS_COEF * value_loss - ENTROPY_COEF * entropy
    return {
        "loss": total,
        "pg_loss": pg_loss,
        "value_loss": value_loss,
        "entropy": entropy,
        "approx_kl": approx_kl,
    }


def dapo_loss_ref(logits, old_logits, actions, advantages, returns, values, mask):
    """Pure-JAX reference mirroring the PyTorch forward (token_level_pg=True)."""
    logits = logits.astype(jnp.float32)
    old_logits = old_logits.astype(jnp.float32)
    logp = jax.nn.log_softmax(logits, axis=-1)
    old_logp = jax.nn.log_softmax(old_logits, axis=-1)
    act_lp = jnp.take_along_axis(logp, actions[..., None], axis=-1)[..., 0]
    old_act_lp = jnp.take_along_axis(old_logp, actions[..., None], axis=-1)[..., 0]
    ratio = jnp.exp(act_lp - old_act_lp)
    clipped = jnp.where(advantages > 0,
                        jnp.clip(ratio, 1.0 - CLIP_LOWER, 1.0 + CLIP_UPPER),
                        jnp.clip(ratio, 1.0 - CLIP_LOWER, 1.0 + CLIP_LOWER))
    pg = jnp.maximum(-advantages * ratio, -advantages * clipped)
    pg_loss = (pg * mask).sum() / mask.sum()
    value_loss = (((values - returns) ** 2) * mask).sum() / mask.sum()
    probs = jax.nn.softmax(logits, axis=-1)
    entropy = (-(probs * logp).sum(-1) * mask).sum() / mask.sum()
    total = pg_loss + VALUE_LOSS_COEF * value_loss - ENTROPY_COEF * entropy
    approx_kl = (ratio - 1.0 - jnp.log(ratio)).mean()
    return {"loss": total, "pg_loss": pg_loss, "value_loss": value_loss,
            "entropy": entropy, "approx_kl": approx_kl}


if __name__ == "__main__":
    # TODO(synk): only the token_level_pg=True branch of DAPOLoss is implemented
    # (the sequence-level normalization branch is unused with default config).
    B, S, V = 2, 64, 512  # small synthetic shapes
    key = jax.random.PRNGKey(0)
    k1, k2, k3, k4, k5, k6 = jax.random.split(key, 6)

    logits = jax.random.normal(k1, (B, S, V), dtype=jnp.float32)
    old_logits = logits + 0.1 * jax.random.normal(k2, (B, S, V), dtype=jnp.float32)
    actions = jax.random.randint(k3, (B, S), 0, V, dtype=jnp.int32)
    advantages = jax.random.normal(k4, (B, S), dtype=jnp.float32)
    returns = jax.random.normal(k5, (B, S), dtype=jnp.float32)
    values = returns + 0.2 * jax.random.normal(k6, (B, S), dtype=jnp.float32)
    attention_mask = jnp.ones((B, S), dtype=jnp.float32).at[:, -5:].set(0.0)

    names = ("loss", "pg_loss", "value_loss", "entropy", "approx_kl")
    ref = dapo_loss_ref(logits, old_logits, actions, advantages, returns,
                        values, attention_mask)

    # Case 1: f32 inputs, auto tiling (single vocab chunk).
    out = dapo_loss_pallas(logits, old_logits, actions, advantages, returns,
                           values, attention_mask)
    out = jax.tree_util.tree_map(jax.block_until_ready, out)
    for n in names:
        np.testing.assert_allclose(np.asarray(out[n]), np.asarray(ref[n]),
                                   rtol=1e-4, atol=1e-5)

    # Case 2: forced vocab chunking (4 chunks) to exercise the online-LSE carry.
    out2 = dapo_loss_pallas(logits, old_logits, actions, advantages, returns,
                            values, attention_mask,
                            token_tile=32, vocab_tile=128)
    out2 = jax.tree_util.tree_map(jax.block_until_ready, out2)
    for n in names:
        np.testing.assert_allclose(np.asarray(out2[n]), np.asarray(ref[n]),
                                   rtol=1e-4, atol=1e-5)

    # Case 3: bf16 logits streamed in native dtype (f32 math inside the kernel).
    logits_bf = logits.astype(jnp.bfloat16)
    old_bf = old_logits.astype(jnp.bfloat16)
    ref3 = dapo_loss_ref(logits_bf, old_bf, actions, advantages, returns,
                         values, attention_mask)
    out3 = dapo_loss_pallas(logits_bf, old_bf, actions, advantages, returns,
                            values, attention_mask, vocab_tile=256)
    out3 = jax.tree_util.tree_map(jax.block_until_ready, out3)
    for n in names:
        np.testing.assert_allclose(np.asarray(out3[n]), np.asarray(ref3[n]),
                                   rtol=2e-3, atol=1e-4)

    print("KERNEL_OK")
</pallas_src>

<mosaic_0001>
module attributes {stable_mosaic.version = 11 : i64} {
  func.func @_dapo_kernel(%arg0: i32, %arg1: i32, %arg2: i32, %arg3: memref<128x512xf32, #tpu.memory_space<vmem>>, %arg4: memref<128x512xf32, #tpu.memory_space<vmem>>, %arg5: memref<128x1xi32, #tpu.memory_space<vmem>>, %arg6: memref<128x4xf32, #tpu.memory_space<vmem>>, %arg7: memref<1x1x1xf32, #tpu.memory_space<vmem>>, %arg8: memref<1x1x1xf32, #tpu.memory_space<vmem>>, %arg9: memref<1x1x1xf32, #tpu.memory_space<vmem>>, %arg10: memref<1x1x1xf32, #tpu.memory_space<vmem>>, %arg11: memref<1x1x1xf32, #tpu.memory_space<vmem>>, %arg12: memref<128x1xf32, #tpu.memory_space<vmem>>, %arg13: memref<128x1xf32, #tpu.memory_space<vmem>>, %arg14: memref<128x1xf32, #tpu.memory_space<vmem>>, %arg15: memref<128x1xf32, #tpu.memory_space<vmem>>, %arg16: memref<128x1xf32, #tpu.memory_space<vmem>>, %arg17: memref<128x1xf32, #tpu.memory_space<vmem>>, %arg18: memref<128x1xf32, #tpu.memory_space<vmem>>, %arg19: memref<128x1xf32, #tpu.memory_space<vmem>>, %arg20: memref<128x1xf32, #tpu.memory_space<vmem>>, %arg21: memref<128x1xf32, #tpu.memory_space<vmem>>, %arg22: memref<128x1xf32, #tpu.memory_space<vmem>>) attributes {dimension_semantics = [#tpu.dimension_semantics<parallel>, #tpu.dimension_semantics<arbitrary>, #tpu.dimension_semantics<arbitrary>], iteration_bounds = array<i64: 1, 1, 1>, scalar_prefetch = 0 : i64, scratch_operands = 11 : i64, tpu.core_type = #tpu.core_type<tc>, window_params = [{transform_indices = @transform_0, window_bounds = array<i64: 128, 512>}, {transform_indices = @transform_1, window_bounds = array<i64: 128, 512>}, {transform_indices = @transform_2, window_bounds = array<i64: 128, 1>}, {transform_indices = @transform_3, window_bounds = array<i64: 128, 4>}, {transform_indices = @transform_4, window_bounds = array<i64: 1, 1, 1>}, {transform_indices = @transform_5, window_bounds = array<i64: 1, 1, 1>}, {transform_indices = @transform_6, window_bounds = array<i64: 1, 1, 1>}, {transform_indices = @transform_7, window_bounds = array<i64: 1, 1, 1>}, {transform_indices = @transform_8, window_bounds = array<i64: 1, 1, 1>}]} {
    %c0_i32 = arith.constant 0 : i32
    %0 = arith.cmpi eq, %arg1, %c0_i32 : i32
    %c0_i32_0 = arith.constant 0 : i32
    %1 = arith.cmpi eq, %arg2, %c0_i32_0 : i32
    %2 = arith.andi %0, %1 : i1
    %3 = arith.extui %2 : i1 to i32
    %c0_i32_1 = arith.constant 0 : i32
    %4 = arith.cmpi ne, %3, %c0_i32_1 : i32
    scf.if %4 {
      %cst_44 = arith.constant 0.000000e+00 : f32
      %72 = vector.broadcast %cst_44 : f32 to vector<128x1xf32>
      %c0_45 = arith.constant 0 : index
      %c0_46 = arith.constant 0 : index
      %73 = vector.load %arg18[%c0_45, %c0_46] : memref<128x1xf32, #tpu.memory_space<vmem>>, vector<128x1xf32>
      tpu.vector_store %arg18[%c0_45, %c0_46], %72 {strides = array<i32>} : memref<128x1xf32, #tpu.memory_space<vmem>>, vector<128x1xf32>,
      %cst_47 = arith.constant 0.000000e+00 : f32
      %74 = vector.broadcast %cst_47 : f32 to vector<128x1xf32>
      %c0_48 = arith.constant 0 : index
      %c0_49 = arith.constant 0 : index
      %75 = vector.load %arg19[%c0_48, %c0_49] : memref<128x1xf32, #tpu.memory_space<vmem>>, vector<128x1xf32>
      tpu.vector_store %arg19[%c0_48, %c0_49], %74 {strides = array<i32>} : memref<128x1xf32, #tpu.memory_space<vmem>>, vector<128x1xf32>,
      %cst_50 = arith.constant 0.000000e+00 : f32
      %76 = vector.broadcast %cst_50 : f32 to vector<128x1xf32>
      %c0_51 = arith.constant 0 : index
      %c0_52 = arith.constant 0 : index
      %77 = vector.load %arg20[%c0_51, %c0_52] : memref<128x1xf32, #tpu.memory_space<vmem>>, vector<128x1xf32>
      tpu.vector_store %arg20[%c0_51, %c0_52], %76 {strides = array<i32>} : memref<128x1xf32, #tpu.memory_space<vmem>>, vector<128x1xf32>,
      %cst_53 = arith.constant 0.000000e+00 : f32
      %78 = vector.broadcast %cst_53 : f32 to vector<128x1xf32>
      %c0_54 = arith.constant 0 : index
      %c0_55 = arith.constant 0 : index
      %79 = vector.load %arg21[%c0_54, %c0_55] : memref<128x1xf32, #tpu.memory_space<vmem>>, vector<128x1xf32>
      tpu.vector_store %arg21[%c0_54, %c0_55], %78 {strides = array<i32>} : memref<128x1xf32, #tpu.memory_space<vmem>>, vector<128x1xf32>,
      %cst_56 = arith.constant 0.000000e+00 : f32
      %80 = vector.broadcast %cst_56 : f32 to vector<128x1xf32>
      %c0_57 = arith.constant 0 : index
      %c0_58 = arith.constant 0 : index
      %81 = vector.load %arg22[%c0_57, %c0_58] : memref<128x1xf32, #tpu.memory_space<vmem>>, vector<128x1xf32>
      tpu.vector_store %arg22[%c0_57, %c0_58], %80 {strides = array<i32>} : memref<128x1xf32, #tpu.memory_space<vmem>>, vector<128x1xf32>,
    } else {
    }
    %c0_i32_2 = arith.constant 0 : i32
    %5 = arith.cmpi eq, %arg2, %c0_i32_2 : i32
    %6 = arith.extui %5 : i1 to i32
    %c0_i32_3 = arith.constant 0 : i32
    %7 = arith.cmpi ne, %6, %c0_i32_3 : i32
    scf.if %7 {
      %cst_44 = arith.constant 0xFF800000 : f32
      %72 = vector.broadcast %cst_44 : f32 to vector<128x1xf32>
      %c0_45 = arith.constant 0 : index
      %c0_46 = arith.constant 0 : index
      %73 = vector.load %arg12[%c0_45, %c0_46] : memref<128x1xf32, #tpu.memory_space<vmem>>, vector<128x1xf32>
      tpu.vector_store %arg12[%c0_45, %c0_46], %72 {strides = array<i32>} : memref<128x1xf32, #tpu.memory_space<vmem>>, vector<128x1xf32>,
      %cst_47 = arith.constant 0xFF800000 : f32
      %74 = vector.broadcast %cst_47 : f32 to vector<128x1xf32>
      %c0_48 = arith.constant 0 : index
      %c0_49 = arith.constant 0 : index
      %75 = vector.load %arg15[%c0_48, %c0_49] : memref<128x1xf32, #tpu.memory_space<vmem>>, vector<128x1xf32>
      tpu.vector_store %arg15[%c0_48, %c0_49], %74 {strides = array<i32>} : memref<128x1xf32, #tpu.memory_space<vmem>>, vector<128x1xf32>,
      %cst_50 = arith.constant 0.000000e+00 : f32
      %76 = vector.broadcast %cst_50 : f32 to vector<128x1xf32>
      %c0_51 = arith.constant 0 : index
      %c0_52 = arith.constant 0 : index
      %77 = vector.load %arg13[%c0_51, %c0_52] : memref<128x1xf32, #tpu.memory_space<vmem>>, vector<128x1xf32>
      tpu.vector_store %arg13[%c0_51, %c0_52], %76 {strides = array<i32>} : memref<128x1xf32, #tpu.memory_space<vmem>>, vector<128x1xf32>,
      %cst_53 = arith.constant 0.000000e+00 : f32
      %78 = vector.broadcast %cst_53 : f32 to vector<128x1xf32>
      %c0_54 = arith.constant 0 : index
      %c0_55 = arith.constant 0 : index
      %79 = vector.load %arg14[%c0_54, %c0_55] : memref<128x1xf32, #tpu.memory_space<vmem>>, vector<128x1xf32>
      tpu.vector_store %arg14[%c0_54, %c0_55], %78 {strides = array<i32>} : memref<128x1xf32, #tpu.memory_space<vmem>>, vector<128x1xf32>,
      %cst_56 = arith.constant 0.000000e+00 : f32
      %80 = vector.broadcast %cst_56 : f32 to vector<128x1xf32>
      %c0_57 = arith.constant 0 : index
      %c0_58 = arith.constant 0 : index
      %81 = vector.load %arg16[%c0_57, %c0_58] : memref<128x1xf32, #tpu.memory_space<vmem>>, vector<128x1xf32>
      tpu.vector_store %arg16[%c0_57, %c0_58], %80 {strides = array<i32>} : memref<128x1xf32, #tpu.memory_space<vmem>>, vector<128x1xf32>,
      %cst_59 = arith.constant 0.000000e+00 : f32
      %82 = vector.broadcast %cst_59 : f32 to vector<128x1xf32>
      %c0_60 = arith.constant 0 : index
      %c0_61 = arith.constant 0 : index
      %83 = vector.load %arg17[%c0_60, %c0_61] : memref<128x1xf32, #tpu.memory_space<vmem>>, vector<128x1xf32>
      tpu.vector_store %arg17[%c0_60, %c0_61], %82 {strides = array<i32>} : memref<128x1xf32, #tpu.memory_space<vmem>>, vector<128x1xf32>,
    } else {
    }
    %c0 = arith.constant 0 : index
    %c0_4 = arith.constant 0 : index
    %8 = vector.load %arg3[%c0, %c0_4] : memref<128x512xf32, #tpu.memory_space<vmem>>, vector<128x512xf32>
    %c0_5 = arith.constant 0 : index
    %c0_6 = arith.constant 0 : index
    %9 = vector.load %arg4[%c0_5, %c0_6] : memref<128x512xf32, #tpu.memory_space<vmem>>, vector<128x512xf32>
    %c0_7 = arith.constant 0 : index
    %c0_8 = arith.constant 0 : index
    %10 = vector.load %arg5[%c0_7, %c0_8] : memref<128x1xi32, #tpu.memory_space<vmem>>, vector<128x1xi32>
    %c512_i32 = arith.constant 512 : i32
    %11 = arith.muli %arg2, %c512_i32 : i32
    %12 = vector.broadcast %11 : i32 to vector<128x1xi32>
    %13 = arith.subi %10, %12 : vector<128x1xi32>
    %14 = tpu.iota {dimensions = array<i32: 1>} : vector<128x512xi32>
    %15 = vector.broadcast %13 : vector<128x1xi32> to vector<128x512xi32>
    %16 = arith.cmpi eq, %14, %15 : vector<128x512xi32>
    %c0_9 = arith.constant 0 : index
    %c0_10 = arith.constant 0 : index
    %17 = vector.load %arg17[%c0_9, %c0_10] : memref<128x1xf32, #tpu.memory_space<vmem>>, vector<128x1xf32>
    %18 = arith.subf %8, %9 : vector<128x512xf32>
    %cst = arith.constant 0.000000e+00 : f32
    %19 = vector.broadcast %cst : f32 to vector<128x512xf32>
    %20 = arith.select %16, %18, %19 : vector<128x512xi1>, vector<128x512xf32>
    %cst_11 = arith.constant dense<0.000000e+00> : vector<128xf32>
    %21 = vector.multi_reduction <add>, %20, %cst_11 [1] : vector<128x512xf32> to vector<128xf32>
    %22 = vector.shape_cast %21 : vector<128xf32> to vector<128x1xf32>
    %23 = arith.addf %17, %22 : vector<128x1xf32>
    %c0_12 = arith.constant 0 : index
    %c0_13 = arith.constant 0 : index
    %24 = vector.load %arg17[%c0_12, %c0_13] : memref<128x1xf32, #tpu.memory_space<vmem>>, vector<128x1xf32>
    tpu.vector_store %arg17[%c0_12, %c0_13], %23 {strides = array<i32>} : memref<128x1xf32, #tpu.memory_space<vmem>>, vector<128x1xf32>,
    %c0_14 = arith.constant 0 : index
    %c0_15 = arith.constant 0 : index
    %25 = vector.load %arg12[%c0_14, %c0_15] : memref<128x1xf32, #tpu.memory_space<vmem>>, vector<128x1xf32>
    %cst_16 = arith.constant dense<0xFF800000> : vector<128xf32>
    %26 = vector.multi_reduction <maximumf>, %8, %cst_16 [1] : vector<128x512xf32> to vector<128xf32>
    %27 = vector.shape_cast %26 : vector<128xf32> to vector<128x1xf32>
    %28 = arith.maximumf %25, %27 : vector<128x1xf32>
    %29 = arith.subf %25, %28 : vector<128x1xf32>
    %30 = math.exp %29 : vector<128x1xf32>
    %31 = vector.broadcast %28 : vector<128x1xf32> to vector<128x512xf32>
    %32 = arith.subf %8, %31 : vector<128x512xf32>
    %33 = math.exp %32 : vector<128x512xf32>
    %c0_17 = arith.constant 0 : index
    %c0_18 = arith.constant 0 : index
    %34 = vector.load %arg13[%c0_17, %c0_18] : memref<128x1xf32, #tpu.memory_space<vmem>>, vector<128x1xf32>
    %35 = arith.mulf %34, %30 : vector<128x1xf32>
    %cst_19 = arith.constant dense<0.000000e+00> : vector<128xf32>
    %36 = vector.multi_reduction <add>, %33, %cst_19 [1] : vector<128x512xf32> to vector<128xf32>
    %37 = vector.shape_cast %36 : vector<128xf32> to vector<128x1xf32>
    %38 = arith.addf %35, %37 : vector<128x1xf32>
    %c0_20 = arith.constant 0 : index
    %c0_21 = arith.constant 0 : index
    %39 = vector.load %arg13[%c0_20, %c0_21] : memref<128x1xf32, #tpu.memory_space<vmem>>, vector<128x1xf32>
    tpu.vector_store %arg13[%c0_20, %c0_21], %38 {strides = array<i32>} : memref<128x1xf32, #tpu.memory_space<vmem>>, vector<128x1xf32>,
    %c0_22 = arith.constant 0 : index
    %c0_23 = arith.constant 0 : index
    %40 = vector.load %arg14[%c0_22, %c0_23] : memref<128x1xf32, #tpu.memory_space<vmem>>, vector<128x1xf32>
    %41 = arith.mulf %40, %30 : vector<128x1xf32>
    %42 = arith.mulf %33, %8 : vector<128x512xf32>
    %cst_24 = arith.constant dense<0.000000e+00> : vector<128xf32>
    %43 = vector.multi_reduction <add>, %42, %cst_24 [1] : vector<128x512xf32> to vector<128xf32>
    %44 = vector.shape_cast %43 : vector<128xf32> to vector<128x1xf32>
    %45 = arith.addf %41, %44 : vector<128x1xf32>
    %c0_25 = arith.constant 0 : index
    %c0_26 = arith.constant 0 : index
    %46 = vector.load %arg14[%c0_25, %c0_26] : memref<128x1xf32, #tpu.memory_space<vmem>>, vector<128x1xf32>
    tpu.vector_store %arg14[%c0_25, %c0_26], %45 {strides = array<i32>} : memref<128x1xf32, #tpu.memory_space<vmem>>, vector<128x1xf32>,
    %c0_27 = arith.constant 0 : index
    %c0_28 = arith.constant 0 : index
    %47 = vector.load %arg12[%c0_27, %c0_28] : memref<128x1xf32, #tpu.memory_space<vmem>>, vector<128x1xf32>
    tpu.vector_store %arg12[%c0_27, %c0_28], %28 {strides = array<i32>} : memref<128x1xf32, #tpu.memory_space<vmem>>, vector<128x1xf32>,
    %c0_29 = arith.constant 0 : index
    %c0_30 = arith.constant 0 : index
    %48 = vector.load %arg15[%c0_29, %c0_30] : memref<128x1xf32, #tpu.memory_space<vmem>>, vector<128x1xf32>
    %cst_31 = arith.constant dense<0xFF800000> : vector<128xf32>
    %49 = vector.multi_reduction <maximumf>, %9, %cst_31 [1] : vector<128x512xf32> to vector<128xf32>
    %50 = vector.shape_cast %49 : vector<128xf32> to vector<128x1xf32>
    %51 = arith.maximumf %48, %50 : vector<128x1xf32>
    %52 = arith.subf %48, %51 : vector<128x1xf32>
    %53 = math.exp %52 : vector<128x1xf32>
    %c0_32 = arith.constant 0 : index
    %c0_33 = arith.constant 0 : index
    %54 = vector.load %arg16[%c0_32, %c0_33] : memref<128x1xf32, #tpu.memory_space<vmem>>, vector<128x1xf32>
    %55 = arith.mulf %54, %53 : vector<128x1xf32>
    %56 = vector.broadcast %51 : vector<128x1xf32> to vector<128x512xf32>
    %57 = arith.subf %9, %56 : vector<128x512xf32>
    %58 = math.exp %57 : vector<128x512xf32>
    %cst_34 = arith.constant dense<0.000000e+00> : vector<128xf32>
    %59 = vector.multi_reduction <add>, %58, %cst_34 [1] : vector<128x512xf32> to vector<128xf32>
    %60 = vector.shape_cast %59 : vector<128xf32> to vector<128x1xf32>
    %61 = arith.addf %55, %60 : vector<128x1xf32>
    %c0_35 = arith.constant 0 : index
    %c0_36 = arith.constant 0 : index
    %62 = vector.load %arg16[%c0_35, %c0_36] : memref<128x1xf32, #tpu.memory_space<vmem>>, vector<128x1xf32>
    tpu.vector_store %arg16[%c0_35, %c0_36], %61 {strides = array<i32>} : memref<128x1xf32, #tpu.memory_space<vmem>>, vector<128x1xf32>,
    %c0_37 = arith.constant 0 : index
    %c0_38 = arith.constant 0 : index
    %63 = vector.load %arg15[%c0_37, %c0_38] : memref<128x1xf32, #tpu.memory_space<vmem>>, vector<128x1xf32>
    tpu.vector_store %arg15[%c0_37, %c0_38], %51 {strides = array<i32>} : memref<128x1xf32, #tpu.memory_space<vmem>>, vector<128x1xf32>,
    %c0_i32_39 = arith.constant 0 : i32
    %64 = arith.cmpi eq, %arg2, %c0_i32_39 : i32
    %65 = arith.extui %64 : i1 to i32
    %c0_i32_40 = arith.constant 0 : i32
    %66 = arith.cmpi ne, %65, %c0_i32_40 : i32
    scf.if %66 {
      %c0_44 = arith.constant 0 : index
      %c0_45 = arith.constant 0 : index
      %72 = vector.load %arg13[%c0_44, %c0_45] : memref<128x1xf32, #tpu.memory_space<vmem>>, vector<128x1xf32>
      %73 = math.log %72 : vector<128x1xf32>
      %c0_46 = arith.constant 0 : index
      %c0_47 = arith.constant 0 : index
      %74 = vector.load %arg12[%c0_46, %c0_47] : memref<128x1xf32, #tpu.memory_space<vmem>>, vector<128x1xf32>
      %75 = arith.addf %74, %73 : vector<128x1xf32>
      %c0_48 = arith.constant 0 : index
      %c0_49 = arith.constant 0 : index
      %76 = vector.load %arg14[%c0_48, %c0_49] : memref<128x1xf32, #tpu.memory_space<vmem>>, vector<128x1xf32>
      %77 = arith.divf %76, %72 : vector<128x1xf32>
      %c0_50 = arith.constant 0 : index
      %c0_51 = arith.constant 0 : index
      %78 = vector.load %arg12[%c0_50, %c0_51] : memref<128x1xf32, #tpu.memory_space<vmem>>, vector<128x1xf32>
      %79 = arith.subf %77, %78 : vector<128x1xf32>
      %80 = arith.subf %73, %79 : vector<128x1xf32>
      %c0_52 = arith.constant 0 : index
      %c0_53 = arith.constant 0 : index
      %81 = vector.load %arg15[%c0_52, %c0_53] : memref<128x1xf32, #tpu.memory_space<vmem>>, vector<128x1xf32>
      %c0_54 = arith.constant 0 : index
      %c0_55 = arith.constant 0 : index
      %82 = vector.load %arg16[%c0_54, %c0_55] : memref<128x1xf32, #tpu.memory_space<vmem>>, vector<128x1xf32>
      %83 = math.log %82 : vector<128x1xf32>
      %84 = arith.addf %81, %83 : vector<128x1xf32>
      %c0_56 = arith.constant 0 : index
      %c0_57 = arith.constant 0 : index
      %85 = vector.load %arg17[%c0_56, %c0_57] : memref<128x1xf32, #tpu.memory_space<vmem>>, vector<128x1xf32>
      %86 = arith.subf %75, %84 : vector<128x1xf32>
      %87 = arith.subf %85, %86 : vector<128x1xf32>
      %88 = math.exp %87 : vector<128x1xf32>
      %c0_58 = arith.constant 0 : index
      %c0_59 = arith.constant 0 : index
      %89 = vector.load %arg6[%c0_58, %c0_59] : memref<128x4xf32, #tpu.memory_space<vmem>>, vector<128x4xf32>
      %90 = vector.extract_strided_slice %89 {offsets = [0, 0], sizes = [128, 1], strides = [1, 1]} : vector<128x4xf32> to vector<128x1xf32>
      %91 = vector.extract_strided_slice %89 {offsets = [0, 1], sizes = [128, 1], strides = [1, 1]} : vector<128x4xf32> to vector<128x1xf32>
      %92 = vector.extract_strided_slice %89 {offsets = [0, 2], sizes = [128, 1], strides = [1, 1]} : vector<128x4xf32> to vector<128x1xf32>
      %93 = vector.extract_strided_slice %89 {offsets = [0, 3], sizes = [128, 1], strides = [1, 1]} : vector<128x4xf32> to vector<128x1xf32>
      %cst_60 = arith.constant 0.000000e+00 : f32
      %94 = vector.broadcast %cst_60 : f32 to vector<128x1xf32>
      %95 = arith.cmpf ogt, %90, %94 : vector<128x1xf32>
      %cst_61 = arith.constant 2.000000e-01 : f32
      %cst_62 = arith.constant 2.280000e+00 : f32
      %96 = vector.broadcast %cst_61 : f32 to vector<128x1xf32>
      %97 = arith.maximumf %96, %88 : vector<128x1xf32>
      %98 = vector.broadcast %cst_62 : f32 to vector<128x1xf32>
      %99 = arith.minimumf %98, %97 : vector<128x1xf32>
      %cst_63 = arith.constant 2.000000e-01 : f32
      %cst_64 = arith.constant 1.800000e+00 : f32
      %100 = vector.broadcast %cst_63 : f32 to vector<128x1xf32>
      %101 = arith.maximumf %100, %88 : vector<128x1xf32>
      %102 = vector.broadcast %cst_64 : f32 to vector<128x1xf32>
      %103 = arith.minimumf %102, %101 : vector<128x1xf32>
      %104 = arith.select %95, %99, %103 : vector<128x1xi1>, vector<128x1xf32>
      %cst_65 = arith.constant 0.000000e+00 : f32
      %105 = vector.broadcast %cst_65 : f32 to vector<128x1xf32>
      %106 = arith.subf %105, %90 : vector<128x1xf32>
      %107 = arith.mulf %106, %88 : vector<128x1xf32>
      %cst_66 = arith.constant 0.000000e+00 : f32
      %108 = vector.broadcast %cst_66 : f32 to vector<128x1xf32>
      %109 = arith.subf %108, %90 : vector<128x1xf32>
      %110 = arith.mulf %109, %104 : vector<128x1xf32>
      %111 = arith.maximumf %107, %110 : vector<128x1xf32>
      %112 = arith.mulf %111, %93 : vector<128x1xf32>
      %c0_67 = arith.constant 0 : index
      %c0_68 = arith.constant 0 : index
      %113 = vector.load %arg18[%c0_67, %c0_68] : memref<128x1xf32, #tpu.memory_space<vmem>>, vector<128x1xf32>
      %114 = arith.addf %113, %112 : vector<128x1xf32>
      %c0_69 = arith.constant 0 : index
      %c0_70 = arith.constant 0 : index
      %115 = vector.load %arg18[%c0_69, %c0_70] : memref<128x1xf32, #tpu.memory_space<vmem>>, vector<128x1xf32>
      tpu.vector_store %arg18[%c0_69, %c0_70], %114 {strides = array<i32>} : memref<128x1xf32, #tpu.memory_space<vmem>>, vector<128x1xf32>,
      %c0_71 = arith.constant 0 : index
      %c0_72 = arith.constant 0 : index
      %116 = vector.load %arg19[%c0_71, %c0_72] : memref<128x1xf32, #tpu.memory_space<vmem>>, vector<128x1xf32>
      %117 = arith.addf %116, %93 : vector<128x1xf32>
      %c0_73 = arith.constant 0 : index
      %c0_74 = arith.constant 0 : index
      %118 = vector.load %arg19[%c0_73, %c0_74] : memref<128x1xf32, #tpu.memory_space<vmem>>, vector<128x1xf32>
      tpu.vector_store %arg19[%c0_73, %c0_74], %117 {strides = array<i32>} : memref<128x1xf32, #tpu.memory_space<vmem>>, vector<128x1xf32>,
      %c0_75 = arith.constant 0 : index
      %c0_76 = arith.constant 0 : index
      %119 = vector.load %arg20[%c0_75, %c0_76] : memref<128x1xf32, #tpu.memory_space<vmem>>, vector<128x1xf32>
      %120 = arith.subf %92, %91 : vector<128x1xf32>
      %121 = arith.mulf %120, %120 : vector<128x1xf32>
      %122 = arith.mulf %121, %93 : vector<128x1xf32>
      %123 = arith.addf %119, %122 : vector<128x1xf32>
      %c0_77 = arith.constant 0 : index
      %c0_78 = arith.constant 0 : index
      %124 = vector.load %arg20[%c0_77, %c0_78] : memref<128x1xf32, #tpu.memory_space<vmem>>, vector<128x1xf32>
      tpu.vector_store %arg20[%c0_77, %c0_78], %123 {strides = array<i32>} : memref<128x1xf32, #tpu.memory_space<vmem>>, vector<128x1xf32>,
      %c0_79 = arith.constant 0 : index
      %c0_80 = arith.constant 0 : index
      %125 = vector.load %arg21[%c0_79, %c0_80] : memref<128x1xf32, #tpu.memory_space<vmem>>, vector<128x1xf32>
      %126 = arith.mulf %80, %93 : vector<128x1xf32>
      %127 = arith.addf %125, %126 : vector<128x1xf32>
      %c0_81 = arith.constant 0 : index
      %c0_82 = arith.constant 0 : index
      %128 = vector.load %arg21[%c0_81, %c0_82] : memref<128x1xf32, #tpu.memory_space<vmem>>, vector<128x1xf32>
      tpu.vector_store %arg21[%c0_81, %c0_82], %127 {strides = array<i32>} : memref<128x1xf32, #tpu.memory_space<vmem>>, vector<128x1xf32>,
      %c0_83 = arith.constant 0 : index
      %c0_84 = arith.constant 0 : index
      %129 = vector.load %arg22[%c0_83, %c0_84] : memref<128x1xf32, #tpu.memory_space<vmem>>, vector<128x1xf32>
      %cst_85 = arith.constant 1.000000e+00 : f32
      %130 = vector.broadcast %cst_85 : f32 to vector<128x1xf32>
      %131 = arith.subf %88, %130 : vector<128x1xf32>
      %132 = arith.subf %131, %87 : vector<128x1xf32>
      %133 = arith.addf %129, %132 : vector<128x1xf32>
      %c0_86 = arith.constant 0 : index
      %c0_87 = arith.constant 0 : index
      %134 = vector.load %arg22[%c0_86, %c0_87] : memref<128x1xf32, #tpu.memory_space<vmem>>, vector<128x1xf32>
      tpu.vector_store %arg22[%c0_86, %c0_87], %133 {strides = array<i32>} : memref<128x1xf32, #tpu.memory_space<vmem>>, vector<128x1xf32>,
    } else {
    }
    %c0_i32_41 = arith.constant 0 : i32
    %67 = arith.cmpi eq, %arg1, %c0_i32_41 : i32
    %c0_i32_42 = arith.constant 0 : i32
    %68 = arith.cmpi eq, %arg2, %c0_i32_42 : i32
    %69 = arith.andi %67, %68 : i1
    %70 = arith.extui %69 : i1 to i32
    %c0_i32_43 = arith.constant 0 : i32
    %71 = arith.cmpi ne, %70, %c0_i32_43 : i32
    scf.if %71 {
      %c0_44 = arith.constant 0 : index
      %c0_45 = arith.constant 0 : index
      %72 = vector.load %arg18[%c0_44, %c0_45] : memref<128x1xf32, #tpu.memory_space<vmem>>, vector<128x1xf32>
      %cst_46 = arith.constant dense<0.000000e+00> : vector<1xf32>
      %73 = vector.multi_reduction <add>, %72, %cst_46 [0] : vector<128x1xf32> to vector<1xf32>
      %74 = vector.shape_cast %73 : vector<1xf32> to vector<1x1xf32>
      %c0_47 = arith.constant 0 : index
      %c0_48 = arith.constant 0 : index
      %c0_49 = arith.constant 0 : index
      %75 = vector.load %arg7[%c0_47, %c0_48, %c0_49] : memref<1x1x1xf32, #tpu.memory_space<vmem>>, vector<1x1x1xf32>
      %76 = vector.shape_cast %75 : vector<1x1x1xf32> to vector<1x1xf32>
      %77 = vector.shape_cast %74 : vector<1x1xf32> to vector<1x1x1xf32>
      tpu.vector_store %arg7[%c0_47, %c0_48, %c0_49], %77 {strides = array<i32>} : memref<1x1x1xf32, #tpu.memory_space<vmem>>, vector<1x1x1xf32>,
      %c0_50 = arith.constant 0 : index
      %c0_51 = arith.constant 0 : index
      %78 = vector.load %arg19[%c0_50, %c0_51] : memref<128x1xf32, #tpu.memory_space<vmem>>, vector<128x1xf32>
      %cst_52 = arith.constant dense<0.000000e+00> : vector<1xf32>
      %79 = vector.multi_reduction <add>, %78, %cst_52 [0] : vector<128x1xf32> to vector<1xf32>
      %80 = vector.shape_cast %79 : vector<1xf32> to vector<1x1xf32>
      %c0_53 = arith.constant 0 : index
      %c0_54 = arith.constant 0 : index
      %c0_55 = arith.constant 0 : index
      %81 = vector.load %arg8[%c0_53, %c0_54, %c0_55] : memref<1x1x1xf32, #tpu.memory_space<vmem>>, vector<1x1x1xf32>
      %82 = vector.shape_cast %81 : vector<1x1x1xf32> to vector<1x1xf32>
      %83 = vector.shape_cast %80 : vector<1x1xf32> to vector<1x1x1xf32>
      tpu.vector_store %arg8[%c0_53, %c0_54, %c0_55], %83 {strides = array<i32>} : memref<1x1x1xf32, #tpu.memory_space<vmem>>, vector<1x1x1xf32>,
      %c0_56 = arith.constant 0 : index
      %c0_57 = arith.constant 0 : index
      %84 = vector.load %arg20[%c0_56, %c0_57] : memref<128x1xf32, #tpu.memory_space<vmem>>, vector<128x1xf32>
      %cst_58 = arith.constant dense<0.000000e+00> : vector<1xf32>
      %85 = vector.multi_reduction <add>, %84, %cst_58 [0] : vector<128x1xf32> to vector<1xf32>
      %86 = vector.shape_cast %85 : vector<1xf32> to vector<1x1xf32>
      %c0_59 = arith.constant 0 : index
      %c0_60 = arith.constant 0 : index
      %c0_61 = arith.constant 0 : index
      %87 = vector.load %arg9[%c0_59, %c0_60, %c0_61] : memref<1x1x1xf32, #tpu.memory_space<vmem>>, vector<1x1x1xf32>
      %88 = vector.shape_cast %87 : vector<1x1x1xf32> to vector<1x1xf32>
      %89 = vector.shape_cast %86 : vector<1x1xf32> to vector<1x1x1xf32>
      tpu.vector_store %arg9[%c0_59, %c0_60, %c0_61], %89 {strides = array<i32>} : memref<1x1x1xf32, #tpu.memory_space<vmem>>, vector<1x1x1xf32>,
      %c0_62 = arith.constant 0 : index
      %c0_63 = arith.constant 0 : index
      %90 = vector.load %arg21[%c0_62, %c0_63] : memref<128x1xf32, #tpu.memory_space<vmem>>, vector<128x1xf32>
      %cst_64 = arith.constant dense<0.000000e+00> : vector<1xf32>
      %91 = vector.multi_reduction <add>, %90, %cst_64 [0] : vector<128x1xf32> to vector<1xf32>
      %92 = vector.shape_cast %91 : vector<1xf32> to vector<1x1xf32>
      %c0_65 = arith.constant 0 : index
      %c0_66 = arith.constant 0 : index
      %c0_67 = arith.constant 0 : index
      %93 = vector.load %arg10[%c0_65, %c0_66, %c0_67] : memref<1x1x1xf32, #tpu.memory_space<vmem>>, vector<1x1x1xf32>
      %94 = vector.shape_cast %93 : vector<1x1x1xf32> to vector<1x1xf32>
      %95 = vector.shape_cast %92 : vector<1x1xf32> to vector<1x1x1xf32>
      tpu.vector_store %arg10[%c0_65, %c0_66, %c0_67], %95 {strides = array<i32>} : memref<1x1x1xf32, #tpu.memory_space<vmem>>, vector<1x1x1xf32>,
      %c0_68 = arith.constant 0 : index
      %c0_69 = arith.constant 0 : index
      %96 = vector.load %arg22[%c0_68, %c0_69] : memref<128x1xf32, #tpu.memory_space<vmem>>, vector<128x1xf32>
      %cst_70 = arith.constant dense<0.000000e+00> : vector<1xf32>
      %97 = vector.multi_reduction <add>, %96, %cst_70 [0] : vector<128x1xf32> to vector<1xf32>
      %98 = vector.shape_cast %97 : vector<1xf32> to vector<1x1xf32>
      %c0_71 = arith.constant 0 : index
      %c0_72 = arith.constant 0 : index
      %c0_73 = arith.constant 0 : index
      %99 = vector.load %arg11[%c0_71, %c0_72, %c0_73] : memref<1x1x1xf32, #tpu.memory_space<vmem>>, vector<1x1x1xf32>
      %100 = vector.shape_cast %99 : vector<1x1x1xf32> to vector<1x1xf32>
      %101 = vector.shape_cast %98 : vector<1x1xf32> to vector<1x1x1xf32>
      tpu.vector_store %arg11[%c0_71, %c0_72, %c0_73], %101 {strides = array<i32>} : memref<1x1x1xf32, #tpu.memory_space<vmem>>, vector<1x1x1xf32>,
    } else {
    }
    return
  }
  func.func @transform_0(%arg0: i32, %arg1: i32, %arg2: i32) -> (i32, i32) {
    %c1_i32 = arith.constant 1 : i32
    %0 = arith.muli %arg0, %c1_i32 : i32
    %1 = arith.addi %0, %arg1 : i32
    %c0_i32 = arith.constant 0 : i32
    return %1, %arg2 : i32, i32
  }
  func.func @transform_1(%arg0: i32, %arg1: i32, %arg2: i32) -> (i32, i32) {
    %c1_i32 = arith.constant 1 : i32
    %0 = arith.muli %arg0, %c1_i32 : i32
    %1 = arith.addi %0, %arg1 : i32
    %c0_i32 = arith.constant 0 : i32
    return %1, %arg2 : i32, i32
  }
  func.func @transform_2(%arg0: i32, %arg1: i32, %arg2: i32) -> (i32, i32) {
    %c1_i32 = arith.constant 1 : i32
    %0 = arith.muli %arg0, %c1_i32 : i32
    %1 = arith.addi %0, %arg1 : i32
    %c0_i32 = arith.constant 0 : i32
    %c0_i32_0 = arith.constant 0 : i32
    return %1, %c0_i32 : i32, i32
  }
  func.func @transform_3(%arg0: i32, %arg1: i32, %arg2: i32) -> (i32, i32) {
    %c1_i32 = arith.constant 1 : i32
    %0 = arith.muli %arg0, %c1_i32 : i32
    %1 = arith.addi %0, %arg1 : i32
    %c0_i32 = arith.constant 0 : i32
    %c0_i32_0 = arith.constant 0 : i32
    return %1, %c0_i32 : i32, i32
  }
  func.func @transform_4(%arg0: i32, %arg1: i32, %arg2: i32) -> (i32, i32, i32) {
    %c0_i32 = arith.constant 0 : i32
    %c0_i32_0 = arith.constant 0 : i32
    %c0_i32_1 = arith.constant 0 : i32
    return %arg0, %c0_i32, %c0_i32_0 : i32, i32, i32
  }
  func.func @transform_5(%arg0: i32, %arg1: i32, %arg2: i32) -> (i32, i32, i32) {
    %c0_i32 = arith.constant 0 : i32
    %c0_i32_0 = arith.constant 0 : i32
    %c0_i32_1 = arith.constant 0 : i32
    return %arg0, %c0_i32, %c0_i32_0 : i32, i32, i32
  }
  func.func @transform_6(%arg0: i32, %arg1: i32, %arg2: i32) -> (i32, i32, i32) {
    %c0_i32 = arith.constant 0 : i32
    %c0_i32_0 = arith.constant 0 : i32
    %c0_i32_1 = arith.constant 0 : i32
    return %arg0, %c0_i32, %c0_i32_0 : i32, i32, i32
  }
  func.func @transform_7(%arg0: i32, %arg1: i32, %arg2: i32) -> (i32, i32, i32) {
    %c0_i32 = arith.constant 0 : i32
    %c0_i32_0 = arith.constant 0 : i32
    %c0_i32_1 = arith.constant 0 : i32
    return %arg0, %c0_i32, %c0_i32_0 : i32, i32, i32
  }
  func.func @transform_8(%arg0: i32, %arg1: i32, %arg2: i32) -> (i32, i32, i32) {
    %c0_i32 = arith.constant 0 : i32
    %c0_i32_0 = arith.constant 0 : i32
    %c0_i32_1 = arith.constant 0 : i32
    return %arg0, %c0_i32, %c0_i32_0 : i32, i32, i32
  }
}

</mosaic_0001>

<llo_original>
// kernel: tpu_custom_call.1
$region0: #{tpu_custom_call.1}
  #allocation0 [shape = 'u32[]', space=smem, size = 0x4, offset = 0x4, fixed_abs, tag = 'smem constant byte address 0x4 - core index']
  #allocation1 [shape = 'u32[144,128]{1,0:T(1,128)}', space=vmem, size = 0x12000, scoped, tag = 'internal scratch']
  #allocation2 [shape = 'f32[128,1]{1,0:T(8,128)}', space=vmem, size = 0x10000, scoped, tag = 'scratch operand']
  #allocation3 [shape = 'f32[128,1]{1,0:T(8,128)}', space=vmem, size = 0x10000, scoped, tag = 'scratch operand']
  #allocation4 [shape = 'f32[128,1]{1,0:T(8,128)}', space=vmem, size = 0x10000, scoped, tag = 'scratch operand']
  #allocation5 [shape = 'f32[128,1]{1,0:T(8,128)}', space=vmem, size = 0x10000, scoped, tag = 'scratch operand']
  #allocation6 [shape = 'f32[128,1]{1,0:T(8,128)}', space=vmem, size = 0x10000, scoped, tag = 'scratch operand']
  #allocation7 [shape = 'f32[128,1]{1,0:T(8,128)}', space=vmem, size = 0x10000, scoped, tag = 'scratch operand']
  #allocation8 [shape = 'f32[128,1]{1,0:T(8,128)}', space=vmem, size = 0x10000, scoped, tag = 'scratch operand']
  #allocation9 [shape = 'f32[128,1]{1,0:T(8,128)}', space=vmem, size = 0x10000, scoped, tag = 'scratch operand']
  #allocation10 [shape = 'f32[128,1]{1,0:T(8,128)}', space=vmem, size = 0x10000, scoped, tag = 'scratch operand']
  #allocation11 [shape = 'f32[128,1]{1,0:T(8,128)}', space=vmem, size = 0x10000, scoped, tag = 'scratch operand']
  #allocation12 [shape = 'f32[128,1]{1,0:T(8,128)}', space=vmem, size = 0x10000, scoped, tag = 'scratch operand']
  %s0 = inlined_call_operand.hbm [shape: f32[128,512], index: 0, kind: input, shape index: {}]
  %s1 = inlined_call_operand.hbm [shape: f32[128,512], index: 1, kind: input, shape index: {}]
  %s2 = inlined_call_operand.vmem [shape: s32[128,1], index: 2, kind: input, shape index: {}]
  %s3 = inlined_call_operand.vmem [shape: f32[128,4], index: 3, kind: input, shape index: {}]
  %s4 = inlined_call_operand.hbm [shape: f32[1,1,1], index: 4, kind: output, shape index: {0}]
  %s5 = inlined_call_operand.hbm [shape: f32[1,1,1], index: 5, kind: output, shape index: {1}]
  %s6 = inlined_call_operand.hbm [shape: f32[1,1,1], index: 6, kind: output, shape index: {2}]
  %s7 = inlined_call_operand.hbm [shape: f32[1,1,1], index: 7, kind: output, shape index: {3}]
  %s8 = inlined_call_operand.hbm [shape: f32[1,1,1], index: 8, kind: output, shape index: {4}]
  %9 = xla_tuple %s4, %s5, %s6, %s7, %s8
  %s10 = sld [smem:[#allocation0]]
  $region82: #{tpu_custom_call.1} parent=0
    _
  %s12 = ssub.s32 1, %s10
  %s13 = scalar_select 0, %s12, %s10
  $region1: #{tpu_custom_call.1} parent=0
    #allocation13 [shape = 'u8[262144]{0}', space=vmem, size = 0x40000, scoped, tag = 'input window, operand 0, single buffered']
    #allocation14 [shape = 's32[1]{0}', space=sflag, size = 0x4, scoped, tag = 'scoped memory for tpu_custom_call.1']
    #allocation15 [shape = 's32[1]{0}', space=sflag, size = 0x4, scoped, tag = 'scoped memory for tpu_custom_call.1']
    #allocation16 [shape = 'u8[262144]{0}', space=vmem, size = 0x40000, scoped, tag = 'input window, operand 1, single buffered']
    #allocation17 [shape = 's32[1]{0}', space=sflag, size = 0x4, scoped, tag = 'scoped memory for tpu_custom_call.1']
    #allocation18 [shape = 'u8[512]{0}', space=vmem, size = 0x400, scoped, tag = 'output window, operand 0, single buffered']
    #allocation19 [shape = 'u8[512]{0}', space=vmem, size = 0x400, scoped, tag = 'output window, operand 1, single buffered']
    #allocation20 [shape = 's32[1]{0}', space=sflag, size = 0x4, scoped, tag = 'scoped memory for tpu_custom_call.1']
    #allocation21 [shape = 'u8[512]{0}', space=vmem, size = 0x400, scoped, tag = 'output window, operand 2, single buffered']
    #allocation22 [shape = 'u8[512]{0}', space=vmem, size = 0x400, scoped, tag = 'output window, operand 3, single buffered']
    #allocation23 [shape = 's32[1]{0}', space=sflag, size = 0x4, scoped, tag = 'scoped memory for tpu_custom_call.1']
    #allocation24 [shape = 'u8[512]{0}', space=vmem, size = 0x400, scoped, tag = 'output window, operand 4, single buffered']
    %14 = vsyncpa [#allocation14], 0
    %15 = vsyncpa [#allocation17], 0
    %16 = vsyncpa [#allocation15], 0
    %17 = vsyncpa [#allocation20], 0
    %18 = vsyncpa [#allocation23], 0
    // Predicated region
    $region2: #{tpu_custom_call.1} parent=1 // pred_check
      _
    $region3: #{tpu_custom_call.1} parent=1 // pred_check_branch
      %20 = sbr.rel (0) target = $region5
    $region4: #{tpu_custom_call.1} parent=1 // pred_region
      %s21 = sadd.s32 0, 0
      %s22 = smul.u32 16, %s21
      %s24 = ssub.s32 8192, 8192
      %25 = vsyncadd [#allocation14], %s24
      %s26 = smul.addr %s22, 4
      %s27 = smul.addr %s26, 128
      %s28 = scalar_lea.hbm %s0, %s27
      %s29 = sshll.u32 [#allocation13], 4
      %s30 = int_to_ptr.vmem [resolvable:$true] %s29
      %35 = dma.hbm_to_vmem [thread:$0]  %s28, 8192, %s30, [#allocation14], 512, 512, 32
    $region5: #{tpu_custom_call.1} parent=1 // pred_fallthru
      _
    // Predicated region
    $region6: #{tpu_custom_call.1} parent=1 // pred_check
      _
    $region7: #{tpu_custom_call.1} parent=1 // pred_check_branch
      %37 = sbr.rel (0) target = $region9
    $region8: #{tpu_custom_call.1} parent=1 // pred_region
      %s38 = sadd.s32 0, 0
      %s39 = smul.u32 16, %s38
      %s41 = ssub.s32 8192, 8192
      %42 = vsyncadd [#allocation17], %s41
      %s43 = smul.addr %s39, 4
      %s44 = smul.addr %s43, 128
      %s45 = scalar_lea.hbm %s1, %s44
      %s46 = sshll.u32 [#allocation16], 4
      %s47 = int_to_ptr.vmem [resolvable:$true] %s46
      %52 = dma.hbm_to_vmem [thread:$0]  %s45, 8192, %s47, [#allocation17], 512, 512, 32
    $region9: #{tpu_custom_call.1} parent=1 // pred_fallthru
      _
    // Predicated region
    $region10: #{tpu_custom_call.1} parent=1 // pred_check
      _
    $region11: #{tpu_custom_call.1} parent=1 // pred_check_branch
      %54 = sbr.rel (0) target = $region13
    $region12: #{tpu_custom_call.1} parent=1 // pred_region
      %s55 = sadd.s32 0, 0
      %s56 = smul.u32 16, %s55
      %p57 = scmp.lt.s32.totalorder %s56, 15
      %s58 = scalar_select %p57, %s56, 15
      %s59 = smul.addr %s58, 8
      %s60 = scalar_lea.vmem %s2, %s59
      %s61 = sadd.s32 0, 0
      %s62 = smul.u32 16, %s61
    $region13: #{tpu_custom_call.1} parent=1 // pred_fallthru
      _
    // Predicated region
    $region14: #{tpu_custom_call.1} parent=1 // pred_check
      _
    $region15: #{tpu_custom_call.1} parent=1 // pred_check_branch
      %64 = sbr.rel (0) target = $region17
    $region16: #{tpu_custom_call.1} parent=1 // pred_region
      %s65 = sadd.s32 0, 0
      %s66 = smul.u32 16, %s65
      %p67 = scmp.lt.s32.totalorder %s66, 15
      %s68 = scalar_select %p67, %s66, 15
      %s69 = smul.addr %s68, 8
      %s70 = scalar_lea.vmem %s3, %s69
      %s71 = sadd.s32 0, 0
      %s72 = smul.u32 16, %s71
    $region17: #{tpu_custom_call.1} parent=1 // pred_fallthru
      _
    // Predicated region
    $region18: #{tpu_custom_call.1} parent=1 // pred_check
      _
    $region19: #{tpu_custom_call.1} parent=1 // pred_check_branch
      %74 = sbr.rel (0) target = $region21
    $region20: #{tpu_custom_call.1} parent=1 // pred_region
      %75 = dma.done [#allocation14], 8192
    $region21: #{tpu_custom_call.1} parent=1 // pred_fallthru
      _
    // Predicated region
    $region22: #{tpu_custom_call.1} parent=1 // pred_check
      _
    $region23: #{tpu_custom_call.1} parent=1 // pred_check_branch
      %77 = sbr.rel (0) target = $region25
    $region24: #{tpu_custom_call.1} parent=1 // pred_region
      %78 = dma.done [#allocation17], 8192
    $region25: #{tpu_custom_call.1} parent=1 // pred_fallthru
      _
    %s79 = sadd.s32 0, 0
    %s80 = smul.u32 16, %s79
    %p81 = scmp.lt.s32.totalorder %s80, 15
    %s82 = scalar_select %p81, %s80, 15
    %s83 = smul.addr %s82, 8
    %s84 = scalar_lea.vmem %s2, %s83
    %s85 = sadd.s32 0, 0
    %s86 = smul.u32 16, %s85
    %p87 = scmp.lt.s32.totalorder %s86, 15
    %s88 = scalar_select %p87, %s86, 15
    %s89 = smul.addr %s88, 8
    %s90 = scalar_lea.vmem %s3, %s89
    %s91 = sadd.s32 0, 0
    %s92 = smul.u32 16, %s91
    %s93 = sadd.s32 0, 0
    %s94 = smul.u32 16, %s93
    %s95 = sadd.s32 0, 0
    %s96 = smul.u32 16, %s95
    %p97 = scmp.lt.s32.totalorder %s96, 15
    %s98 = scalar_select %p97, %s96, 15
    %s99 = smul.addr %s98, 8
    %s100 = scalar_lea.vmem %s2, %s99
    %s101 = sadd.s32 0, 0
    %s102 = smul.u32 16, %s101
    %s103 = sadd.s32 0, 0
    %s104 = smul.u32 16, %s103
    %p105 = scmp.lt.s32.totalorder %s104, 15
    %s106 = scalar_select %p105, %s104, 15
    %s107 = smul.addr %s106, 8
    %s108 = scalar_lea.vmem %s3, %s107
    %s109 = sadd.s32 0, 0
    %s110 = smul.u32 16, %s109
    %p111 = scmp.eq.s32.totalorder 0, 0
    %p112 = scmp.eq.s32.totalorder 0, 0
    %p113 = pnand %p111, %p112
    %p114 = pneg %p113
    // Predicated region
    $region26: #{tpu_custom_call.1} parent=1 // pred_check
      _
    $region27: #{tpu_custom_call.1} parent=1 // pred_check_branch
      %116 = sbr.rel (%p113) target = $region29
    $region28: #{tpu_custom_call.1} parent=1 // pred_region
      %vm117 = vcmask 7168
      %118 = vst.msk [vmem:[#allocation8] sm:$0xff] %vm117, 0.0
      %119 = vst.msk [vmem:[#allocation8 + $0x8] sm:$0xff] %vm117, 0.0
      %120 = vst.msk [vmem:[#allocation8 + $0x10] sm:$0xff] %vm117, 0.0
      %121 = vst.msk [vmem:[#allocation8 + $0x18] sm:$0xff] %vm117, 0.0
      %122 = vst.msk [vmem:[#allocation8 + $0x20] sm:$0xff] %vm117, 0.0
      %123 = vst.msk [vmem:[#allocation8 + $0x28] sm:$0xff] %vm117, 0.0
      %124 = vst.msk [vmem:[#allocation8 + $0x30] sm:$0xff] %vm117, 0.0
      %125 = vst.msk [vmem:[#allocation8 + $0x38] sm:$0xff] %vm117, 0.0
      %126 = vst.msk [vmem:[#allocation8 + $0x40] sm:$0xff] %vm117, 0.0
      %127 = vst.msk [vmem:[#allocation8 + $0x48] sm:$0xff] %vm117, 0.0
      %128 = vst.msk [vmem:[#allocation8 + $0x50] sm:$0xff] %vm117, 0.0
      %129 = vst.msk [vmem:[#allocation8 + $0x58] sm:$0xff] %vm117, 0.0
      %130 = vst.msk [vmem:[#allocation8 + $0x60] sm:$0xff] %vm117, 0.0
      %131 = vst.msk [vmem:[#allocation8 + $0x68] sm:$0xff] %vm117, 0.0
      %132 = vst.msk [vmem:[#allocation8 + $0x70] sm:$0xff] %vm117, 0.0
      %133 = vst.msk [vmem:[#allocation8 + $0x78] sm:$0xff] %vm117, 0.0
      %134 = vst.msk [vmem:[#allocation9] sm:$0xff] %vm117, 0.0
      %135 = vst.msk [vmem:[#allocation9 + $0x8] sm:$0xff] %vm117, 0.0
      %136 = vst.msk [vmem:[#allocation9 + $0x10] sm:$0xff] %vm117, 0.0
      %137 = vst.msk [vmem:[#allocation9 + $0x18] sm:$0xff] %vm117, 0.0
      %138 = vst.msk [vmem:[#allocation9 + $0x20] sm:$0xff] %vm117, 0.0
      %139 = vst.msk [vmem:[#allocation9 + $0x28] sm:$0xff] %vm117, 0.0
      %140 = vst.msk [vmem:[#allocation9 + $0x30] sm:$0xff] %vm117, 0.0
      %141 = vst.msk [vmem:[#allocation9 + $0x38] sm:$0xff] %vm117, 0.0
      %142 = vst.msk [vmem:[#allocation9 + $0x40] sm:$0xff] %vm117, 0.0
      %143 = vst.msk [vmem:[#allocation9 + $0x48] sm:$0xff] %vm117, 0.0
      %144 = vst.msk [vmem:[#allocation9 + $0x50] sm:$0xff] %vm117, 0.0
      %145 = vst.msk [vmem:[#allocation9 + $0x58] sm:$0xff] %vm117, 0.0
      %146 = vst.msk [vmem:[#allocation9 + $0x60] sm:$0xff] %vm117, 0.0
      %147 = vst.msk [vmem:[#allocation9 + $0x68] sm:$0xff] %vm117, 0.0
      %148 = vst.msk [vmem:[#allocation9 + $0x70] sm:$0xff] %vm117, 0.0
      %149 = vst.msk [vmem:[#allocation9 + $0x78] sm:$0xff] %vm117, 0.0
      %150 = vst.msk [vmem:[#allocation10] sm:$0xff] %vm117, 0.0
      %151 = vst.msk [vmem:[#allocation10 + $0x8] sm:$0xff] %vm117, 0.0
      %152 = vst.msk [vmem:[#allocation10 + $0x10] sm:$0xff] %vm117, 0.0
      %153 = vst.msk [vmem:[#allocation10 + $0x18] sm:$0xff] %vm117, 0.0
      %154 = vst.msk [vmem:[#allocation10 + $0x20] sm:$0xff] %vm117, 0.0
      %155 = vst.msk [vmem:[#allocation10 + $0x28] sm:$0xff] %vm117, 0.0
      %156 = vst.msk [vmem:[#allocation10 + $0x30] sm:$0xff] %vm117, 0.0
      %157 = vst.msk [vmem:[#allocation10 + $0x38] sm:$0xff] %vm117, 0.0
      %158 = vst.msk [vmem:[#allocation10 + $0x40] sm:$0xff] %vm117, 0.0
      %159 = vst.msk [vmem:[#allocation10 + $0x48] sm:$0xff] %vm117, 0.0
      %160 = vst.msk [vmem:[#allocation10 + $0x50] sm:$0xff] %vm117, 0.0
      %161 = vst.msk [vmem:[#allocation10 + $0x58] sm:$0xff] %vm117, 0.0
      %162 = vst.msk [vmem:[#allocation10 + $0x60] sm:$0xff] %vm117, 0.0
      %163 = vst.msk [vmem:[#allocation10 + $0x68] sm:$0xff] %vm117, 0.0
      %164 = vst.msk [vmem:[#allocation10 + $0x70] sm:$0xff] %vm117, 0.0
      %165 = vst.msk [vmem:[#allocation10 + $0x78] sm:$0xff] %vm117, 0.0
      %166 = vst.msk [vmem:[#allocation11] sm:$0xff] %vm117, 0.0
      %167 = vst.msk [vmem:[#allocation11 + $0x8] sm:$0xff] %vm117, 0.0
      %168 = vst.msk [vmem:[#allocation11 + $0x10] sm:$0xff] %vm117, 0.0
      %169 = vst.msk [vmem:[#allocation11 + $0x18] sm:$0xff] %vm117, 0.0
      %170 = vst.msk [vmem:[#allocation11 + $0x20] sm:$0xff] %vm117, 0.0
      %171 = vst.msk [vmem:[#allocation11 + $0x28] sm:$0xff] %vm117, 0.0
      %172 = vst.msk [vmem:[#allocation11 + $0x30] sm:$0xff] %vm117, 0.0
      %173 = vst.msk [vmem:[#allocation11 + $0x38] sm:$0xff] %vm117, 0.0
      %174 = vst.msk [vmem:[#allocation11 + $0x40] sm:$0xff] %vm117, 0.0
      %175 = vst.msk [vmem:[#allocation11 + $0x48] sm:$0xff] %vm117, 0.0
      %176 = vst.msk [vmem:[#allocation11 + $0x50] sm:$0xff] %vm117, 0.0
      %177 = vst.msk [vmem:[#allocation11 + $0x58] sm:$0xff] %vm117, 0.0
      %178 = vst.msk [vmem:[#allocation11 + $0x60] sm:$0xff] %vm117, 0.0
      %179 = vst.msk [vmem:[#allocation11 + $0x68] sm:$0xff] %vm117, 0.0
      %180 = vst.msk [vmem:[#allocation11 + $0x70] sm:$0xff] %vm117, 0.0
      %181 = vst.msk [vmem:[#allocation11 + $0x78] sm:$0xff] %vm117, 0.0
      %182 = vst.msk [vmem:[#allocation12] sm:$0xff] %vm117, 0.0
      %183 = vst.msk [vmem:[#allocation12 + $0x8] sm:$0xff] %vm117, 0.0
      %184 = vst.msk [vmem:[#allocation12 + $0x10] sm:$0xff] %vm117, 0.0
      %185 = vst.msk [vmem:[#allocation12 + $0x18] sm:$0xff] %vm117, 0.0
      %186 = vst.msk [vmem:[#allocation12 + $0x20] sm:$0xff] %vm117, 0.0
      %187 = vst.msk [vmem:[#allocation12 + $0x28] sm:$0xff] %vm117, 0.0
      %188 = vst.msk [vmem:[#allocation12 + $0x30] sm:$0xff] %vm117, 0.0
      %189 = vst.msk [vmem:[#allocation12 + $0x38] sm:$0xff] %vm117, 0.0
      %190 = vst.msk [vmem:[#allocation12 + $0x40] sm:$0xff] %vm117, 0.0
      %191 = vst.msk [vmem:[#allocation12 + $0x48] sm:$0xff] %vm117, 0.0
      %192 = vst.msk [vmem:[#allocation12 + $0x50] sm:$0xff] %vm117, 0.0
      %193 = vst.msk [vmem:[#allocation12 + $0x58] sm:$0xff] %vm117, 0.0
      %194 = vst.msk [vmem:[#allocation12 + $0x60] sm:$0xff] %vm117, 0.0
      %195 = vst.msk [vmem:[#allocation12 + $0x68] sm:$0xff] %vm117, 0.0
      %196 = vst.msk [vmem:[#allocation12 + $0x70] sm:$0xff] %vm117, 0.0
      %197 = vst.msk [vmem:[#allocation12 + $0x78] sm:$0xff] %vm117, 0.0
    $region29: #{tpu_custom_call.1} parent=1 // pred_fallthru
      _
    // Predicated region
    $region30: #{tpu_custom_call.1} parent=1 // pred_check
      %p198 = pneg %p112
    $region31: #{tpu_custom_call.1} parent=1 // pred_check_branch
      %200 = sbr.rel (%p198) target = $region33
    $region32: #{tpu_custom_call.1} parent=1 // pred_region
      %vm201 = vcmask 7168
      %202 = vst.msk [vmem:[#allocation2] sm:$0xff] %vm201, -inf
      %203 = vst.msk [vmem:[#allocation2 + $0x8] sm:$0xff] %vm201, -inf
      %204 = vst.msk [vmem:[#allocation2 + $0x10] sm:$0xff] %vm201, -inf
      %205 = vst.msk [vmem:[#allocation2 + $0x18] sm:$0xff] %vm201, -inf
      %206 = vst.msk [vmem:[#allocation2 + $0x20] sm:$0xff] %vm201, -inf
      %207 = vst.msk [vmem:[#allocation2 + $0x28] sm:$0xff] %vm201, -inf
      %208 = vst.msk [vmem:[#allocation2 + $0x30] sm:$0xff] %vm201, -inf
      %209 = vst.msk [vmem:[#allocation2 + $0x38] sm:$0xff] %vm201, -inf
      %210 = vst.msk [vmem:[#allocation2 + $0x40] sm:$0xff] %vm201, -inf
      %211 = vst.msk [vmem:[#allocation2 + $0x48] sm:$0xff] %vm201, -inf
      %212 = vst.msk [vmem:[#allocation2 + $0x50] sm:$0xff] %vm201, -inf
      %213 = vst.msk [vmem:[#allocation2 + $0x58] sm:$0xff] %vm201, -inf
      %214 = vst.msk [vmem:[#allocation2 + $0x60] sm:$0xff] %vm201, -inf
      %215 = vst.msk [vmem:[#allocation2 + $0x68] sm:$0xff] %vm201, -inf
      %216 = vst.msk [vmem:[#allocation2 + $0x70] sm:$0xff] %vm201, -inf
      %217 = vst.msk [vmem:[#allocation2 + $0x78] sm:$0xff] %vm201, -inf
      %218 = vst.msk [vmem:[#allocation5] sm:$0xff] %vm201, -inf
      %219 = vst.msk [vmem:[#allocation5 + $0x8] sm:$0xff] %vm201, -inf
      %220 = vst.msk [vmem:[#allocation5 + $0x10] sm:$0xff] %vm201, -inf
      %221 = vst.msk [vmem:[#allocation5 + $0x18] sm:$0xff] %vm201, -inf
      %222 = vst.msk [vmem:[#allocation5 + $0x20] sm:$0xff] %vm201, -inf
      %223 = vst.msk [vmem:[#allocation5 + $0x28] sm:$0xff] %vm201, -inf
      %224 = vst.msk [vmem:[#allocation5 + $0x30] sm:$0xff] %vm201, -inf
      %225 = vst.msk [vmem:[#allocation5 + $0x38] sm:$0xff] %vm201, -inf
      %226 = vst.msk [vmem:[#allocation5 + $0x40] sm:$0xff] %vm201, -inf
      %227 = vst.msk [vmem:[#allocation5 + $0x48] sm:$0xff] %vm201, -inf
      %228 = vst.msk [vmem:[#allocation5 + $0x50] sm:$0xff] %vm201, -inf
      %229 = vst.msk [vmem:[#allocation5 + $0x58] sm:$0xff] %vm201, -inf
      %230 = vst.msk [vmem:[#allocation5 + $0x60] sm:$0xff] %vm201, -inf
      %231 = vst.msk [vmem:[#allocation5 + $0x68] sm:$0xff] %vm201, -inf
      %232 = vst.msk [vmem:[#allocation5 + $0x70] sm:$0xff] %vm201, -inf
      %233 = vst.msk [vmem:[#allocation5 + $0x78] sm:$0xff] %vm201, -inf
      %234 = vst.msk [vmem:[#allocation3] sm:$0xff] %vm201, 0.0
      %235 = vst.msk [vmem:[#allocation3 + $0x8] sm:$0xff] %vm201, 0.0
      %236 = vst.msk [vmem:[#allocation3 + $0x10] sm:$0xff] %vm201, 0.0
      %237 = vst.msk [vmem:[#allocation3 + $0x18] sm:$0xff] %vm201, 0.0
      %238 = vst.msk [vmem:[#allocation3 + $0x20] sm:$0xff] %vm201, 0.0
      %239 = vst.msk [vmem:[#allocation3 + $0x28] sm:$0xff] %vm201, 0.0
      %240 = vst.msk [vmem:[#allocation3 + $0x30] sm:$0xff] %vm201, 0.0
      %241 = vst.msk [vmem:[#allocation3 + $0x38] sm:$0xff] %vm201, 0.0
      %242 = vst.msk [vmem:[#allocation3 + $0x40] sm:$0xff] %vm201, 0.0
      %243 = vst.msk [vmem:[#allocation3 + $0x48] sm:$0xff] %vm201, 0.0
      %244 = vst.msk [vmem:[#allocation3 + $0x50] sm:$0xff] %vm201, 0.0
      %245 = vst.msk [vmem:[#allocation3 + $0x58] sm:$0xff] %vm201, 0.0
      %246 = vst.msk [vmem:[#allocation3 + $0x60] sm:$0xff] %vm201, 0.0
      %247 = vst.msk [vmem:[#allocation3 + $0x68] sm:$0xff] %vm201, 0.0
      %248 = vst.msk [vmem:[#allocation3 + $0x70] sm:$0xff] %vm201, 0.0
      %249 = vst.msk [vmem:[#allocation3 + $0x78] sm:$0xff] %vm201, 0.0
      %250 = vst.msk [vmem:[#allocation4] sm:$0xff] %vm201, 0.0
      %251 = vst.msk [vmem:[#allocation4 + $0x8] sm:$0xff] %vm201, 0.0
      %252 = vst.msk [vmem:[#allocation4 + $0x10] sm:$0xff] %vm201, 0.0
      %253 = vst.msk [vmem:[#allocation4 + $0x18] sm:$0xff] %vm201, 0.0
      %254 = vst.msk [vmem:[#allocation4 + $0x20] sm:$0xff] %vm201, 0.0
      %255 = vst.msk [vmem:[#allocation4 + $0x28] sm:$0xff] %vm201, 0.0
      %256 = vst.msk [vmem:[#allocation4 + $0x30] sm:$0xff] %vm201, 0.0
      %257 = vst.msk [vmem:[#allocation4 + $0x38] sm:$0xff] %vm201, 0.0
      %258 = vst.msk [vmem:[#allocation4 + $0x40] sm:$0xff] %vm201, 0.0
      %259 = vst.msk [vmem:[#allocation4 + $0x48] sm:$0xff] %vm201, 0.0
      %260 = vst.msk [vmem:[#allocation4 + $0x50] sm:$0xff] %vm201, 0.0
      %261 = vst.msk [vmem:[#allocation4 + $0x58] sm:$0xff] %vm201, 0.0
      %262 = vst.msk [vmem:[#allocation4 + $0x60] sm:$0xff] %vm201, 0.0
      %263 = vst.msk [vmem:[#allocation4 + $0x68] sm:$0xff] %vm201, 0.0
      %264 = vst.msk [vmem:[#allocation4 + $0x70] sm:$0xff] %vm201, 0.0
      %265 = vst.msk [vmem:[#allocation4 + $0x78] sm:$0xff] %vm201, 0.0
      %266 = vst.msk [vmem:[#allocation6] sm:$0xff] %vm201, 0.0
      %267 = vst.msk [vmem:[#allocation6 + $0x8] sm:$0xff] %vm201, 0.0
      %268 = vst.msk [vmem:[#allocation6 + $0x10] sm:$0xff] %vm201, 0.0
      %269 = vst.msk [vmem:[#allocation6 + $0x18] sm:$0xff] %vm201, 0.0
      %270 = vst.msk [vmem:[#allocation6 + $0x20] sm:$0xff] %vm201, 0.0
      %271 = vst.msk [vmem:[#allocation6 + $0x28] sm:$0xff] %vm201, 0.0
      %272 = vst.msk [vmem:[#allocation6 + $0x30] sm:$0xff] %vm201, 0.0
      %273 = vst.msk [vmem:[#allocation6 + $0x38] sm:$0xff] %vm201, 0.0
      %274 = vst.msk [vmem:[#allocation6 + $0x40] sm:$0xff] %vm201, 0.0
      %275 = vst.msk [vmem:[#allocation6 + $0x48] sm:$0xff] %vm201, 0.0
      %276 = vst.msk [vmem:[#allocation6 + $0x50] sm:$0xff] %vm201, 0.0
      %277 = vst.msk [vmem:[#allocation6 + $0x58] sm:$0xff] %vm201, 0.0
      %278 = vst.msk [vmem:[#allocation6 + $0x60] sm:$0xff] %vm201, 0.0
      %279 = vst.msk [vmem:[#allocation6 + $0x68] sm:$0xff] %vm201, 0.0
      %280 = vst.msk [vmem:[#allocation6 + $0x70] sm:$0xff] %vm201, 0.0
      %281 = vst.msk [vmem:[#allocation6 + $0x78] sm:$0xff] %vm201, 0.0
      %282 = vst.msk [vmem:[#allocation7] sm:$0xff] %vm201, 0.0
      %283 = vst.msk [vmem:[#allocation7 + $0x8] sm:$0xff] %vm201, 0.0
      %284 = vst.msk [vmem:[#allocation7 + $0x10] sm:$0xff] %vm201, 0.0
      %285 = vst.msk [vmem:[#allocation7 + $0x18] sm:$0xff] %vm201, 0.0
      %286 = vst.msk [vmem:[#allocation7 + $0x20] sm:$0xff] %vm201, 0.0
      %287 = vst.msk [vmem:[#allocation7 + $0x28] sm:$0xff] %vm201, 0.0
      %288 = vst.msk [vmem:[#allocation7 + $0x30] sm:$0xff] %vm201, 0.0
      %289 = vst.msk [vmem:[#allocation7 + $0x38] sm:$0xff] %vm201, 0.0
      %290 = vst.msk [vmem:[#allocation7 + $0x40] sm:$0xff] %vm201, 0.0
      %291 = vst.msk [vmem:[#allocation7 + $0x48] sm:$0xff] %vm201, 0.0
      %292 = vst.msk [vmem:[#allocation7 + $0x50] sm:$0xff] %vm201, 0.0
      %293 = vst.msk [vmem:[#allocation7 + $0x58] sm:$0xff] %vm201, 0.0
      %294 = vst.msk [vmem:[#allocation7 + $0x60] sm:$0xff] %vm201, 0.0
      %295 = vst.msk [vmem:[#allocation7 + $0x68] sm:$0xff] %vm201, 0.0
      %296 = vst.msk [vmem:[#allocation7 + $0x70] sm:$0xff] %vm201, 0.0
      %297 = vst.msk [vmem:[#allocation7 + $0x78] sm:$0xff] %vm201, 0.0
    $region33: #{tpu_custom_call.1} parent=1 // pred_fallthru
      _
    %v298 = vld [vmem:[#allocation13] sm:$0xff]
    %v299 = vld [vmem:[#allocation13 + $0x8] sm:$0xff]
    %v300 = vld [vmem:[#allocation13 + $0x10] sm:$0xff]
    %v301 = vld [vmem:[#allocation13 + $0x18] sm:$0xff]
    %v302 = vld [vmem:[#allocation13 + $0x20] sm:$0xff]
    %v303 = vld [vmem:[#allocation13 + $0x28] sm:$0xff]
    %v304 = vld [vmem:[#allocation13 + $0x30] sm:$0xff]
    %v305 = vld [vmem:[#allocation13 + $0x38] sm:$0xff]
    %v306 = vld [vmem:[#allocation13 + $0x40] sm:$0xff]
    %v307 = vld [vmem:[#allocation13 + $0x48] sm:$0xff]
    %v308 = vld [vmem:[#allocation13 + $0x50] sm:$0xff]
    %v309 = vld [vmem:[#allocation13 + $0x58] sm:$0xff]
    %v310 = vld [vmem:[#allocation13 + $0x60] sm:$0xff]
    %v311 = vld [vmem:[#allocation13 + $0x68] sm:$0xff]
    %v312 = vld [vmem:[#allocation13 + $0x70] sm:$0xff]
    %v313 = vld [vmem:[#allocation13 + $0x78] sm:$0xff]
    %v314 = vld [vmem:[#allocation13 + $0x80] sm:$0xff]
    %v315 = vld [vmem:[#allocation13 + $0x88] sm:$0xff]
    %v316 = vld [vmem:[#allocation13 + $0x90] sm:$0xff]
    %v317 = vld [vmem:[#allocation13 + $0x98] sm:$0xff]
    %v318 = vld [vmem:[#allocation13 + $0xa0] sm:$0xff]
    %v319 = vld [vmem:[#allocation13 + $0xa8] sm:$0xff]
    %v320 = vld [vmem:[#allocation13 + $0xb0] sm:$0xff]
    %v321 = vld [vmem:[#allocation13 + $0xb8] sm:$0xff]
    %v322 = vld [vmem:[#allocation13 + $0xc0] sm:$0xff]
    %v323 = vld [vmem:[#allocation13 + $0xc8] sm:$0xff]
    %v324 = vld [vmem:[#allocation13 + $0xd0] sm:$0xff]
    %v325 = vld [vmem:[#allocation13 + $0xd8] sm:$0xff]
    %v326 = vld [vmem:[#allocation13 + $0xe0] sm:$0xff]
    %v327 = vld [vmem:[#allocation13 + $0xe8] sm:$0xff]
    %v328 = vld [vmem:[#allocation13 + $0xf0] sm:$0xff]
    %v329 = vld [vmem:[#allocation13 + $0xf8] sm:$0xff]
    %v330 = vld [vmem:[#allocation13 + $0x100] sm:$0xff]
    %v331 = vld [vmem:[#allocation13 + $0x108] sm:$0xff]
    %v332 = vld [vmem:[#allocation13 + $0x110] sm:$0xff]
    %v333 = vld [vmem:[#allocation13 + $0x118] sm:$0xff]
    %v334 = vld [vmem:[#allocation13 + $0x120] sm:$0xff]
    %v335 = vld [vmem:[#allocation13 + $0x128] sm:$0xff]
    %v336 = vld [vmem:[#allocation13 + $0x130] sm:$0xff]
    %v337 = vld [vmem:[#allocation13 + $0x138] sm:$0xff]
    %v338 = vld [vmem:[#allocation13 + $0x140] sm:$0xff]
    %v339 = vld [vmem:[#allocation13 + $0x148] sm:$0xff]
    %v340 = vld [vmem:[#allocation13 + $0x150] sm:$0xff]
    %v341 = vld [vmem:[#allocation13 + $0x158] sm:$0xff]
    %v342 = vld [vmem:[#allocation13 + $0x160] sm:$0xff]
    %v343 = vld [vmem:[#allocation13 + $0x168] sm:$0xff]
    %v344 = vld [vmem:[#allocation13 + $0x170] sm:$0xff]
    %v345 = vld [vmem:[#allocation13 + $0x178] sm:$0xff]
    %v346 = vld [vmem:[#allocation13 + $0x180] sm:$0xff]
    %v347 = vld [vmem:[#allocation13 + $0x188] sm:$0xff]
    %v348 = vld [vmem:[#allocation13 + $0x190] sm:$0xff]
    %v349 = vld [vmem:[#allocation13 + $0x198] sm:$0xff]
    %v350 = vld [vmem:[#allocation13 + $0x1a0] sm:$0xff]
    %v351 = vld [vmem:[#allocation13 + $0x1a8] sm:$0xff]
    %v352 = vld [vmem:[#allocation13 + $0x1b0] sm:$0xff]
    %v353 = vld [vmem:[#allocation13 + $0x1b8] sm:$0xff]
    %v354 = vld [vmem:[#allocation13 + $0x1c0] sm:$0xff]
    %v355 = vld [vmem:[#allocation13 + $0x1c8] sm:$0xff]
    %v356 = vld [vmem:[#allocation13 + $0x1d0] sm:$0xff]
    %v357 = vld [vmem:[#allocation13 + $0x1d8] sm:$0xff]
    %v358 = vld [vmem:[#allocation13 + $0x1e0] sm:$0xff]
    %v359 = vld [vmem:[#allocation13 + $0x1e8] sm:$0xff]
    %v360 = vld [vmem:[#allocation13 + $0x1f0] sm:$0xff]
    %v361 = vld [vmem:[#allocation13 + $0x1f8] sm:$0xff]
    %v362 = vld [vmem:[#allocation16] sm:$0xff]
    %v363 = vld [vmem:[#allocation16 + $0x8] sm:$0xff]
    %v364 = vld [vmem:[#allocation16 + $0x10] sm:$0xff]
    %v365 = vld [vmem:[#allocation16 + $0x18] sm:$0xff]
    %v366 = vld [vmem:[#allocation16 + $0x20] sm:$0xff]
    %v367 = vld [vmem:[#allocation16 + $0x28] sm:$0xff]
    %v368 = vld [vmem:[#allocation16 + $0x30] sm:$0xff]
    %v369 = vld [vmem:[#allocation16 + $0x38] sm:$0xff]
    %v370 = vld [vmem:[#allocation16 + $0x40] sm:$0xff]
    %v371 = vld [vmem:[#allocation16 + $0x48] sm:$0xff]
    %v372 = vld [vmem:[#allocation16 + $0x50] sm:$0xff]
    %v373 = vld [vmem:[#allocation16 + $0x58] sm:$0xff]
    %v374 = vld [vmem:[#allocation16 + $0x60] sm:$0xff]
    %v375 = vld [vmem:[#allocation16 + $0x68] sm:$0xff]
    %v376 = vld [vmem:[#allocation16 + $0x70] sm:$0xff]
    %v377 = vld [vmem:[#allocation16 + $0x78] sm:$0xff]
    %v378 = vld [vmem:[#allocation16 + $0x80] sm:$0xff]
    %v379 = vld [vmem:[#allocation16 + $0x88] sm:$0xff]
    %v380 = vld [vmem:[#allocation16 + $0x90] sm:$0xff]
    %v381 = vld [vmem:[#allocation16 + $0x98] sm:$0xff]
    %v382 = vld [vmem:[#allocation16 + $0xa0] sm:$0xff]
    %v383 = vld [vmem:[#allocation16 + $0xa8] sm:$0xff]
    %v384 = vld [vmem:[#allocation16 + $0xb0] sm:$0xff]
    %v385 = vld [vmem:[#allocation16 + $0xb8] sm:$0xff]
    %v386 = vld [vmem:[#allocation16 + $0xc0] sm:$0xff]
    %v387 = vld [vmem:[#allocation16 + $0xc8] sm:$0xff]
    %v388 = vld [vmem:[#allocation16 + $0xd0] sm:$0xff]
    %v389 = vld [vmem:[#allocation16 + $0xd8] sm:$0xff]
    %v390 = vld [vmem:[#allocation16 + $0xe0] sm:$0xff]
    %v391 = vld [vmem:[#allocation16 + $0xe8] sm:$0xff]
    %v392 = vld [vmem:[#allocation16 + $0xf0] sm:$0xff]
    %v393 = vld [vmem:[#allocation16 + $0xf8] sm:$0xff]
    %v394 = vld [vmem:[#allocation16 + $0x100] sm:$0xff]
    %v395 = vld [vmem:[#allocation16 + $0x108] sm:$0xff]
    %v396 = vld [vmem:[#allocation16 + $0x110] sm:$0xff]
    %v397 = vld [vmem:[#allocation16 + $0x118] sm:$0xff]
    %v398 = vld [vmem:[#allocation16 + $0x120] sm:$0xff]
    %v399 = vld [vmem:[#allocation16 + $0x128] sm:$0xff]
    %v400 = vld [vmem:[#allocation16 + $0x130] sm:$0xff]
    %v401 = vld [vmem:[#allocation16 + $0x138] sm:$0xff]
    %v402 = vld [vmem:[#allocation16 + $0x140] sm:$0xff]
    %v403 = vld [vmem:[#allocation16 + $0x148] sm:$0xff]
    %v404 = vld [vmem:[#allocation16 + $0x150] sm:$0xff]
    %v405 = vld [vmem:[#allocation16 + $0x158] sm:$0xff]
    %v406 = vld [vmem:[#allocation16 + $0x160] sm:$0xff]
    %v407 = vld [vmem:[#allocation16 + $0x168] sm:$0xff]
    %v408 = vld [vmem:[#allocation16 + $0x170] sm:$0xff]
    %v409 = vld [vmem:[#allocation16 + $0x178] sm:$0xff]
    %v410 = vld [vmem:[#allocation16 + $0x180] sm:$0xff]
    %v411 = vld [vmem:[#allocation16 + $0x188] sm:$0xff]
    %v412 = vld [vmem:[#allocation16 + $0x190] sm:$0xff]
    %v413 = vld [vmem:[#allocation16 + $0x198] sm:$0xff]
    %v414 = vld [vmem:[#allocation16 + $0x1a0] sm:$0xff]
    %v415 = vld [vmem:[#allocation16 + $0x1a8] sm:$0xff]
    %v416 = vld [vmem:[#allocation16 + $0x1b0] sm:$0xff]
    %v417 = vld [vmem:[#allocation16 + $0x1b8] sm:$0xff]
    %v418 = vld [vmem:[#allocation16 + $0x1c0] sm:$0xff]
    %v419 = vld [vmem:[#allocation16 + $0x1c8] sm:$0xff]
    %v420 = vld [vmem:[#allocation16 + $0x1d0] sm:$0xff]
    %v421 = vld [vmem:[#allocation16 + $0x1d8] sm:$0xff]
    %v422 = vld [vmem:[#allocation16 + $0x1e0] sm:$0xff]
    %v423 = vld [vmem:[#allocation16 + $0x1e8] sm:$0xff]
    %v424 = vld [vmem:[#allocation16 + $0x1f0] sm:$0xff]
    %v425 = vld [vmem:[#allocation16 + $0x1f8] sm:$0xff]
    %v426 = vld [vmem:[%s100] sm:$0xff]
    %v427 = vld [vmem:[%s100 + $0x8] sm:$0xff]
    %v428 = vld [vmem:[%s100 + $0x10] sm:$0xff]
    %v429 = vld [vmem:[%s100 + $0x18] sm:$0xff]
    %v430 = vld [vmem:[%s100 + $0x20] sm:$0xff]
    %v431 = vld [vmem:[%s100 + $0x28] sm:$0xff]
    %v432 = vld [vmem:[%s100 + $0x30] sm:$0xff]
    %v433 = vld [vmem:[%s100 + $0x38] sm:$0xff]
    %v434 = vld [vmem:[%s100 + $0x40] sm:$0xff]
    %v435 = vld [vmem:[%s100 + $0x48] sm:$0xff]
    %v436 = vld [vmem:[%s100 + $0x50] sm:$0xff]
    %v437 = vld [vmem:[%s100 + $0x58] sm:$0xff]
    %v438 = vld [vmem:[%s100 + $0x60] sm:$0xff]
    %v439 = vld [vmem:[%s100 + $0x68] sm:$0xff]
    %v440 = vld [vmem:[%s100 + $0x70] sm:$0xff]
    %v441 = vld [vmem:[%s100 + $0x78] sm:$0xff]
    %s442 = smul.u32 0, 512
    %v443 = vstv %s442
    %v444 = vsub.s32 %v426, %v443
    %v445 = vsub.s32 %v427, %v443
    %v446 = vsub.s32 %v428, %v443
    %v447 = vsub.s32 %v429, %v443
    %v448 = vsub.s32 %v430, %v443
    %v449 = vsub.s32 %v431, %v443
    %v450 = vsub.s32 %v432, %v443
    %v451 = vsub.s32 %v433, %v443
    %v452 = vsub.s32 %v434, %v443
    %v453 = vsub.s32 %v435, %v443
    %v454 = vsub.s32 %v436, %v443
    %v455 = vsub.s32 %v437, %v443
    %v456 = vsub.s32 %v438, %v443
    %v457 = vsub.s32 %v439, %v443
    %v458 = vsub.s32 %v440, %v443
    %v459 = vsub.s32 %v441, %v443
    %v460 = vlaneseq
    %v461 = vand.u32 %v460, 127
    %v462 = vadd.s32 %v461, 128
    %v463 = vadd.s32 %v461, 256
    %v464 = vadd.s32 %v461, 384
    %465 = vset.pattern.permute.xlu0 0
    %466 = vperm.xlu0 %465, %v444
    %v467 = vpop.permute.xlu0 %466
    %468 = vset.pattern.permute.xlu0 0
    %469 = vperm.xlu0 %468, %v445
    %v470 = vpop.permute.xlu0 %469
    %471 = vset.pattern.permute.xlu0 0
    %472 = vperm.xlu0 %471, %v446
    %v473 = vpop.permute.xlu0 %472
    %474 = vset.pattern.permute.xlu0 0
    %475 = vperm.xlu0 %474, %v447
    %v476 = vpop.permute.xlu0 %475
    %477 = vset.pattern.permute.xlu0 0
    %478 = vperm.xlu0 %477, %v448
    %v479 = vpop.permute.xlu0 %478
    %480 = vset.pattern.permute.xlu0 0
    %481 = vperm.xlu0 %480, %v449
    %v482 = vpop.permute.xlu0 %481
    %483 = vset.pattern.permute.xlu0 0
    %484 = vperm.xlu0 %483, %v450
    %v485 = vpop.permute.xlu0 %484
    %486 = vset.pattern.permute.xlu0 0
    %487 = vperm.xlu0 %486, %v451
    %v488 = vpop.permute.xlu0 %487
    %489 = vset.pattern.permute.xlu0 0
    %490 = vperm.xlu0 %489, %v452
    %v491 = vpop.permute.xlu0 %490
    %492 = vset.pattern.permute.xlu0 0
    %493 = vperm.xlu0 %492, %v453
    %v494 = vpop.permute.xlu0 %493
    %495 = vset.pattern.permute.xlu0 0
    %496 = vperm.xlu0 %495, %v454
    %v497 = vpop.permute.xlu0 %496
    %498 = vset.pattern.permute.xlu0 0
    %499 = vperm.xlu0 %498, %v455
    %v500 = vpop.permute.xlu0 %499
    %501 = vset.pattern.permute.xlu0 0
    %502 = vperm.xlu0 %501, %v456
    %v503 = vpop.permute.xlu0 %502
    %504 = vset.pattern.permute.xlu0 0
    %505 = vperm.xlu0 %504, %v457
    %v506 = vpop.permute.xlu0 %505
    %507 = vset.pattern.permute.xlu0 0
    %508 = vperm.xlu0 %507, %v458
    %v509 = vpop.permute.xlu0 %508
    %510 = vset.pattern.permute.xlu0 0
    %511 = vperm.xlu0 %510, %v459
    %v512 = vpop.permute.xlu0 %511
    %vm513 = vcmp.eq.s32.totalorder %v461, %v467
    %vm514 = vcmp.eq.s32.totalorder %v462, %v467
    %vm515 = vcmp.eq.s32.totalorder %v463, %v467
    %vm516 = vcmp.eq.s32.totalorder %v464, %v467
    %vm517 = vcmp.eq.s32.totalorder %v461, %v470
    %vm518 = vcmp.eq.s32.totalorder %v462, %v470
    %vm519 = vcmp.eq.s32.totalorder %v463, %v470
    %vm520 = vcmp.eq.s32.totalorder %v464, %v470
    %vm521 = vcmp.eq.s32.totalorder %v461, %v473
    %vm522 = vcmp.eq.s32.totalorder %v462, %v473
    %vm523 = vcmp.eq.s32.totalorder %v463, %v473
    %vm524 = vcmp.eq.s32.totalorder %v464, %v473
    %vm525 = vcmp.eq.s32.totalorder %v461, %v476
    %vm526 = vcmp.eq.s32.totalorder %v462, %v476
    %vm527 = vcmp.eq.s32.totalorder %v463, %v476
    %vm528 = vcmp.eq.s32.totalorder %v464, %v476
    %vm529 = vcmp.eq.s32.totalorder %v461, %v479
    %vm530 = vcmp.eq.s32.totalorder %v462, %v479
    %vm531 = vcmp.eq.s32.totalorder %v463, %v479
    %vm532 = vcmp.eq.s32.totalorder %v464, %v479
    %vm533 = vcmp.eq.s32.totalorder %v461, %v482
    %vm534 = vcmp.eq.s32.totalorder %v462, %v482
    %vm535 = vcmp.eq.s32.totalorder %v463, %v482
    %vm536 = vcmp.eq.s32.totalorder %v464, %v482
    %vm537 = vcmp.eq.s32.totalorder %v461, %v485
    %vm538 = vcmp.eq.s32.totalorder %v462, %v485
    %vm539 = vcmp.eq.s32.totalorder %v463, %v485
    %vm540 = vcmp.eq.s32.totalorder %v464, %v485
    %vm541 = vcmp.eq.s32.totalorder %v461, %v488
    %vm542 = vcmp.eq.s32.totalorder %v462, %v488
    %vm543 = vcmp.eq.s32.totalorder %v463, %v488
    %vm544 = vcmp.eq.s32.totalorder %v464, %v488
    %vm545 = vcmp.eq.s32.totalorder %v461, %v491
    %vm546 = vcmp.eq.s32.totalorder %v462, %v491
    %vm547 = vcmp.eq.s32.totalorder %v463, %v491
    %vm548 = vcmp.eq.s32.totalorder %v464, %v491
    %vm549 = vcmp.eq.s32.totalorder %v461, %v494
    %vm550 = vcmp.eq.s32.totalorder %v462, %v494
    %vm551 = vcmp.eq.s32.totalorder %v463, %v494
    %vm552 = vcmp.eq.s32.totalorder %v464, %v494
    %vm553 = vcmp.eq.s32.totalorder %v461, %v497
    %vm554 = vcmp.eq.s32.totalorder %v462, %v497
    %vm555 = vcmp.eq.s32.totalorder %v463, %v497
    %vm556 = vcmp.eq.s32.totalorder %v464, %v497
    %vm557 = vcmp.eq.s32.totalorder %v461, %v500
    %vm558 = vcmp.eq.s32.totalorder %v462, %v500
    %vm559 = vcmp.eq.s32.totalorder %v463, %v500
    %vm560 = vcmp.eq.s32.totalorder %v464, %v500
    %vm561 = vcmp.eq.s32.totalorder %v461, %v503
    %vm562 = vcmp.eq.s32.totalorder %v462, %v503
    %vm563 = vcmp.eq.s32.totalorder %v463, %v503
    %vm564 = vcmp.eq.s32.totalorder %v464, %v503
    %vm565 = vcmp.eq.s32.totalorder %v461, %v506
    %vm566 = vcmp.eq.s32.totalorder %v462, %v506
    %vm567 = vcmp.eq.s32.totalorder %v463, %v506
    %vm568 = vcmp.eq.s32.totalorder %v464, %v506
    %vm569 = vcmp.eq.s32.totalorder %v461, %v509
    %vm570 = vcmp.eq.s32.totalorder %v462, %v509
    %vm571 = vcmp.eq.s32.totalorder %v463, %v509
    %vm572 = vcmp.eq.s32.totalorder %v464, %v509
    %vm573 = vcmp.eq.s32.totalorder %v461, %v512
    %vm574 = vcmp.eq.s32.totalorder %v462, %v512
    %vm575 = vcmp.eq.s32.totalorder %v463, %v512
    %vm576 = vcmp.eq.s32.totalorder %v464, %v512
    %v577 = vld [vmem:[#allocation7] sm:$0xff]
    %v578 = vld [vmem:[#allocation7 + $0x8] sm:$0xff]
    %v579 = vld [vmem:[#allocation7 + $0x10] sm:$0xff]
    %v580 = vld [vmem:[#allocation7 + $0x18] sm:$0xff]
    %v581 = vld [vmem:[#allocation7 + $0x20] sm:$0xff]
    %v582 = vld [vmem:[#allocation7 + $0x28] sm:$0xff]
    %v583 = vld [vmem:[#allocation7 + $0x30] sm:$0xff]
    %v584 = vld [vmem:[#allocation7 + $0x38] sm:$0xff]
    %v585 = vld [vmem:[#allocation7 + $0x40] sm:$0xff]
    %v586 = vld [vmem:[#allocation7 + $0x48] sm:$0xff]
    %v587 = vld [vmem:[#allocation7 + $0x50] sm:$0xff]
    %v588 = vld [vmem:[#allocation7 + $0x58] sm:$0xff]
    %v589 = vld [vmem:[#allocation7 + $0x60] sm:$0xff]
    %v590 = vld [vmem:[#allocation7 + $0x68] sm:$0xff]
    %v591 = vld [vmem:[#allocation7 + $0x70] sm:$0xff]
    %v592 = vld [vmem:[#allocation7 + $0x78] sm:$0xff]
    %v593 = vsub.f32 %v298, %v362
    %v594 = vsub.f32 %v299, %v363
    %v595 = vsub.f32 %v300, %v364
    %v596 = vsub.f32 %v301, %v365
    %v597 = vsub.f32 %v302, %v366
    %v598 = vsub.f32 %v303, %v367
    %v599 = vsub.f32 %v304, %v368
    %v600 = vsub.f32 %v305, %v369
    %v601 = vsub.f32 %v306, %v370
    %v602 = vsub.f32 %v307, %v371
    %v603 = vsub.f32 %v308, %v372
    %v604 = vsub.f32 %v309, %v373
    %v605 = vsub.f32 %v310, %v374
    %v606 = vsub.f32 %v311, %v375
    %v607 = vsub.f32 %v312, %v376
    %v608 = vsub.f32 %v313, %v377
    %v609 = vsub.f32 %v314, %v378
    %v610 = vsub.f32 %v315, %v379
    %v611 = vsub.f32 %v316, %v380
    %v612 = vsub.f32 %v317, %v381
    %v613 = vsub.f32 %v318, %v382
    %v614 = vsub.f32 %v319, %v383
    %v615 = vsub.f32 %v320, %v384
    %v616 = vsub.f32 %v321, %v385
    %v617 = vsub.f32 %v322, %v386
    %v618 = vsub.f32 %v323, %v387
    %v619 = vsub.f32 %v324, %v388
    %v620 = vsub.f32 %v325, %v389
    %v621 = vsub.f32 %v326, %v390
    %v622 = vsub.f32 %v327, %v391
    %v623 = vsub.f32 %v328, %v392
    %v624 = vsub.f32 %v329, %v393
    %v625 = vsub.f32 %v330, %v394
    %v626 = vsub.f32 %v331, %v395
    %v627 = vsub.f32 %v332, %v396
    %v628 = vsub.f32 %v333, %v397
    %v629 = vsub.f32 %v334, %v398
    %v630 = vsub.f32 %v335, %v399
    %v631 = vsub.f32 %v336, %v400
    %v632 = vsub.f32 %v337, %v401
    %v633 = vsub.f32 %v338, %v402
    %v634 = vsub.f32 %v339, %v403
    %v635 = vsub.f32 %v340, %v404
    %v636 = vsub.f32 %v341, %v405
    %v637 = vsub.f32 %v342, %v406
    %v638 = vsub.f32 %v343, %v407
    %v639 = vsub.f32 %v344, %v408
    %v640 = vsub.f32 %v345, %v409
    %v641 = vsub.f32 %v346, %v410
    %v642 = vsub.f32 %v347, %v411
    %v643 = vsub.f32 %v348, %v412
    %v644 = vsub.f32 %v349, %v413
    %v645 = vsub.f32 %v350, %v414
    %v646 = vsub.f32 %v351, %v415
    %v647 = vsub.f32 %v352, %v416
    %v648 = vsub.f32 %v353, %v417
    %v649 = vsub.f32 %v354, %v418
    %v650 = vsub.f32 %v355, %v419
    %v651 = vsub.f32 %v356, %v420
    %v652 = vsub.f32 %v357, %v421
    %v653 = vsub.f32 %v358, %v422
    %v654 = vsub.f32 %v359, %v423
    %v655 = vsub.f32 %v360, %v424
    %v656 = vsub.f32 %v361, %v425
    %v657 = vsel %vm513, %v593, 0.0
    %v658 = vsel %vm514, %v594, 0.0
    %v659 = vsel %vm515, %v595, 0.0
    %v660 = vsel %vm516, %v596, 0.0
    %v661 = vsel %vm517, %v597, 0.0
    %v662 = vsel %vm518, %v598, 0.0
    %v663 = vsel %vm519, %v599, 0.0
    %v664 = vsel %vm520, %v600, 0.0
    %v665 = vsel %vm521, %v601, 0.0
    %v666 = vsel %vm522, %v602, 0.0
    %v667 = vsel %vm523, %v603, 0.0
    %v668 = vsel %vm524, %v604, 0.0
    %v669 = vsel %vm525, %v605, 0.0
    %v670 = vsel %vm526, %v606, 0.0
    %v671 = vsel %vm527, %v607, 0.0
    %v672 = vsel %vm528, %v608, 0.0
    %v673 = vsel %vm529, %v609, 0.0
    %v674 = vsel %vm530, %v610, 0.0
    %v675 = vsel %vm531, %v611, 0.0
    %v676 = vsel %vm532, %v612, 0.0
    %v677 = vsel %vm533, %v613, 0.0
    %v678 = vsel %vm534, %v614, 0.0
    %v679 = vsel %vm535, %v615, 0.0
    %v680 = vsel %vm536, %v616, 0.0
    %v681 = vsel %vm537, %v617, 0.0
    %v682 = vsel %vm538, %v618, 0.0
    %v683 = vsel %vm539, %v619, 0.0
    %v684 = vsel %vm540, %v620, 0.0
    %v685 = vsel %vm541, %v621, 0.0
    %v686 = vsel %vm542, %v622, 0.0
    %v687 = vsel %vm543, %v623, 0.0
    %v688 = vsel %vm544, %v624, 0.0
    %v689 = vsel %vm545, %v625, 0.0
    %v690 = vsel %vm546, %v626, 0.0
    %v691 = vsel %vm547, %v627, 0.0
    %v692 = vsel %vm548, %v628, 0.0
    %v693 = vsel %vm549, %v629, 0.0
    %v694 = vsel %vm550, %v630, 0.0
    %v695 = vsel %vm551, %v631, 0.0
    %v696 = vsel %vm552, %v632, 0.0
    %v697 = vsel %vm553, %v633, 0.0
    %v698 = vsel %vm554, %v634, 0.0
    %v699 = vsel %vm555, %v635, 0.0
    %v700 = vsel %vm556, %v636, 0.0
    %v701 = vsel %vm557, %v637, 0.0
    %v702 = vsel %vm558, %v638, 0.0
    %v703 = vsel %vm559, %v639, 0.0
    %v704 = vsel %vm560, %v640, 0.0
    %v705 = vsel %vm561, %v641, 0.0
    %v706 = vsel %vm562, %v642, 0.0
    %v707 = vsel %vm563, %v643, 0.0
    %v708 = vsel %vm564, %v644, 0.0
    %v709 = vsel %vm565, %v645, 0.0
    %v710 = vsel %vm566, %v646, 0.0
    %v711 = vsel %vm567, %v647, 0.0
    %v712 = vsel %vm568, %v648, 0.0
    %v713 = vsel %vm569, %v649, 0.0
    %v714 = vsel %vm570, %v650, 0.0
    %v715 = vsel %vm571, %v651, 0.0
    %v716 = vsel %vm572, %v652, 0.0
    %v717 = vsel %vm573, %v653, 0.0
    %v718 = vsel %vm574, %v654, 0.0
    %v719 = vsel %vm575, %v655, 0.0
    %v720 = vsel %vm576, %v656, 0.0
    %v721 = vadd.f32 %v657, %v658
    %v722 = vadd.f32 %v721, %v659
    %v723 = vadd.f32 %v722, %v660
    %724 = vadd.xlane.f32.xlu0 %v723
    %v725 = vpop.xlane.xlu0 %724
    %v726 = vadd.f32 %v661, %v662
    %v727 = vadd.f32 %v726, %v663
    %v728 = vadd.f32 %v727, %v664
    %729 = vadd.xlane.f32.xlu0 %v728
    %v730 = vpop.xlane.xlu0 %729
    %v731 = vadd.f32 %v665, %v666
    %v732 = vadd.f32 %v731, %v667
    %v733 = vadd.f32 %v732, %v668
    %734 = vadd.xlane.f32.xlu0 %v733
    %v735 = vpop.xlane.xlu0 %734
    %v736 = vadd.f32 %v669, %v670
    %v737 = vadd.f32 %v736, %v671
    %v738 = vadd.f32 %v737, %v672
    %739 = vadd.xlane.f32.xlu0 %v738
    %v740 = vpop.xlane.xlu0 %739
    %v741 = vadd.f32 %v673, %v674
    %v742 = vadd.f32 %v741, %v675
    %v743 = vadd.f32 %v742, %v676
    %744 = vadd.xlane.f32.xlu0 %v743
    %v745 = vpop.xlane.xlu0 %744
    %v746 = vadd.f32 %v677, %v678
    %v747 = vadd.f32 %v746, %v679
    %v748 = vadd.f32 %v747, %v680
    %749 = vadd.xlane.f32.xlu0 %v748
    %v750 = vpop.xlane.xlu0 %749
    %v751 = vadd.f32 %v681, %v682
    %v752 = vadd.f32 %v751, %v683
    %v753 = vadd.f32 %v752, %v684
    %754 = vadd.xlane.f32.xlu0 %v753
    %v755 = vpop.xlane.xlu0 %754
    %v756 = vadd.f32 %v685, %v686
    %v757 = vadd.f32 %v756, %v687
    %v758 = vadd.f32 %v757, %v688
    %759 = vadd.xlane.f32.xlu0 %v758
    %v760 = vpop.xlane.xlu0 %759
    %v761 = vadd.f32 %v689, %v690
    %v762 = vadd.f32 %v761, %v691
    %v763 = vadd.f32 %v762, %v692
    %764 = vadd.xlane.f32.xlu0 %v763
    %v765 = vpop.xlane.xlu0 %764
    %v766 = vadd.f32 %v693, %v694
    %v767 = vadd.f32 %v766, %v695
    %v768 = vadd.f32 %v767, %v696
    %769 = vadd.xlane.f32.xlu0 %v768
    %v770 = vpop.xlane.xlu0 %769
    %v771 = vadd.f32 %v697, %v698
    %v772 = vadd.f32 %v771, %v699
    %v773 = vadd.f32 %v772, %v700
    %774 = vadd.xlane.f32.xlu0 %v773
    %v775 = vpop.xlane.xlu0 %774
    %v776 = vadd.f32 %v701, %v702
    %v777 = vadd.f32 %v776, %v703
    %v778 = vadd.f32 %v777, %v704
    %779 = vadd.xlane.f32.xlu0 %v778
    %v780 = vpop.xlane.xlu0 %779
    %v781 = vadd.f32 %v705, %v706
    %v782 = vadd.f32 %v781, %v707
    %v783 = vadd.f32 %v782, %v708
    %784 = vadd.xlane.f32.xlu0 %v783
    %v785 = vpop.xlane.xlu0 %784
    %v786 = vadd.f32 %v709, %v710
    %v787 = vadd.f32 %v786, %v711
    %v788 = vadd.f32 %v787, %v712
    %789 = vadd.xlane.f32.xlu0 %v788
    %v790 = vpop.xlane.xlu0 %789
    %v791 = vadd.f32 %v713, %v714
    %v792 = vadd.f32 %v791, %v715
    %v793 = vadd.f32 %v792, %v716
    %794 = vadd.xlane.f32.xlu0 %v793
    %v795 = vpop.xlane.xlu0 %794
    %v796 = vadd.f32 %v717, %v718
    %v797 = vadd.f32 %v796, %v719
    %v798 = vadd.f32 %v797, %v720
    %799 = vadd.xlane.f32.xlu0 %v798
    %v800 = vpop.xlane.xlu0 %799
    %v801 = vadd.f32 %v577, %v725
    %v802 = vadd.f32 %v578, %v730
    %v803 = vadd.f32 %v579, %v735
    %v804 = vadd.f32 %v580, %v740
    %v805 = vadd.f32 %v581, %v745
    %v806 = vadd.f32 %v582, %v750
    %v807 = vadd.f32 %v583, %v755
    %v808 = vadd.f32 %v584, %v760
    %v809 = vadd.f32 %v585, %v765
    %v810 = vadd.f32 %v586, %v770
    %v811 = vadd.f32 %v587, %v775
    %v812 = vadd.f32 %v588, %v780
    %v813 = vadd.f32 %v589, %v785
    %v814 = vadd.f32 %v590, %v790
    %v815 = vadd.f32 %v591, %v795
    %v816 = vadd.f32 %v592, %v800
    %vm817 = vcmask 7168
    %818 = vst.msk [vmem:[#allocation7] sm:$0xff] %vm817, %v801
    %819 = vst.msk [vmem:[#allocation7 + $0x8] sm:$0xff] %vm817, %v802
    %820 = vst.msk [vmem:[#allocation7 + $0x10] sm:$0xff] %vm817, %v803
    %821 = vst.msk [vmem:[#allocation7 + $0x18] sm:$0xff] %vm817, %v804
    %822 = vst.msk [vmem:[#allocation7 + $0x20] sm:$0xff] %vm817, %v805
    %823 = vst.msk [vmem:[#allocation7 + $0x28] sm:$0xff] %vm817, %v806
    %824 = vst.msk [vmem:[#allocation7 + $0x30] sm:$0xff] %vm817, %v807
    %825 = vst.msk [vmem:[#allocation7 + $0x38] sm:$0xff] %vm817, %v808
    %826 = vst.msk [vmem:[#allocation7 + $0x40] sm:$0xff] %vm817, %v809
    %827 = vst.msk [vmem:[#allocation7 + $0x48] sm:$0xff] %vm817, %v810
    %828 = vst.msk [vmem:[#allocation7 + $0x50] sm:$0xff] %vm817, %v811
    %829 = vst.msk [vmem:[#allocation7 + $0x58] sm:$0xff] %vm817, %v812
    %830 = vst.msk [vmem:[#allocation7 + $0x60] sm:$0xff] %vm817, %v813
    %831 = vst.msk [vmem:[#allocation7 + $0x68] sm:$0xff] %vm817, %v814
    %832 = vst.msk [vmem:[#allocation7 + $0x70] sm:$0xff] %vm817, %v815
    %833 = vst.msk [vmem:[#allocation7 + $0x78] sm:$0xff] %vm817, %v816
    %v834 = vld [vmem:[#allocation2] sm:$0xff]
    %v835 = vld [vmem:[#allocation2 + $0x8] sm:$0xff]
    %v836 = vld [vmem:[#allocation2 + $0x10] sm:$0xff]
    %v837 = vld [vmem:[#allocation2 + $0x18] sm:$0xff]
    %v838 = vld [vmem:[#allocation2 + $0x20] sm:$0xff]
    %v839 = vld [vmem:[#allocation2 + $0x28] sm:$0xff]
    %v840 = vld [vmem:[#allocation2 + $0x30] sm:$0xff]
    %v841 = vld [vmem:[#allocation2 + $0x38] sm:$0xff]
    %v842 = vld [vmem:[#allocation2 + $0x40] sm:$0xff]
    %v843 = vld [vmem:[#allocation2 + $0x48] sm:$0xff]
    %v844 = vld [vmem:[#allocation2 + $0x50] sm:$0xff]
    %v845 = vld [vmem:[#allocation2 + $0x58] sm:$0xff]
    %v846 = vld [vmem:[#allocation2 + $0x60] sm:$0xff]
    %v847 = vld [vmem:[#allocation2 + $0x68] sm:$0xff]
    %v848 = vld [vmem:[#allocation2 + $0x70] sm:$0xff]
    %v849 = vld [vmem:[#allocation2 + $0x78] sm:$0xff]
    %v850 = vmax.f32 %v298, %v299
    %v851 = vmax.f32 %v850, %v300
    %v852 = vmax.f32 %v851, %v301
    %853 = vmax.xlane.f32.xlu0 %v852
    %v854 = vpop.xlane.xlu0 %853
    %v855 = vmax.f32 %v302, %v303
    %v856 = vmax.f32 %v855, %v304
    %v857 = vmax.f32 %v856, %v305
    %858 = vmax.xlane.f32.xlu0 %v857
    %v859 = vpop.xlane.xlu0 %858
    %v860 = vmax.f32 %v306, %v307
    %v861 = vmax.f32 %v860, %v308
    %v862 = vmax.f32 %v861, %v309
    %863 = vmax.xlane.f32.xlu0 %v862
    %v864 = vpop.xlane.xlu0 %863
    %v865 = vmax.f32 %v310, %v311
    %v866 = vmax.f32 %v865, %v312
    %v867 = vmax.f32 %v866, %v313
    %868 = vmax.xlane.f32.xlu0 %v867
    %v869 = vpop.xlane.xlu0 %868
    %v870 = vmax.f32 %v314, %v315
    %v871 = vmax.f32 %v870, %v316
    %v872 = vmax.f32 %v871, %v317
    %873 = vmax.xlane.f32.xlu0 %v872
    %v874 = vpop.xlane.xlu0 %873
    %v875 = vmax.f32 %v318, %v319
    %v876 = vmax.f32 %v875, %v320
    %v877 = vmax.f32 %v876, %v321
    %878 = vmax.xlane.f32.xlu0 %v877
    %v879 = vpop.xlane.xlu0 %878
    %v880 = vmax.f32 %v322, %v323
    %v881 = vmax.f32 %v880, %v324
    %v882 = vmax.f32 %v881, %v325
    %883 = vmax.xlane.f32.xlu0 %v882
    %v884 = vpop.xlane.xlu0 %883
    %v885 = vmax.f32 %v326, %v327
    %v886 = vmax.f32 %v885, %v328
    %v887 = vmax.f32 %v886, %v329
    %888 = vmax.xlane.f32.xlu0 %v887
    %v889 = vpop.xlane.xlu0 %888
    %v890 = vmax.f32 %v330, %v331
    %v891 = vmax.f32 %v890, %v332
    %v892 = vmax.f32 %v891, %v333
    %893 = vmax.xlane.f32.xlu0 %v892
    %v894 = vpop.xlane.xlu0 %893
    %v895 = vmax.f32 %v334, %v335
    %v896 = vmax.f32 %v895, %v336
    %v897 = vmax.f32 %v896, %v337
    %898 = vmax.xlane.f32.xlu0 %v897
    %v899 = vpop.xlane.xlu0 %898
    %v900 = vmax.f32 %v338, %v339
    %v901 = vmax.f32 %v900, %v340
    %v902 = vmax.f32 %v901, %v341
    %903 = vmax.xlane.f32.xlu0 %v902
    %v904 = vpop.xlane.xlu0 %903
    %v905 = vmax.f32 %v342, %v343
    %v906 = vmax.f32 %v905, %v344
    %v907 = vmax.f32 %v906, %v345
    %908 = vmax.xlane.f32.xlu0 %v907
    %v909 = vpop.xlane.xlu0 %908
    %v910 = vmax.f32 %v346, %v347
    %v911 = vmax.f32 %v910, %v348
    %v912 = vmax.f32 %v911, %v349
    %913 = vmax.xlane.f32.xlu0 %v912
    %v914 = vpop.xlane.xlu0 %913
    %v915 = vmax.f32 %v350, %v351
    %v916 = vmax.f32 %v915, %v352
    %v917 = vmax.f32 %v916, %v353
    %918 = vmax.xlane.f32.xlu0 %v917
    %v919 = vpop.xlane.xlu0 %918
    %v920 = vmax.f32 %v354, %v355
    %v921 = vmax.f32 %v920, %v356
    %v922 = vmax.f32 %v921, %v357
    %923 = vmax.xlane.f32.xlu0 %v922
    %v924 = vpop.xlane.xlu0 %923
    %v925 = vmax.f32 %v358, %v359
    %v926 = vmax.f32 %v925, %v360
    %v927 = vmax.f32 %v926, %v361
    %928 = vmax.xlane.f32.xlu0 %v927
    %v929 = vpop.xlane.xlu0 %928
    %v930 = vmax.f32 %v834, %v854
    %v931 = vmax.f32 %v835, %v859
    %v932 = vmax.f32 %v836, %v864
    %v933 = vmax.f32 %v837, %v869
    %v934 = vmax.f32 %v838, %v874
    %v935 = vmax.f32 %v839, %v879
    %v936 = vmax.f32 %v840, %v884
    %v937 = vmax.f32 %v841, %v889
    %v938 = vmax.f32 %v842, %v894
    %v939 = vmax.f32 %v843, %v899
    %v940 = vmax.f32 %v844, %v904
    %v941 = vmax.f32 %v845, %v909
    %v942 = vmax.f32 %v846, %v914
    %v943 = vmax.f32 %v847, %v919
    %v944 = vmax.f32 %v848, %v924
    %v945 = vmax.f32 %v849, %v929
    %v946 = vsub.f32 %v834, %v930
    %v947 = vsub.f32 %v835, %v931
    %v948 = vsub.f32 %v836, %v932
    %v949 = vsub.f32 %v837, %v933
    %v950 = vsub.f32 %v838, %v934
    %v951 = vsub.f32 %v839, %v935
    %v952 = vsub.f32 %v840, %v936
    %v953 = vsub.f32 %v841, %v937
    %v954 = vsub.f32 %v842, %v938
    %v955 = vsub.f32 %v843, %v939
    %v956 = vsub.f32 %v844, %v940
    %v957 = vsub.f32 %v845, %v941
    %v958 = vsub.f32 %v846, %v942
    %v959 = vsub.f32 %v847, %v943
    %v960 = vsub.f32 %v848, %v944
    %v961 = vsub.f32 %v849, %v945
    %v962 = vmul.f32 %v946, 1.442695
    %v963 = vpow.pop %v962
    %v964 = vmul.f32 %v947, 1.442695
    %v965 = vpow.pop %v964
    %v966 = vmul.f32 %v948, 1.442695
    %v967 = vpow.pop %v966
    %v968 = vmul.f32 %v949, 1.442695
    %v969 = vpow.pop %v968
    %v970 = vmul.f32 %v950, 1.442695
    %v971 = vpow.pop %v970
    %v972 = vmul.f32 %v951, 1.442695
    %v973 = vpow.pop %v972
    %v974 = vmul.f32 %v952, 1.442695
    %v975 = vpow.pop %v974
    %v976 = vmul.f32 %v953, 1.442695
    %v977 = vpow.pop %v976
    %v978 = vmul.f32 %v954, 1.442695
    %v979 = vpow.pop %v978
    %v980 = vmul.f32 %v955, 1.442695
    %v981 = vpow.pop %v980
    %v982 = vmul.f32 %v956, 1.442695
    %v983 = vpow.pop %v982
    %v984 = vmul.f32 %v957, 1.442695
    %v985 = vpow.pop %v984
    %v986 = vmul.f32 %v958, 1.442695
    %v987 = vpow.pop %v986
    %v988 = vmul.f32 %v959, 1.442695
    %v989 = vpow.pop %v988
    %v990 = vmul.f32 %v960, 1.442695
    %v991 = vpow.pop %v990
    %v992 = vmul.f32 %v961, 1.442695
    %v993 = vpow.pop %v992
    %995 = vset.pattern.permute.xlu0 0
    %996 = vperm.xlu0 %995, %v930
    %v997 = vpop.permute.xlu0 %996
    %1000 = vset.pattern.permute.xlu0 0
    %1001 = vperm.xlu0 %1000, %v931
    %v1002 = vpop.permute.xlu0 %1001
    %1005 = vset.pattern.permute.xlu0 0
    %1006 = vperm.xlu0 %1005, %v932
    %v1007 = vpop.permute.xlu0 %1006
    %1010 = vset.pattern.permute.xlu0 0
    %1011 = vperm.xlu0 %1010, %v933
    %v1012 = vpop.permute.xlu0 %1011
    %1015 = vset.pattern.permute.xlu0 0
    %1016 = vperm.xlu0 %1015, %v934
    %v1017 = vpop.permute.xlu0 %1016
    %1020 = vset.pattern.permute.xlu0 0
    %1021 = vperm.xlu0 %1020, %v935
    %v1022 = vpop.permute.xlu0 %1021
    %1025 = vset.pattern.permute.xlu0 0
    %1026 = vperm.xlu0 %1025, %v936
    %v1027 = vpop.permute.xlu0 %1026
    %1030 = vset.pattern.permute.xlu0 0
    %1031 = vperm.xlu0 %1030, %v937
    %v1032 = vpop.permute.xlu0 %1031
    %1035 = vset.pattern.permute.xlu0 0
    %1036 = vperm.xlu0 %1035, %v938
    %v1037 = vpop.permute.xlu0 %1036
    %1040 = vset.pattern.permute.xlu0 0
    %1041 = vperm.xlu0 %1040, %v939
    %v1042 = vpop.permute.xlu0 %1041
    %1045 = vset.pattern.permute.xlu0 0
    %1046 = vperm.xlu0 %1045, %v940
    %v1047 = vpop.permute.xlu0 %1046
    %1050 = vset.pattern.permute.xlu0 0
    %1051 = vperm.xlu0 %1050, %v941
    %v1052 = vpop.permute.xlu0 %1051
    %1055 = vset.pattern.permute.xlu0 0
    %1056 = vperm.xlu0 %1055, %v942
    %v1057 = vpop.permute.xlu0 %1056
    %1060 = vset.pattern.permute.xlu0 0
    %1061 = vperm.xlu0 %1060, %v943
    %v1062 = vpop.permute.xlu0 %1061
    %1065 = vset.pattern.permute.xlu0 0
    %1066 = vperm.xlu0 %1065, %v944
    %v1067 = vpop.permute.xlu0 %1066
    %1070 = vset.pattern.permute.xlu0 0
    %1071 = vperm.xlu0 %1070, %v945
    %v1072 = vpop.permute.xlu0 %1071
    %v1074 = vsub.f32 %v298, %v997
    %v1075 = vsub.f32 %v299, %v997
    %v1076 = vsub.f32 %v300, %v997
    %v1077 = vsub.f32 %v301, %v997
    %v1078 = vsub.f32 %v302, %v1002
    %v1079 = vsub.f32 %v303, %v1002
    %v1080 = vsub.f32 %v304, %v1002
    %v1081 = vsub.f32 %v305, %v1002
    %v1082 = vsub.f32 %v306, %v1007
    %v1083 = vsub.f32 %v307, %v1007
    %v1084 = vsub.f32 %v308, %v1007
    %v1085 = vsub.f32 %v309, %v1007
    %v1086 = vsub.f32 %v310, %v1012
    %v1087 = vsub.f32 %v311, %v1012
    %v1088 = vsub.f32 %v312, %v1012
    %v1089 = vsub.f32 %v313, %v1012
    %v1090 = vsub.f32 %v314, %v1017
    %v1091 = vsub.f32 %v315, %v1017
    %v1092 = vsub.f32 %v316, %v1017
    %v1093 = vsub.f32 %v317, %v1017
    %v1094 = vsub.f32 %v318, %v1022
    %v1095 = vsub.f32 %v319, %v1022
    %v1096 = vsub.f32 %v320, %v1022
    %v1097 = vsub.f32 %v321, %v1022
    %v1098 = vsub.f32 %v322, %v1027
    %v1099 = vsub.f32 %v323, %v1027
    %v1100 = vsub.f32 %v324, %v1027
    %v1101 = vsub.f32 %v325, %v1027
    %v1102 = vsub.f32 %v326, %v1032
    %v1103 = vsub.f32 %v327, %v1032
    %v1104 = vsub.f32 %v328, %v1032
    %v1105 = vsub.f32 %v329, %v1032
    %v1106 = vsub.f32 %v330, %v1037
    %v1107 = vsub.f32 %v331, %v1037
    %v1108 = vsub.f32 %v332, %v1037
    %v1109 = vsub.f32 %v333, %v1037
    %v1110 = vsub.f32 %v334, %v1042
    %v1111 = vsub.f32 %v335, %v1042
    %v1112 = vsub.f32 %v336, %v1042
    %v1113 = vsub.f32 %v337, %v1042
    %v1114 = vsub.f32 %v338, %v1047
    %v1115 = vsub.f32 %v339, %v1047
    %v1116 = vsub.f32 %v340, %v1047
    %v1117 = vsub.f32 %v341, %v1047
    %v1118 = vsub.f32 %v342, %v1052
    %v1119 = vsub.f32 %v343, %v1052
    %v1120 = vsub.f32 %v344, %v1052
    %v1121 = vsub.f32 %v345, %v1052
    %v1122 = vsub.f32 %v346, %v1057
    %v1123 = vsub.f32 %v347, %v1057
    %v1124 = vsub.f32 %v348, %v1057
    %v1125 = vsub.f32 %v349, %v1057
    %v1126 = vsub.f32 %v350, %v1062
    %v1127 = vsub.f32 %v351, %v1062
    %v1128 = vsub.f32 %v352, %v1062
    %v1129 = vsub.f32 %v353, %v1062
    %v1130 = vsub.f32 %v354, %v1067
    %v1131 = vsub.f32 %v355, %v1067
    %v1132 = vsub.f32 %v356, %v1067
    %v1133 = vsub.f32 %v357, %v1067
    %v1134 = vsub.f32 %v358, %v1072
    %v1135 = vsub.f32 %v359, %v1072
    %v1136 = vsub.f32 %v360, %v1072
    %v1137 = vsub.f32 %v361, %v1072
    %v1138 = vmul.f32 %v1074, 1.442695
    %v1139 = vpow.pop %v1138
    %v1140 = vmul.f32 %v1075, 1.442695
    %v1141 = vpow.pop %v1140
    %v1142 = vmul.f32 %v1076, 1.442695
    %v1143 = vpow.pop %v1142
    %v1144 = vmul.f32 %v1077, 1.442695
    %v1145 = vpow.pop %v1144
    %v1146 = vmul.f32 %v1078, 1.442695
    %v1147 = vpow.pop %v1146
    %v1148 = vmul.f32 %v1079, 1.442695
    %v1149 = vpow.pop %v1148
    %v1150 = vmul.f32 %v1080, 1.442695
    %v1151 = vpow.pop %v1150
    %v1152 = vmul.f32 %v1081, 1.442695
    %v1153 = vpow.pop %v1152
    %v1154 = vmul.f32 %v1082, 1.442695
    %v1155 = vpow.pop %v1154
    %v1156 = vmul.f32 %v1083, 1.442695
    %v1157 = vpow.pop %v1156
    %v1158 = vmul.f32 %v1084, 1.442695
    %v1159 = vpow.pop %v1158
    %v1160 = vmul.f32 %v1085, 1.442695
    %v1161 = vpow.pop %v1160
    %v1162 = vmul.f32 %v1086, 1.442695
    %v1163 = vpow.pop %v1162
    %v1164 = vmul.f32 %v1087, 1.442695
    %v1165 = vpow.pop %v1164
    %v1166 = vmul.f32 %v1088, 1.442695
    %v1167 = vpow.pop %v1166
    %v1168 = vmul.f32 %v1089, 1.442695
    %v1169 = vpow.pop %v1168
    %v1170 = vmul.f32 %v1090, 1.442695
    %v1171 = vpow.pop %v1170
    %v1172 = vmul.f32 %v1091, 1.442695
    %v1173 = vpow.pop %v1172
    %v1174 = vmul.f32 %v1092, 1.442695
    %v1175 = vpow.pop %v1174
    %v1176 = vmul.f32 %v1093, 1.442695
    %v1177 = vpow.pop %v1176
    %v1178 = vmul.f32 %v1094, 1.442695
    %v1179 = vpow.pop %v1178
    %v1180 = vmul.f32 %v1095, 1.442695
    %v1181 = vpow.pop %v1180
    %v1182 = vmul.f32 %v1096, 1.442695
    %v1183 = vpow.pop %v1182
    %v1184 = vmul.f32 %v1097, 1.442695
    %v1185 = vpow.pop %v1184
    %v1186 = vmul.f32 %v1098, 1.442695
    %v1187 = vpow.pop %v1186
    %v1188 = vmul.f32 %v1099, 1.442695
    %v1189 = vpow.pop %v1188
    %v1190 = vmul.f32 %v1100, 1.442695
    %v1191 = vpow.pop %v1190
    %v1192 = vmul.f32 %v1101, 1.442695
    %v1193 = vpow.pop %v1192
    %v1194 = vmul.f32 %v1102, 1.442695
    %v1195 = vpow.pop %v1194
    %v1196 = vmul.f32 %v1103, 1.442695
    %v1197 = vpow.pop %v1196
    %v1198 = vmul.f32 %v1104, 1.442695
    %v1199 = vpow.pop %v1198
    %v1200 = vmul.f32 %v1105, 1.442695
    %v1201 = vpow.pop %v1200
    %v1202 = vmul.f32 %v1106, 1.442695
    %v1203 = vpow.pop %v1202
    %v1204 = vmul.f32 %v1107, 1.442695
    %v1205 = vpow.pop %v1204
    %v1206 = vmul.f32 %v1108, 1.442695
    %v1207 = vpow.pop %v1206
    %v1208 = vmul.f32 %v1109, 1.442695
    %v1209 = vpow.pop %v1208
    %v1210 = vmul.f32 %v1110, 1.442695
    %v1211 = vpow.pop %v1210
    %v1212 = vmul.f32 %v1111, 1.442695
    %v1213 = vpow.pop %v1212
    %v1214 = vmul.f32 %v1112, 1.442695
    %v1215 = vpow.pop %v1214
    %v1216 = vmul.f32 %v1113, 1.442695
    %v1217 = vpow.pop %v1216
    %v1218 = vmul.f32 %v1114, 1.442695
    %v1219 = vpow.pop %v1218
    %v1220 = vmul.f32 %v1115, 1.442695
    %v1221 = vpow.pop %v1220
    %v1222 = vmul.f32 %v1116, 1.442695
    %v1223 = vpow.pop %v1222
    %v1224 = vmul.f32 %v1117, 1.442695
    %v1225 = vpow.pop %v1224
    %v1226 = vmul.f32 %v1118, 1.442695
    %v1227 = vpow.pop %v1226
    %v1228 = vmul.f32 %v1119, 1.442695
    %v1229 = vpow.pop %v1228
    %v1230 = vmul.f32 %v1120, 1.442695
    %v1231 = vpow.pop %v1230
    %v1232 = vmul.f32 %v1121, 1.442695
    %v1233 = vpow.pop %v1232
    %v1234 = vmul.f32 %v1122, 1.442695
    %v1235 = vpow.pop %v1234
    %v1236 = vmul.f32 %v1123, 1.442695
    %v1237 = vpow.pop %v1236
    %v1238 = vmul.f32 %v1124, 1.442695
    %v1239 = vpow.pop %v1238
    %v1240 = vmul.f32 %v1125, 1.442695
    %v1241 = vpow.pop %v1240
    %v1242 = vmul.f32 %v1126, 1.442695
    %v1243 = vpow.pop %v1242
    %v1244 = vmul.f32 %v1127, 1.442695
    %v1245 = vpow.pop %v1244
    %v1246 = vmul.f32 %v1128, 1.442695
    %v1247 = vpow.pop %v1246
    %v1248 = vmul.f32 %v1129, 1.442695
    %v1249 = vpow.pop %v1248
    %v1250 = vmul.f32 %v1130, 1.442695
    %v1251 = vpow.pop %v1250
    %v1252 = vmul.f32 %v1131, 1.442695
    %v1253 = vpow.pop %v1252
    %v1254 = vmul.f32 %v1132, 1.442695
    %v1255 = vpow.pop %v1254
    %v1256 = vmul.f32 %v1133, 1.442695
    %v1257 = vpow.pop %v1256
    %v1258 = vmul.f32 %v1134, 1.442695
    %v1259 = vpow.pop %v1258
    %v1260 = vmul.f32 %v1135, 1.442695
    %v1261 = vpow.pop %v1260
    %v1262 = vmul.f32 %v1136, 1.442695
    %v1263 = vpow.pop %v1262
    %v1264 = vmul.f32 %v1137, 1.442695
    %v1265 = vpow.pop %v1264
    %v1266 = vld [vmem:[#allocation3] sm:$0xff]
    %v1267 = vld [vmem:[#allocation3 + $0x8] sm:$0xff]
    %v1268 = vld [vmem:[#allocation3 + $0x10] sm:$0xff]
    %v1269 = vld [vmem:[#allocation3 + $0x18] sm:$0xff]
    %v1270 = vld [vmem:[#allocation3 + $0x20] sm:$0xff]
    %v1271 = vld [vmem:[#allocation3 + $0x28] sm:$0xff]
    %v1272 = vld [vmem:[#allocation3 + $0x30] sm:$0xff]
    %v1273 = vld [vmem:[#allocation3 + $0x38] sm:$0xff]
    %v1274 = vld [vmem:[#allocation3 + $0x40] sm:$0xff]
    %v1275 = vld [vmem:[#allocation3 + $0x48] sm:$0xff]
    %v1276 = vld [vmem:[#allocation3 + $0x50] sm:$0xff]
    %v1277 = vld [vmem:[#allocation3 + $0x58] sm:$0xff]
    %v1278 = vld [vmem:[#allocation3 + $0x60] sm:$0xff]
    %v1279 = vld [vmem:[#allocation3 + $0x68] sm:$0xff]
    %v1280 = vld [vmem:[#allocation3 + $0x70] sm:$0xff]
    %v1281 = vld [vmem:[#allocation3 + $0x78] sm:$0xff]
    %v1282 = vmul.f32 %v1266, %v963
    %v1283 = vmul.f32 %v1267, %v965
    %v1284 = vmul.f32 %v1268, %v967
    %v1285 = vmul.f32 %v1269, %v969
    %v1286 = vmul.f32 %v1270, %v971
    %v1287 = vmul.f32 %v1271, %v973
    %v1288 = vmul.f32 %v1272, %v975
    %v1289 = vmul.f32 %v1273, %v977
    %v1290 = vmul.f32 %v1274, %v979
    %v1291 = vmul.f32 %v1275, %v981
    %v1292 = vmul.f32 %v1276, %v983
    %v1293 = vmul.f32 %v1277, %v985
    %v1294 = vmul.f32 %v1278, %v987
    %v1295 = vmul.f32 %v1279, %v989
    %v1296 = vmul.f32 %v1280, %v991
    %v1297 = vmul.f32 %v1281, %v993
    %v1298 = vadd.f32 %v1139, %v1141
    %v1299 = vadd.f32 %v1298, %v1143
    %v1300 = vadd.f32 %v1299, %v1145
    %1301 = vadd.xlane.f32.xlu0 %v1300
    %v1302 = vpop.xlane.xlu0 %1301
    %v1303 = vadd.f32 %v1147, %v1149
    %v1304 = vadd.f32 %v1303, %v1151
    %v1305 = vadd.f32 %v1304, %v1153
    %1306 = vadd.xlane.f32.xlu0 %v1305
    %v1307 = vpop.xlane.xlu0 %1306
    %v1308 = vadd.f32 %v1155, %v1157
    %v1309 = vadd.f32 %v1308, %v1159
    %v1310 = vadd.f32 %v1309, %v1161
    %1311 = vadd.xlane.f32.xlu0 %v1310
    %v1312 = vpop.xlane.xlu0 %1311
    %v1313 = vadd.f32 %v1163, %v1165
    %v1314 = vadd.f32 %v1313, %v1167
    %v1315 = vadd.f32 %v1314, %v1169
    %1316 = vadd.xlane.f32.xlu0 %v1315
    %v1317 = vpop.xlane.xlu0 %1316
    %v1318 = vadd.f32 %v1171, %v1173
    %v1319 = vadd.f32 %v1318, %v1175
    %v1320 = vadd.f32 %v1319, %v1177
    %1321 = vadd.xlane.f32.xlu0 %v1320
    %v1322 = vpop.xlane.xlu0 %1321
    %v1323 = vadd.f32 %v1179, %v1181
    %v1324 = vadd.f32 %v1323, %v1183
    %v1325 = vadd.f32 %v1324, %v1185
    %1326 = vadd.xlane.f32.xlu0 %v1325
    %v1327 = vpop.xlane.xlu0 %1326
    %v1328 = vadd.f32 %v1187, %v1189
    %v1329 = vadd.f32 %v1328, %v1191
    %v1330 = vadd.f32 %v1329, %v1193
    %1331 = vadd.xlane.f32.xlu0 %v1330
    %v1332 = vpop.xlane.xlu0 %1331
    %v1333 = vadd.f32 %v1195, %v1197
    %v1334 = vadd.f32 %v1333, %v1199
    %v1335 = vadd.f32 %v1334, %v1201
    %1336 = vadd.xlane.f32.xlu0 %v1335
    %v1337 = vpop.xlane.xlu0 %1336
    %v1338 = vadd.f32 %v1203, %v1205
    %v1339 = vadd.f32 %v1338, %v1207
    %v1340 = vadd.f32 %v1339, %v1209
    %1341 = vadd.xlane.f32.xlu0 %v1340
    %v1342 = vpop.xlane.xlu0 %1341
    %v1343 = vadd.f32 %v1211, %v1213
    %v1344 = vadd.f32 %v1343, %v1215
    %v1345 = vadd.f32 %v1344, %v1217
    %1346 = vadd.xlane.f32.xlu0 %v1345
    %v1347 = vpop.xlane.xlu0 %1346
    %v1348 = vadd.f32 %v1219, %v1221
    %v1349 = vadd.f32 %v1348, %v1223
    %v1350 = vadd.f32 %v1349, %v1225
    %1351 = vadd.xlane.f32.xlu0 %v1350
    %v1352 = vpop.xlane.xlu0 %1351
    %v1353 = vadd.f32 %v1227, %v1229
    %v1354 = vadd.f32 %v1353, %v1231
    %v1355 = vadd.f32 %v1354, %v1233
    %1356 = vadd.xlane.f32.xlu0 %v1355
    %v1357 = vpop.xlane.xlu0 %1356
    %v1358 = vadd.f32 %v1235, %v1237
    %v1359 = vadd.f32 %v1358, %v1239
    %v1360 = vadd.f32 %v1359, %v1241
    %1361 = vadd.xlane.f32.xlu0 %v1360
    %v1362 = vpop.xlane.xlu0 %1361
    %v1363 = vadd.f32 %v1243, %v1245
    %v1364 = vadd.f32 %v1363, %v1247
    %v1365 = vadd.f32 %v1364, %v1249
    %1366 = vadd.xlane.f32.xlu0 %v1365
    %v1367 = vpop.xlane.xlu0 %1366
    %v1368 = vadd.f32 %v1251, %v1253
    %v1369 = vadd.f32 %v1368, %v1255
    %v1370 = vadd.f32 %v1369, %v1257
    %1371 = vadd.xlane.f32.xlu0 %v1370
    %v1372 = vpop.xlane.xlu0 %1371
    %v1373 = vadd.f32 %v1259, %v1261
    %v1374 = vadd.f32 %v1373, %v1263
    %v1375 = vadd.f32 %v1374, %v1265
    %1376 = vadd.xlane.f32.xlu0 %v1375
    %v1377 = vpop.xlane.xlu0 %1376
    %v1378 = vadd.f32 %v1282, %v1302
    %v1379 = vadd.f32 %v1283, %v1307
    %v1380 = vadd.f32 %v1284, %v1312
    %v1381 = vadd.f32 %v1285, %v1317
    %v1382 = vadd.f32 %v1286, %v1322
    %v1383 = vadd.f32 %v1287, %v1327
    %v1384 = vadd.f32 %v1288, %v1332
    %v1385 = vadd.f32 %v1289, %v1337
    %v1386 = vadd.f32 %v1290, %v1342
    %v1387 = vadd.f32 %v1291, %v1347
    %v1388 = vadd.f32 %v1292, %v1352
    %v1389 = vadd.f32 %v1293, %v1357
    %v1390 = vadd.f32 %v1294, %v1362
    %v1391 = vadd.f32 %v1295, %v1367
    %v1392 = vadd.f32 %v1296, %v1372
    %v1393 = vadd.f32 %v1297, %v1377
    %1394 = vst.msk [vmem:[#allocation3] sm:$0xff] %vm817, %v1378
    %1395 = vst.msk [vmem:[#allocation3 + $0x8] sm:$0xff] %vm817, %v1379
    %1396 = vst.msk [vmem:[#allocation3 + $0x10] sm:$0xff] %vm817, %v1380
    %1397 = vst.msk [vmem:[#allocation3 + $0x18] sm:$0xff] %vm817, %v1381
    %1398 = vst.msk [vmem:[#allocation3 + $0x20] sm:$0xff] %vm817, %v1382
    %1399 = vst.msk [vmem:[#allocation3 + $0x28] sm:$0xff] %vm817, %v1383
    %1400 = vst.msk [vmem:[#allocation3 + $0x30] sm:$0xff] %vm817, %v1384
    %1401 = vst.msk [vmem:[#allocation3 + $0x38] sm:$0xff] %vm817, %v1385
    %1402 = vst.msk [vmem:[#allocation3 + $0x40] sm:$0xff] %vm817, %v1386
    %1403 = vst.msk [vmem:[#allocation3 + $0x48] sm:$0xff] %vm817, %v1387
    %1404 = vst.msk [vmem:[#allocation3 + $0x50] sm:$0xff] %vm817, %v1388
    %1405 = vst.msk [vmem:[#allocation3 + $0x58] sm:$0xff] %vm817, %v1389
    %1406 = vst.msk [vmem:[#allocation3 + $0x60] sm:$0xff] %vm817, %v1390
    %1407 = vst.msk [vmem:[#allocation3 + $0x68] sm:$0xff] %vm817, %v1391
    %1408 = vst.msk [vmem:[#allocation3 + $0x70] sm:$0xff] %vm817, %v1392
    %1409 = vst.msk [vmem:[#allocation3 + $0x78] sm:$0xff] %vm817, %v1393
    %v1410 = vld [vmem:[#allocation4] sm:$0xff]
    %v1411 = vld [vmem:[#allocation4 + $0x8] sm:$0xff]
    %v1412 = vld [vmem:[#allocation4 + $0x10] sm:$0xff]
    %v1413 = vld [vmem:[#allocation4 + $0x18] sm:$0xff]
    %v1414 = vld [vmem:[#allocation4 + $0x20] sm:$0xff]
    %v1415 = vld [vmem:[#allocation4 + $0x28] sm:$0xff]
    %v1416 = vld [vmem:[#allocation4 + $0x30] sm:$0xff]
    %v1417 = vld [vmem:[#allocation4 + $0x38] sm:$0xff]
    %v1418 = vld [vmem:[#allocation4 + $0x40] sm:$0xff]
    %v1419 = vld [vmem:[#allocation4 + $0x48] sm:$0xff]
    %v1420 = vld [vmem:[#allocation4 + $0x50] sm:$0xff]
    %v1421 = vld [vmem:[#allocation4 + $0x58] sm:$0xff]
    %v1422 = vld [vmem:[#allocation4 + $0x60] sm:$0xff]
    %v1423 = vld [vmem:[#allocation4 + $0x68] sm:$0xff]
    %v1424 = vld [vmem:[#allocation4 + $0x70] sm:$0xff]
    %v1425 = vld [vmem:[#allocation4 + $0x78] sm:$0xff]
    %v1426 = vmul.f32 %v1410, %v963
    %v1427 = vmul.f32 %v1411, %v965
    %v1428 = vmul.f32 %v1412, %v967
    %v1429 = vmul.f32 %v1413, %v969
    %v1430 = vmul.f32 %v1414, %v971
    %v1431 = vmul.f32 %v1415, %v973
    %v1432 = vmul.f32 %v1416, %v975
    %v1433 = vmul.f32 %v1417, %v977
    %v1434 = vmul.f32 %v1418, %v979
    %v1435 = vmul.f32 %v1419, %v981
    %v1436 = vmul.f32 %v1420, %v983
    %v1437 = vmul.f32 %v1421, %v985
    %v1438 = vmul.f32 %v1422, %v987
    %v1439 = vmul.f32 %v1423, %v989
    %v1440 = vmul.f32 %v1424, %v991
    %v1441 = vmul.f32 %v1425, %v993
    %v1442 = vmul.f32 %v1139, %v298
    %v1443 = vmul.f32 %v1141, %v299
    %v1444 = vmul.f32 %v1143, %v300
    %v1445 = vmul.f32 %v1145, %v301
    %v1446 = vmul.f32 %v1147, %v302
    %v1447 = vmul.f32 %v1149, %v303
    %v1448 = vmul.f32 %v1151, %v304
    %v1449 = vmul.f32 %v1153, %v305
    %v1450 = vmul.f32 %v1155, %v306
    %v1451 = vmul.f32 %v1157, %v307
    %v1452 = vmul.f32 %v1159, %v308
    %v1453 = vmul.f32 %v1161, %v309
    %v1454 = vmul.f32 %v1163, %v310
    %v1455 = vmul.f32 %v1165, %v311
    %v1456 = vmul.f32 %v1167, %v312
    %v1457 = vmul.f32 %v1169, %v313
    %v1458 = vmul.f32 %v1171, %v314
    %v1459 = vmul.f32 %v1173, %v315
    %v1460 = vmul.f32 %v1175, %v316
    %v1461 = vmul.f32 %v1177, %v317
    %v1462 = vmul.f32 %v1179, %v318
    %v1463 = vmul.f32 %v1181, %v319
    %v1464 = vmul.f32 %v1183, %v320
    %v1465 = vmul.f32 %v1185, %v321
    %v1466 = vmul.f32 %v1187, %v322
    %v1467 = vmul.f32 %v1189, %v323
    %v1468 = vmul.f32 %v1191, %v324
    %v1469 = vmul.f32 %v1193, %v325
    %v1470 = vmul.f32 %v1195, %v326
    %v1471 = vmul.f32 %v1197, %v327
    %v1472 = vmul.f32 %v1199, %v328
    %v1473 = vmul.f32 %v1201, %v329
    %v1474 = vmul.f32 %v1203, %v330
    %v1475 = vmul.f32 %v1205, %v331
    %v1476 = vmul.f32 %v1207, %v332
    %v1477 = vmul.f32 %v1209, %v333
    %v1478 = vmul.f32 %v1211, %v334
    %v1479 = vmul.f32 %v1213, %v335
    %v1480 = vmul.f32 %v1215, %v336
    %v1481 = vmul.f32 %v1217, %v337
    %v1482 = vmul.f32 %v1219, %v338
    %v1483 = vmul.f32 %v1221, %v339
    %v1484 = vmul.f32 %v1223, %v340
    %v1485 = vmul.f32 %v1225, %v341
    %v1486 = vmul.f32 %v1227, %v342
    %v1487 = vmul.f32 %v1229, %v343
    %v1488 = vmul.f32 %v1231, %v344
    %v1489 = vmul.f32 %v1233, %v345
    %v1490 = vmul.f32 %v1235, %v346
    %v1491 = vmul.f32 %v1237, %v347
    %v1492 = vmul.f32 %v1239, %v348
    %v1493 = vmul.f32 %v1241, %v349
    %v1494 = vmul.f32 %v1243, %v350
    %v1495 = vmul.f32 %v1245, %v351
    %v1496 = vmul.f32 %v1247, %v352
    %v1497 = vmul.f32 %v1249, %v353
    %v1498 = vmul.f32 %v1251, %v354
    %v1499 = vmul.f32 %v1253, %v355
    %v1500 = vmul.f32 %v1255, %v356
    %v1501 = vmul.f32 %v1257, %v357
    %v1502 = vmul.f32 %v1259, %v358
    %v1503 = vmul.f32 %v1261, %v359
    %v1504 = vmul.f32 %v1263, %v360
    %v1505 = vmul.f32 %v1265, %v361
    %v1506 = vadd.f32 %v1442, %v1443
    %v1507 = vadd.f32 %v1506, %v1444
    %v1508 = vadd.f32 %v1507, %v1445
    %1509 = vadd.xlane.f32.xlu0 %v1508
    %v1510 = vpop.xlane.xlu0 %1509
    %v1511 = vadd.f32 %v1446, %v1447
    %v1512 = vadd.f32 %v1511, %v1448
    %v1513 = vadd.f32 %v1512, %v1449
    %1514 = vadd.xlane.f32.xlu0 %v1513
    %v1515 = vpop.xlane.xlu0 %1514
    %v1516 = vadd.f32 %v1450, %v1451
    %v1517 = vadd.f32 %v1516, %v1452
    %v1518 = vadd.f32 %v1517, %v1453
    %1519 = vadd.xlane.f32.xlu0 %v1518
    %v1520 = vpop.xlane.xlu0 %1519
    %v1521 = vadd.f32 %v1454, %v1455
    %v1522 = vadd.f32 %v1521, %v1456
    %v1523 = vadd.f32 %v1522, %v1457
    %1524 = vadd.xlane.f32.xlu0 %v1523
    %v1525 = vpop.xlane.xlu0 %1524
    %v1526 = vadd.f32 %v1458, %v1459
    %v1527 = vadd.f32 %v1526, %v1460
    %v1528 = vadd.f32 %v1527, %v1461
    %1529 = vadd.xlane.f32.xlu0 %v1528
    %v1530 = vpop.xlane.xlu0 %1529
    %v1531 = vadd.f32 %v1462, %v1463
    %v1532 = vadd.f32 %v1531, %v1464
    %v1533 = vadd.f32 %v1532, %v1465
    %1534 = vadd.xlane.f32.xlu0 %v1533
    %v1535 = vpop.xlane.xlu0 %1534
    %v1536 = vadd.f32 %v1466, %v1467
    %v1537 = vadd.f32 %v1536, %v1468
    %v1538 = vadd.f32 %v1537, %v1469
    %1539 = vadd.xlane.f32.xlu0 %v1538
    %v1540 = vpop.xlane.xlu0 %1539
    %v1541 = vadd.f32 %v1470, %v1471
    %v1542 = vadd.f32 %v1541, %v1472
    %v1543 = vadd.f32 %v1542, %v1473
    %1544 = vadd.xlane.f32.xlu0 %v1543
    %v1545 = vpop.xlane.xlu0 %1544
    %v1546 = vadd.f32 %v1474, %v1475
    %v1547 = vadd.f32 %v1546, %v1476
    %v1548 = vadd.f32 %v1547, %v1477
    %1549 = vadd.xlane.f32.xlu0 %v1548
    %v1550 = vpop.xlane.xlu0 %1549
    %v1551 = vadd.f32 %v1478, %v1479
    %v1552 = vadd.f32 %v1551, %v1480
    %v1553 = vadd.f32 %v1552, %v1481
    %1554 = vadd.xlane.f32.xlu0 %v1553
    %v1555 = vpop.xlane.xlu0 %1554
    %v1556 = vadd.f32 %v1482, %v1483
    %v1557 = vadd.f32 %v1556, %v1484
    %v1558 = vadd.f32 %v1557, %v1485
    %1559 = vadd.xlane.f32.xlu0 %v1558
    %v1560 = vpop.xlane.xlu0 %1559
    %v1561 = vadd.f32 %v1486, %v1487
    %v1562 = vadd.f32 %v1561, %v1488
    %v1563 = vadd.f32 %v1562, %v1489
    %1564 = vadd.xlane.f32.xlu0 %v1563
    %v1565 = vpop.xlane.xlu0 %1564
    %v1566 = vadd.f32 %v1490, %v1491
    %v1567 = vadd.f32 %v1566, %v1492
    %v1568 = vadd.f32 %v1567, %v1493
    %1569 = vadd.xlane.f32.xlu0 %v1568
    %v1570 = vpop.xlane.xlu0 %1569
    %v1571 = vadd.f32 %v1494, %v1495
    %v1572 = vadd.f32 %v1571, %v1496
    %v1573 = vadd.f32 %v1572, %v1497
    %1574 = vadd.xlane.f32.xlu0 %v1573
    %v1575 = vpop.xlane.xlu0 %1574
    %v1576 = vadd.f32 %v1498, %v1499
    %v1577 = vadd.f32 %v1576, %v1500
    %v1578 = vadd.f32 %v1577, %v1501
    %1579 = vadd.xlane.f32.xlu0 %v1578
    %v1580 = vpop.xlane.xlu0 %1579
    %v1581 = vadd.f32 %v1502, %v1503
    %v1582 = vadd.f32 %v1581, %v1504
    %v1583 = vadd.f32 %v1582, %v1505
    %1584 = vadd.xlane.f32.xlu0 %v1583
    %v1585 = vpop.xlane.xlu0 %1584
    %v1586 = vadd.f32 %v1426, %v1510
    %v1587 = vadd.f32 %v1427, %v1515
    %v1588 = vadd.f32 %v1428, %v1520
    %v1589 = vadd.f32 %v1429, %v1525
    %v1590 = vadd.f32 %v1430, %v1530
    %v1591 = vadd.f32 %v1431, %v1535
    %v1592 = vadd.f32 %v1432, %v1540
    %v1593 = vadd.f32 %v1433, %v1545
    %v1594 = vadd.f32 %v1434, %v1550
    %v1595 = vadd.f32 %v1435, %v1555
    %v1596 = vadd.f32 %v1436, %v1560
    %v1597 = vadd.f32 %v1437, %v1565
    %v1598 = vadd.f32 %v1438, %v1570
    %v1599 = vadd.f32 %v1439, %v1575
    %v1600 = vadd.f32 %v1440, %v1580
    %v1601 = vadd.f32 %v1441, %v1585
    %1602 = vst.msk [vmem:[#allocation4] sm:$0xff] %vm817, %v1586
    %1603 = vst.msk [vmem:[#allocation4 + $0x8] sm:$0xff] %vm817, %v1587
    %1604 = vst.msk [vmem:[#allocation4 + $0x10] sm:$0xff] %vm817, %v1588
    %1605 = vst.msk [vmem:[#allocation4 + $0x18] sm:$0xff] %vm817, %v1589
    %1606 = vst.msk [vmem:[#allocation4 + $0x20] sm:$0xff] %vm817, %v1590
    %1607 = vst.msk [vmem:[#allocation4 + $0x28] sm:$0xff] %vm817, %v1591
    %1608 = vst.msk [vmem:[#allocation4 + $0x30] sm:$0xff] %vm817, %v1592
    %1609 = vst.msk [vmem:[#allocation4 + $0x38] sm:$0xff] %vm817, %v1593
    %1610 = vst.msk [vmem:[#allocation4 + $0x40] sm:$0xff] %vm817, %v1594
    %1611 = vst.msk [vmem:[#allocation4 + $0x48] sm:$0xff] %vm817, %v1595
    %1612 = vst.msk [vmem:[#allocation4 + $0x50] sm:$0xff] %vm817, %v1596
    %1613 = vst.msk [vmem:[#allocation4 + $0x58] sm:$0xff] %vm817, %v1597
    %1614 = vst.msk [vmem:[#allocation4 + $0x60] sm:$0xff] %vm817, %v1598
    %1615 = vst.msk [vmem:[#allocation4 + $0x68] sm:$0xff] %vm817, %v1599
    %1616 = vst.msk [vmem:[#allocation4 + $0x70] sm:$0xff] %vm817, %v1600
    %1617 = vst.msk [vmem:[#allocation4 + $0x78] sm:$0xff] %vm817, %v1601
    %1618 = vst.msk [vmem:[#allocation2] sm:$0xff] %vm817, %v930
    %1619 = vst.msk [vmem:[#allocation2 + $0x8] sm:$0xff] %vm817, %v931
    %1620 = vst.msk [vmem:[#allocation2 + $0x10] sm:$0xff] %vm817, %v932
    %1621 = vst.msk [vmem:[#allocation2 + $0x18] sm:$0xff] %vm817, %v933
    %1622 = vst.msk [vmem:[#allocation2 + $0x20] sm:$0xff] %vm817, %v934
    %1623 = vst.msk [vmem:[#allocation2 + $0x28] sm:$0xff] %vm817, %v935
    %1624 = vst.msk [vmem:[#allocation2 + $0x30] sm:$0xff] %vm817, %v936
    %1625 = vst.msk [vmem:[#allocation2 + $0x38] sm:$0xff] %vm817, %v937
    %1626 = vst.msk [vmem:[#allocation2 + $0x40] sm:$0xff] %vm817, %v938
    %1627 = vst.msk [vmem:[#allocation2 + $0x48] sm:$0xff] %vm817, %v939
    %1628 = vst.msk [vmem:[#allocation2 + $0x50] sm:$0xff] %vm817, %v940
    %1629 = vst.msk [vmem:[#allocation2 + $0x58] sm:$0xff] %vm817, %v941
    %1630 = vst.msk [vmem:[#allocation2 + $0x60] sm:$0xff] %vm817, %v942
    %1631 = vst.msk [vmem:[#allocation2 + $0x68] sm:$0xff] %vm817, %v943
    %1632 = vst.msk [vmem:[#allocation2 + $0x70] sm:$0xff] %vm817, %v944
    %1633 = vst.msk [vmem:[#allocation2 + $0x78] sm:$0xff] %vm817, %v945
    %v1634 = vld [vmem:[#allocation5] sm:$0xff]
    %v1635 = vld [vmem:[#allocation5 + $0x8] sm:$0xff]
    %v1636 = vld [vmem:[#allocation5 + $0x10] sm:$0xff]
    %v1637 = vld [vmem:[#allocation5 + $0x18] sm:$0xff]
    %v1638 = vld [vmem:[#allocation5 + $0x20] sm:$0xff]
    %v1639 = vld [vmem:[#allocation5 + $0x28] sm:$0xff]
    %v1640 = vld [vmem:[#allocation5 + $0x30] sm:$0xff]
    %v1641 = vld [vmem:[#allocation5 + $0x38] sm:$0xff]
    %v1642 = vld [vmem:[#allocation5 + $0x40] sm:$0xff]
    %v1643 = vld [vmem:[#allocation5 + $0x48] sm:$0xff]
    %v1644 = vld [vmem:[#allocation5 + $0x50] sm:$0xff]
    %v1645 = vld [vmem:[#allocation5 + $0x58] sm:$0xff]
    %v1646 = vld [vmem:[#allocation5 + $0x60] sm:$0xff]
    %v1647 = vld [vmem:[#allocation5 + $0x68] sm:$0xff]
    %v1648 = vld [vmem:[#allocation5 + $0x70] sm:$0xff]
    %v1649 = vld [vmem:[#allocation5 + $0x78] sm:$0xff]
    %v1650 = vmax.f32 %v362, %v363
    %v1651 = vmax.f32 %v1650, %v364
    %v1652 = vmax.f32 %v1651, %v365
    %1653 = vmax.xlane.f32.xlu0 %v1652
    %v1654 = vpop.xlane.xlu0 %1653
    %v1655 = vmax.f32 %v366, %v367
    %v1656 = vmax.f32 %v1655, %v368
    %v1657 = vmax.f32 %v1656, %v369
    %1658 = vmax.xlane.f32.xlu0 %v1657
    %v1659 = vpop.xlane.xlu0 %1658
    %v1660 = vmax.f32 %v370, %v371
    %v1661 = vmax.f32 %v1660, %v372
    %v1662 = vmax.f32 %v1661, %v373
    %1663 = vmax.xlane.f32.xlu0 %v1662
    %v1664 = vpop.xlane.xlu0 %1663
    %v1665 = vmax.f32 %v374, %v375
    %v1666 = vmax.f32 %v1665, %v376
    %v1667 = vmax.f32 %v1666, %v377
    %1668 = vmax.xlane.f32.xlu0 %v1667
    %v1669 = vpop.xlane.xlu0 %1668
    %v1670 = vmax.f32 %v378, %v379
    %v1671 = vmax.f32 %v1670, %v380
    %v1672 = vmax.f32 %v1671, %v381
    %1673 = vmax.xlane.f32.xlu0 %v1672
    %v1674 = vpop.xlane.xlu0 %1673
    %v1675 = vmax.f32 %v382, %v383
    %v1676 = vmax.f32 %v1675, %v384
    %v1677 = vmax.f32 %v1676, %v385
    %1678 = vmax.xlane.f32.xlu0 %v1677
    %v1679 = vpop.xlane.xlu0 %1678
    %v1680 = vmax.f32 %v386, %v387
    %v1681 = vmax.f32 %v1680, %v388
    %v1682 = vmax.f32 %v1681, %v389
    %1683 = vmax.xlane.f32.xlu0 %v1682
    %v1684 = vpop.xlane.xlu0 %1683
    %v1685 = vmax.f32 %v390, %v391
    %v1686 = vmax.f32 %v1685, %v392
    %v1687 = vmax.f32 %v1686, %v393
    %1688 = vmax.xlane.f32.xlu0 %v1687
    %v1689 = vpop.xlane.xlu0 %1688
    %v1690 = vmax.f32 %v394, %v395
    %v1691 = vmax.f32 %v1690, %v396
    %v1692 = vmax.f32 %v1691, %v397
    %1693 = vmax.xlane.f32.xlu0 %v1692
    %v1694 = vpop.xlane.xlu0 %1693
    %v1695 = vmax.f32 %v398, %v399
    %v1696 = vmax.f32 %v1695, %v400
    %v1697 = vmax.f32 %v1696, %v401
    %1698 = vmax.xlane.f32.xlu0 %v1697
    %v1699 = vpop.xlane.xlu0 %1698
    %v1700 = vmax.f32 %v402, %v403
    %v1701 = vmax.f32 %v1700, %v404
    %v1702 = vmax.f32 %v1701, %v405
    %1703 = vmax.xlane.f32.xlu0 %v1702
    %v1704 = vpop.xlane.xlu0 %1703
    %v1705 = vmax.f32 %v406, %v407
    %v1706 = vmax.f32 %v1705, %v408
    %v1707 = vmax.f32 %v1706, %v409
    %1708 = vmax.xlane.f32.xlu0 %v1707
    %v1709 = vpop.xlane.xlu0 %1708
    %v1710 = vmax.f32 %v410, %v411
    %v1711 = vmax.f32 %v1710, %v412
    %v1712 = vmax.f32 %v1711, %v413
    %1713 = vmax.xlane.f32.xlu0 %v1712
    %v1714 = vpop.xlane.xlu0 %1713
    %v1715 = vmax.f32 %v414, %v415
    %v1716 = vmax.f32 %v1715, %v416
    %v1717 = vmax.f32 %v1716, %v417
    %1718 = vmax.xlane.f32.xlu0 %v1717
    %v1719 = vpop.xlane.xlu0 %1718
    %v1720 = vmax.f32 %v418, %v419
    %v1721 = vmax.f32 %v1720, %v420
    %v1722 = vmax.f32 %v1721, %v421
    %1723 = vmax.xlane.f32.xlu0 %v1722
    %v1724 = vpop.xlane.xlu0 %1723
    %v1725 = vmax.f32 %v422, %v423
    %v1726 = vmax.f32 %v1725, %v424
    %v1727 = vmax.f32 %v1726, %v425
    %1728 = vmax.xlane.f32.xlu0 %v1727
    %v1729 = vpop.xlane.xlu0 %1728
    %v1730 = vmax.f32 %v1634, %v1654
    %v1731 = vmax.f32 %v1635, %v1659
    %v1732 = vmax.f32 %v1636, %v1664
    %v1733 = vmax.f32 %v1637, %v1669
    %v1734 = vmax.f32 %v1638, %v1674
    %v1735 = vmax.f32 %v1639, %v1679
    %v1736 = vmax.f32 %v1640, %v1684
    %v1737 = vmax.f32 %v1641, %v1689
    %v1738 = vmax.f32 %v1642, %v1694
    %v1739 = vmax.f32 %v1643, %v1699
    %v1740 = vmax.f32 %v1644, %v1704
    %v1741 = vmax.f32 %v1645, %v1709
    %v1742 = vmax.f32 %v1646, %v1714
    %v1743 = vmax.f32 %v1647, %v1719
    %v1744 = vmax.f32 %v1648, %v1724
    %v1745 = vmax.f32 %v1649, %v1729
    %v1746 = vsub.f32 %v1634, %v1730
    %v1747 = vsub.f32 %v1635, %v1731
    %v1748 = vsub.f32 %v1636, %v1732
    %v1749 = vsub.f32 %v1637, %v1733
    %v1750 = vsub.f32 %v1638, %v1734
    %v1751 = vsub.f32 %v1639, %v1735
    %v1752 = vsub.f32 %v1640, %v1736
    %v1753 = vsub.f32 %v1641, %v1737
    %v1754 = vsub.f32 %v1642, %v1738
    %v1755 = vsub.f32 %v1643, %v1739
    %v1756 = vsub.f32 %v1644, %v1740
    %v1757 = vsub.f32 %v1645, %v1741
    %v1758 = vsub.f32 %v1646, %v1742
    %v1759 = vsub.f32 %v1647, %v1743
    %v1760 = vsub.f32 %v1648, %v1744
    %v1761 = vsub.f32 %v1649, %v1745
    %v1762 = vmul.f32 %v1746, 1.442695
    %v1763 = vpow.pop %v1762
    %v1764 = vmul.f32 %v1747, 1.442695
    %v1765 = vpow.pop %v1764
    %v1766 = vmul.f32 %v1748, 1.442695
    %v1767 = vpow.pop %v1766
    %v1768 = vmul.f32 %v1749, 1.442695
    %v1769 = vpow.pop %v1768
    %v1770 = vmul.f32 %v1750, 1.442695
    %v1771 = vpow.pop %v1770
    %v1772 = vmul.f32 %v1751, 1.442695
    %v1773 = vpow.pop %v1772
    %v1774 = vmul.f32 %v1752, 1.442695
    %v1775 = vpow.pop %v1774
    %v1776 = vmul.f32 %v1753, 1.442695
    %v1777 = vpow.pop %v1776
    %v1778 = vmul.f32 %v1754, 1.442695
    %v1779 = vpow.pop %v1778
    %v1780 = vmul.f32 %v1755, 1.442695
    %v1781 = vpow.pop %v1780
    %v1782 = vmul.f32 %v1756, 1.442695
    %v1783 = vpow.pop %v1782
    %v1784 = vmul.f32 %v1757, 1.442695
    %v1785 = vpow.pop %v1784
    %v1786 = vmul.f32 %v1758, 1.442695
    %v1787 = vpow.pop %v1786
    %v1788 = vmul.f32 %v1759, 1.442695
    %v1789 = vpow.pop %v1788
    %v1790 = vmul.f32 %v1760, 1.442695
    %v1791 = vpow.pop %v1790
    %v1792 = vmul.f32 %v1761, 1.442695
    %v1793 = vpow.pop %v1792
    %v1794 = vld [vmem:[#allocation6] sm:$0xff]
    %v1795 = vld [vmem:[#allocation6 + $0x8] sm:$0xff]
    %v1796 = vld [vmem:[#allocation6 + $0x10] sm:$0xff]
    %v1797 = vld [vmem:[#allocation6 + $0x18] sm:$0xff]
    %v1798 = vld [vmem:[#allocation6 + $0x20] sm:$0xff]
    %v1799 = vld [vmem:[#allocation6 + $0x28] sm:$0xff]
    %v1800 = vld [vmem:[#allocation6 + $0x30] sm:$0xff]
    %v1801 = vld [vmem:[#allocation6 + $0x38] sm:$0xff]
    %v1802 = vld [vmem:[#allocation6 + $0x40] sm:$0xff]
    %v1803 = vld [vmem:[#allocation6 + $0x48] sm:$0xff]
    %v1804 = vld [vmem:[#allocation6 + $0x50] sm:$0xff]
    %v1805 = vld [vmem:[#allocation6 + $0x58] sm:$0xff]
    %v1806 = vld [vmem:[#allocation6 + $0x60] sm:$0xff]
    %v1807 = vld [vmem:[#allocation6 + $0x68] sm:$0xff]
    %v1808 = vld [vmem:[#allocation6 + $0x70] sm:$0xff]
    %v1809 = vld [vmem:[#allocation6 + $0x78] sm:$0xff]
    %v1810 = vmul.f32 %v1794, %v1763
    %v1811 = vmul.f32 %v1795, %v1765
    %v1812 = vmul.f32 %v1796, %v1767
    %v1813 = vmul.f32 %v1797, %v1769
    %v1814 = vmul.f32 %v1798, %v1771
    %v1815 = vmul.f32 %v1799, %v1773
    %v1816 = vmul.f32 %v1800, %v1775
    %v1817 = vmul.f32 %v1801, %v1777
    %v1818 = vmul.f32 %v1802, %v1779
    %v1819 = vmul.f32 %v1803, %v1781
    %v1820 = vmul.f32 %v1804, %v1783
    %v1821 = vmul.f32 %v1805, %v1785
    %v1822 = vmul.f32 %v1806, %v1787
    %v1823 = vmul.f32 %v1807, %v1789
    %v1824 = vmul.f32 %v1808, %v1791
    %v1825 = vmul.f32 %v1809, %v1793
    %1827 = vset.pattern.permute.xlu0 0
    %1828 = vperm.xlu0 %1827, %v1730
    %v1829 = vpop.permute.xlu0 %1828
    %1832 = vset.pattern.permute.xlu0 0
    %1833 = vperm.xlu0 %1832, %v1731
    %v1834 = vpop.permute.xlu0 %1833
    %1837 = vset.pattern.permute.xlu0 0
    %1838 = vperm.xlu0 %1837, %v1732
    %v1839 = vpop.permute.xlu0 %1838
    %1842 = vset.pattern.permute.xlu0 0
    %1843 = vperm.xlu0 %1842, %v1733
    %v1844 = vpop.permute.xlu0 %1843
    %1847 = vset.pattern.permute.xlu0 0
    %1848 = vperm.xlu0 %1847, %v1734
    %v1849 = vpop.permute.xlu0 %1848
    %1852 = vset.pattern.permute.xlu0 0
    %1853 = vperm.xlu0 %1852, %v1735
    %v1854 = vpop.permute.xlu0 %1853
    %1857 = vset.pattern.permute.xlu0 0
    %1858 = vperm.xlu0 %1857, %v1736
    %v1859 = vpop.permute.xlu0 %1858
    %1862 = vset.pattern.permute.xlu0 0
    %1863 = vperm.xlu0 %1862, %v1737
    %v1864 = vpop.permute.xlu0 %1863
    %1867 = vset.pattern.permute.xlu0 0
    %1868 = vperm.xlu0 %1867, %v1738
    %v1869 = vpop.permute.xlu0 %1868
    %1872 = vset.pattern.permute.xlu0 0
    %1873 = vperm.xlu0 %1872, %v1739
    %v1874 = vpop.permute.xlu0 %1873
    %1877 = vset.pattern.permute.xlu0 0
    %1878 = vperm.xlu0 %1877, %v1740
    %v1879 = vpop.permute.xlu0 %1878
    %1882 = vset.pattern.permute.xlu0 0
    %1883 = vperm.xlu0 %1882, %v1741
    %v1884 = vpop.permute.xlu0 %1883
    %1887 = vset.pattern.permute.xlu0 0
    %1888 = vperm.xlu0 %1887, %v1742
    %v1889 = vpop.permute.xlu0 %1888
    %1892 = vset.pattern.permute.xlu0 0
    %1893 = vperm.xlu0 %1892, %v1743
    %v1894 = vpop.permute.xlu0 %1893
    %1897 = vset.pattern.permute.xlu0 0
    %1898 = vperm.xlu0 %1897, %v1744
    %v1899 = vpop.permute.xlu0 %1898
    %1902 = vset.pattern.permute.xlu0 0
    %1903 = vperm.xlu0 %1902, %v1745
    %v1904 = vpop.permute.xlu0 %1903
    %v1906 = vsub.f32 %v362, %v1829
    %v1907 = vsub.f32 %v363, %v1829
    %v1908 = vsub.f32 %v364, %v1829
    %v1909 = vsub.f32 %v365, %v1829
    %v1910 = vsub.f32 %v366, %v1834
    %v1911 = vsub.f32 %v367, %v1834
    %v1912 = vsub.f32 %v368, %v1834
    %v1913 = vsub.f32 %v369, %v1834
    %v1914 = vsub.f32 %v370, %v1839
    %v1915 = vsub.f32 %v371, %v1839
    %v1916 = vsub.f32 %v372, %v1839
    %v1917 = vsub.f32 %v373, %v1839
    %v1918 = vsub.f32 %v374, %v1844
    %v1919 = vsub.f32 %v375, %v1844
    %v1920 = vsub.f32 %v376, %v1844
    %v1921 = vsub.f32 %v377, %v1844
    %v1922 = vsub.f32 %v378, %v1849
    %v1923 = vsub.f32 %v379, %v1849
    %v1924 = vsub.f32 %v380, %v1849
    %v1925 = vsub.f32 %v381, %v1849
    %v1926 = vsub.f32 %v382, %v1854
    %v1927 = vsub.f32 %v383, %v1854
    %v1928 = vsub.f32 %v384, %v1854
    %v1929 = vsub.f32 %v385, %v1854
    %v1930 = vsub.f32 %v386, %v1859
    %v1931 = vsub.f32 %v387, %v1859
    %v1932 = vsub.f32 %v388, %v1859
    %v1933 = vsub.f32 %v389, %v1859
    %v1934 = vsub.f32 %v390, %v1864
    %v1935 = vsub.f32 %v391, %v1864
    %v1936 = vsub.f32 %v392, %v1864
    %v1937 = vsub.f32 %v393, %v1864
    %v1938 = vsub.f32 %v394, %v1869
    %v1939 = vsub.f32 %v395, %v1869
    %v1940 = vsub.f32 %v396, %v1869
    %v1941 = vsub.f32 %v397, %v1869
    %v1942 = vsub.f32 %v398, %v1874
    %v1943 = vsub.f32 %v399, %v1874
    %v1944 = vsub.f32 %v400, %v1874
    %v1945 = vsub.f32 %v401, %v1874
    %v1946 = vsub.f32 %v402, %v1879
    %v1947 = vsub.f32 %v403, %v1879
    %v1948 = vsub.f32 %v404, %v1879
    %v1949 = vsub.f32 %v405, %v1879
    %v1950 = vsub.f32 %v406, %v1884
    %v1951 = vsub.f32 %v407, %v1884
    %v1952 = vsub.f32 %v408, %v1884
    %v1953 = vsub.f32 %v409, %v1884
    %v1954 = vsub.f32 %v410, %v1889
    %v1955 = vsub.f32 %v411, %v1889
    %v1956 = vsub.f32 %v412, %v1889
    %v1957 = vsub.f32 %v413, %v1889
    %v1958 = vsub.f32 %v414, %v1894
    %v1959 = vsub.f32 %v415, %v1894
    %v1960 = vsub.f32 %v416, %v1894
    %v1961 = vsub.f32 %v417, %v1894
    %v1962 = vsub.f32 %v418, %v1899
    %v1963 = vsub.f32 %v419, %v1899
    %v1964 = vsub.f32 %v420, %v1899
    %v1965 = vsub.f32 %v421, %v1899
    %v1966 = vsub.f32 %v422, %v1904
    %v1967 = vsub.f32 %v423, %v1904
    %v1968 = vsub.f32 %v424, %v1904
    %v1969 = vsub.f32 %v425, %v1904
    %v1970 = vmul.f32 %v1906, 1.442695
    %v1971 = vpow.pop %v1970
    %v1972 = vmul.f32 %v1907, 1.442695
    %v1973 = vpow.pop %v1972
    %v1974 = vmul.f32 %v1908, 1.442695
    %v1975 = vpow.pop %v1974
    %v1976 = vmul.f32 %v1909, 1.442695
    %v1977 = vpow.pop %v1976
    %v1978 = vmul.f32 %v1910, 1.442695
    %v1979 = vpow.pop %v1978
    %v1980 = vmul.f32 %v1911, 1.442695
    %v1981 = vpow.pop %v1980
    %v1982 = vmul.f32 %v1912, 1.442695
    %v1983 = vpow.pop %v1982
    %v1984 = vmul.f32 %v1913, 1.442695
    %v1985 = vpow.pop %v1984
    %v1986 = vmul.f32 %v1914, 1.442695
    %v1987 = vpow.pop %v1986
    %v1988 = vmul.f32 %v1915, 1.442695
    %v1989 = vpow.pop %v1988
    %v1990 = vmul.f32 %v1916, 1.442695
    %v1991 = vpow.pop %v1990
    %v1992 = vmul.f32 %v1917, 1.442695
    %v1993 = vpow.pop %v1992
    %v1994 = vmul.f32 %v1918, 1.442695
    %v1995 = vpow.pop %v1994
    %v1996 = vmul.f32 %v1919, 1.442695
    %v1997 = vpow.pop %v1996
    %v1998 = vmul.f32 %v1920, 1.442695
    %v1999 = vpow.pop %v1998
    %v2000 = vmul.f32 %v1921, 1.442695
    %v2001 = vpow.pop %v2000
    %v2002 = vmul.f32 %v1922, 1.442695
    %v2003 = vpow.pop %v2002
    %v2004 = vmul.f32 %v1923, 1.442695
    %v2005 = vpow.pop %v2004
    %v2006 = vmul.f32 %v1924, 1.442695
    %v2007 = vpow.pop %v2006
    %v2008 = vmul.f32 %v1925, 1.442695
    %v2009 = vpow.pop %v2008
    %v2010 = vmul.f32 %v1926, 1.442695
    %v2011 = vpow.pop %v2010
    %v2012 = vmul.f32 %v1927, 1.442695
    %v2013 = vpow.pop %v2012
    %v2014 = vmul.f32 %v1928, 1.442695
    %v2015 = vpow.pop %v2014
    %v2016 = vmul.f32 %v1929, 1.442695
    %v2017 = vpow.pop %v2016
    %v2018 = vmul.f32 %v1930, 1.442695
    %v2019 = vpow.pop %v2018
    %v2020 = vmul.f32 %v1931, 1.442695
    %v2021 = vpow.pop %v2020
    %v2022 = vmul.f32 %v1932, 1.442695
    %v2023 = vpow.pop %v2022
    %v2024 = vmul.f32 %v1933, 1.442695
    %v2025 = vpow.pop %v2024
    %v2026 = vmul.f32 %v1934, 1.442695
    %v2027 = vpow.pop %v2026
    %v2028 = vmul.f32 %v1935, 1.442695
    %v2029 = vpow.pop %v2028
    %v2030 = vmul.f32 %v1936, 1.442695
    %v2031 = vpow.pop %v2030
    %v2032 = vmul.f32 %v1937, 1.442695
    %v2033 = vpow.pop %v2032
    %v2034 = vmul.f32 %v1938, 1.442695
    %v2035 = vpow.pop %v2034
    %v2036 = vmul.f32 %v1939, 1.442695
    %v2037 = vpow.pop %v2036
    %v2038 = vmul.f32 %v1940, 1.442695
    %v2039 = vpow.pop %v2038
    %v2040 = vmul.f32 %v1941, 1.442695
    %v2041 = vpow.pop %v2040
    %v2042 = vmul.f32 %v1942, 1.442695
    %v2043 = vpow.pop %v2042
    %v2044 = vmul.f32 %v1943, 1.442695
    %v2045 = vpow.pop %v2044
    %v2046 = vmul.f32 %v1944, 1.442695
    %v2047 = vpow.pop %v2046
    %v2048 = vmul.f32 %v1945, 1.442695
    %v2049 = vpow.pop %v2048
    %v2050 = vmul.f32 %v1946, 1.442695
    %v2051 = vpow.pop %v2050
    %v2052 = vmul.f32 %v1947, 1.442695
    %v2053 = vpow.pop %v2052
    %v2054 = vmul.f32 %v1948, 1.442695
    %v2055 = vpow.pop %v2054
    %v2056 = vmul.f32 %v1949, 1.442695
    %v2057 = vpow.pop %v2056
    %v2058 = vmul.f32 %v1950, 1.442695
    %v2059 = vpow.pop %v2058
    %v2060 = vmul.f32 %v1951, 1.442695
    %v2061 = vpow.pop %v2060
    %v2062 = vmul.f32 %v1952, 1.442695
    %v2063 = vpow.pop %v2062
    %v2064 = vmul.f32 %v1953, 1.442695
    %v2065 = vpow.pop %v2064
    %v2066 = vmul.f32 %v1954, 1.442695
    %v2067 = vpow.pop %v2066
    %v2068 = vmul.f32 %v1955, 1.442695
    %v2069 = vpow.pop %v2068
    %v2070 = vmul.f32 %v1956, 1.442695
    %v2071 = vpow.pop %v2070
    %v2072 = vmul.f32 %v1957, 1.442695
    %v2073 = vpow.pop %v2072
    %v2074 = vmul.f32 %v1958, 1.442695
    %v2075 = vpow.pop %v2074
    %v2076 = vmul.f32 %v1959, 1.442695
    %v2077 = vpow.pop %v2076
    %v2078 = vmul.f32 %v1960, 1.442695
    %v2079 = vpow.pop %v2078
    %v2080 = vmul.f32 %v1961, 1.442695
    %v2081 = vpow.pop %v2080
    %v2082 = vmul.f32 %v1962, 1.442695
    %v2083 = vpow.pop %v2082
    %v2084 = vmul.f32 %v1963, 1.442695
    %v2085 = vpow.pop %v2084
    %v2086 = vmul.f32 %v1964, 1.442695
    %v2087 = vpow.pop %v2086
    %v2088 = vmul.f32 %v1965, 1.442695
    %v2089 = vpow.pop %v2088
    %v2090 = vmul.f32 %v1966, 1.442695
    %v2091 = vpow.pop %v2090
    %v2092 = vmul.f32 %v1967, 1.442695
    %v2093 = vpow.pop %v2092
    %v2094 = vmul.f32 %v1968, 1.442695
    %v2095 = vpow.pop %v2094
    %v2096 = vmul.f32 %v1969, 1.442695
    %v2097 = vpow.pop %v2096
    %v2098 = vadd.f32 %v1971, %v1973
    %v2099 = vadd.f32 %v2098, %v1975
    %v2100 = vadd.f32 %v2099, %v1977
    %2101 = vadd.xlane.f32.xlu0 %v2100
    %v2102 = vpop.xlane.xlu0 %2101
    %v2103 = vadd.f32 %v1979, %v1981
    %v2104 = vadd.f32 %v2103, %v1983
    %v2105 = vadd.f32 %v2104, %v1985
    %2106 = vadd.xlane.f32.xlu0 %v2105
    %v2107 = vpop.xlane.xlu0 %2106
    %v2108 = vadd.f32 %v1987, %v1989
    %v2109 = vadd.f32 %v2108, %v1991
    %v2110 = vadd.f32 %v2109, %v1993
    %2111 = vadd.xlane.f32.xlu0 %v2110
    %v2112 = vpop.xlane.xlu0 %2111
    %v2113 = vadd.f32 %v1995, %v1997
    %v2114 = vadd.f32 %v2113, %v1999
    %v2115 = vadd.f32 %v2114, %v2001
    %2116 = vadd.xlane.f32.xlu0 %v2115
    %v2117 = vpop.xlane.xlu0 %2116
    %v2118 = vadd.f32 %v2003, %v2005
    %v2119 = vadd.f32 %v2118, %v2007
    %v2120 = vadd.f32 %v2119, %v2009
    %2121 = vadd.xlane.f32.xlu0 %v2120
    %v2122 = vpop.xlane.xlu0 %2121
    %v2123 = vadd.f32 %v2011, %v2013
    %v2124 = vadd.f32 %v2123, %v2015
    %v2125 = vadd.f32 %v2124, %v2017
    %2126 = vadd.xlane.f32.xlu0 %v2125
    %v2127 = vpop.xlane.xlu0 %2126
    %v2128 = vadd.f32 %v2019, %v2021
    %v2129 = vadd.f32 %v2128, %v2023
    %v2130 = vadd.f32 %v2129, %v2025
    %2131 = vadd.xlane.f32.xlu0 %v2130
    %v2132 = vpop.xlane.xlu0 %2131
    %v2133 = vadd.f32 %v2027, %v2029
    %v2134 = vadd.f32 %v2133, %v2031
    %v2135 = vadd.f32 %v2134, %v2033
    %2136 = vadd.xlane.f32.xlu0 %v2135
    %v2137 = vpop.xlane.xlu0 %2136
    %v2138 = vadd.f32 %v2035, %v2037
    %v2139 = vadd.f32 %v2138, %v2039
    %v2140 = vadd.f32 %v2139, %v2041
    %2141 = vadd.xlane.f32.xlu0 %v2140
    %v2142 = vpop.xlane.xlu0 %2141
    %v2143 = vadd.f32 %v2043, %v2045
    %v2144 = vadd.f32 %v2143, %v2047
    %v2145 = vadd.f32 %v2144, %v2049
    %2146 = vadd.xlane.f32.xlu0 %v2145
    %v2147 = vpop.xlane.xlu0 %2146
    %v2148 = vadd.f32 %v2051, %v2053
    %v2149 = vadd.f32 %v2148, %v2055
    %v2150 = vadd.f32 %v2149, %v2057
    %2151 = vadd.xlane.f32.xlu0 %v2150
    %v2152 = vpop.xlane.xlu0 %2151
    %v2153 = vadd.f32 %v2059, %v2061
    %v2154 = vadd.f32 %v2153, %v2063
    %v2155 = vadd.f32 %v2154, %v2065
    %2156 = vadd.xlane.f32.xlu0 %v2155
    %v2157 = vpop.xlane.xlu0 %2156
    %v2158 = vadd.f32 %v2067, %v2069
    %v2159 = vadd.f32 %v2158, %v2071
    %v2160 = vadd.f32 %v2159, %v2073
    %2161 = vadd.xlane.f32.xlu0 %v2160
    %v2162 = vpop.xlane.xlu0 %2161
    %v2163 = vadd.f32 %v2075, %v2077
    %v2164 = vadd.f32 %v2163, %v2079
    %v2165 = vadd.f32 %v2164, %v2081
    %2166 = vadd.xlane.f32.xlu0 %v2165
    %v2167 = vpop.xlane.xlu0 %2166
    %v2168 = vadd.f32 %v2083, %v2085
    %v2169 = vadd.f32 %v2168, %v2087
    %v2170 = vadd.f32 %v2169, %v2089
    %2171 = vadd.xlane.f32.xlu0 %v2170
    %v2172 = vpop.xlane.xlu0 %2171
    %v2173 = vadd.f32 %v2091, %v2093
    %v2174 = vadd.f32 %v2173, %v2095
    %v2175 = vadd.f32 %v2174, %v2097
    %2176 = vadd.xlane.f32.xlu0 %v2175
    %v2177 = vpop.xlane.xlu0 %2176
    %v2178 = vadd.f32 %v1810, %v2102
    %v2179 = vadd.f32 %v1811, %v2107
    %v2180 = vadd.f32 %v1812, %v2112
    %v2181 = vadd.f32 %v1813, %v2117
    %v2182 = vadd.f32 %v1814, %v2122
    %v2183 = vadd.f32 %v1815, %v2127
    %v2184 = vadd.f32 %v1816, %v2132
    %v2185 = vadd.f32 %v1817, %v2137
    %v2186 = vadd.f32 %v1818, %v2142
    %v2187 = vadd.f32 %v1819, %v2147
    %v2188 = vadd.f32 %v1820, %v2152
    %v2189 = vadd.f32 %v1821, %v2157
    %v2190 = vadd.f32 %v1822, %v2162
    %v2191 = vadd.f32 %v1823, %v2167
    %v2192 = vadd.f32 %v1824, %v2172
    %v2193 = vadd.f32 %v1825, %v2177
    %2194 = vst.msk [vmem:[#allocation6] sm:$0xff] %vm817, %v2178
    %2195 = vst.msk [vmem:[#allocation6 + $0x8] sm:$0xff] %vm817, %v2179
    %2196 = vst.msk [vmem:[#allocation6 + $0x10] sm:$0xff] %vm817, %v2180
    %2197 = vst.msk [vmem:[#allocation6 + $0x18] sm:$0xff] %vm817, %v2181
    %2198 = vst.msk [vmem:[#allocation6 + $0x20] sm:$0xff] %vm817, %v2182
    %2199 = vst.msk [vmem:[#allocation6 + $0x28] sm:$0xff] %vm817, %v2183
    %2200 = vst.msk [vmem:[#allocation6 + $0x30] sm:$0xff] %vm817, %v2184
    %2201 = vst.msk [vmem:[#allocation6 + $0x38] sm:$0xff] %vm817, %v2185
    %2202 = vst.msk [vmem:[#allocation6 + $0x40] sm:$0xff] %vm817, %v2186
    %2203 = vst.msk [vmem:[#allocation6 + $0x48] sm:$0xff] %vm817, %v2187
    %2204 = vst.msk [vmem:[#allocation6 + $0x50] sm:$0xff] %vm817, %v2188
    %2205 = vst.msk [vmem:[#allocation6 + $0x58] sm:$0xff] %vm817, %v2189
    %2206 = vst.msk [vmem:[#allocation6 + $0x60] sm:$0xff] %vm817, %v2190
    %2207 = vst.msk [vmem:[#allocation6 + $0x68] sm:$0xff] %vm817, %v2191
    %2208 = vst.msk [vmem:[#allocation6 + $0x70] sm:$0xff] %vm817, %v2192
    %2209 = vst.msk [vmem:[#allocation6 + $0x78] sm:$0xff] %vm817, %v2193
    %2210 = vst.msk [vmem:[#allocation5] sm:$0xff] %vm817, %v1730
    %2211 = vst.msk [vmem:[#allocation5 + $0x8] sm:$0xff] %vm817, %v1731
    %2212 = vst.msk [vmem:[#allocation5 + $0x10] sm:$0xff] %vm817, %v1732
    %2213 = vst.msk [vmem:[#allocation5 + $0x18] sm:$0xff] %vm817, %v1733
    %2214 = vst.msk [vmem:[#allocation5 + $0x20] sm:$0xff] %vm817, %v1734
    %2215 = vst.msk [vmem:[#allocation5 + $0x28] sm:$0xff] %vm817, %v1735
    %2216 = vst.msk [vmem:[#allocation5 + $0x30] sm:$0xff] %vm817, %v1736
    %2217 = vst.msk [vmem:[#allocation5 + $0x38] sm:$0xff] %vm817, %v1737
    %2218 = vst.msk [vmem:[#allocation5 + $0x40] sm:$0xff] %vm817, %v1738
    %2219 = vst.msk [vmem:[#allocation5 + $0x48] sm:$0xff] %vm817, %v1739
    %2220 = vst.msk [vmem:[#allocation5 + $0x50] sm:$0xff] %vm817, %v1740
    %2221 = vst.msk [vmem:[#allocation5 + $0x58] sm:$0xff] %vm817, %v1741
    %2222 = vst.msk [vmem:[#allocation5 + $0x60] sm:$0xff] %vm817, %v1742
    %2223 = vst.msk [vmem:[#allocation5 + $0x68] sm:$0xff] %vm817, %v1743
    %2224 = vst.msk [vmem:[#allocation5 + $0x70] sm:$0xff] %vm817, %v1744
    %2225 = vst.msk [vmem:[#allocation5 + $0x78] sm:$0xff] %vm817, %v1745
    // Predicated region
    $region34: #{tpu_custom_call.1} parent=1 // pred_check
      %p2226 = pneg %p112
    $region35: #{tpu_custom_call.1} parent=1 // pred_check_branch
      %2228 = sbr.rel (%p2226) target = $region37
    $region36: #{tpu_custom_call.1} parent=1 // pred_region
      %v2229 = vld [vmem:[#allocation3] sm:$0xff]
      %v2230 = vld [vmem:[#allocation3 + $0x8] sm:$0xff]
      %v2231 = vld [vmem:[#allocation3 + $0x10] sm:$0xff]
      %v2232 = vld [vmem:[#allocation3 + $0x18] sm:$0xff]
      %v2233 = vld [vmem:[#allocation3 + $0x20] sm:$0xff]
      %v2234 = vld [vmem:[#allocation3 + $0x28] sm:$0xff]
      %v2235 = vld [vmem:[#allocation3 + $0x30] sm:$0xff]
      %v2236 = vld [vmem:[#allocation3 + $0x38] sm:$0xff]
      %v2237 = vld [vmem:[#allocation3 + $0x40] sm:$0xff]
      %v2238 = vld [vmem:[#allocation3 + $0x48] sm:$0xff]
      %v2239 = vld [vmem:[#allocation3 + $0x50] sm:$0xff]
      %v2240 = vld [vmem:[#allocation3 + $0x58] sm:$0xff]
      %v2241 = vld [vmem:[#allocation3 + $0x60] sm:$0xff]
      %v2242 = vld [vmem:[#allocation3 + $0x68] sm:$0xff]
      %v2243 = vld [vmem:[#allocation3 + $0x70] sm:$0xff]
      %v2244 = vld [vmem:[#allocation3 + $0x78] sm:$0xff]
      %v2245 = vlog2.pop %v2229
      %v2246 = vmul.f32 %v2245, 0.6931472
      %v2247 = vlog2.pop %v2230
      %v2248 = vmul.f32 %v2247, 0.6931472
      %v2249 = vlog2.pop %v2231
      %v2250 = vmul.f32 %v2249, 0.6931472
      %v2251 = vlog2.pop %v2232
      %v2252 = vmul.f32 %v2251, 0.6931472
      %v2253 = vlog2.pop %v2233
      %v2254 = vmul.f32 %v2253, 0.6931472
      %v2255 = vlog2.pop %v2234
      %v2256 = vmul.f32 %v2255, 0.6931472
      %v2257 = vlog2.pop %v2235
      %v2258 = vmul.f32 %v2257, 0.6931472
      %v2259 = vlog2.pop %v2236
      %v2260 = vmul.f32 %v2259, 0.6931472
      %v2261 = vlog2.pop %v2237
      %v2262 = vmul.f32 %v2261, 0.6931472
      %v2263 = vlog2.pop %v2238
      %v2264 = vmul.f32 %v2263, 0.6931472
      %v2265 = vlog2.pop %v2239
      %v2266 = vmul.f32 %v2265, 0.6931472
      %v2267 = vlog2.pop %v2240
      %v2268 = vmul.f32 %v2267, 0.6931472
      %v2269 = vlog2.pop %v2241
      %v2270 = vmul.f32 %v2269, 0.6931472
      %v2271 = vlog2.pop %v2242
      %v2272 = vmul.f32 %v2271, 0.6931472
      %v2273 = vlog2.pop %v2243
      %v2274 = vmul.f32 %v2273, 0.6931472
      %v2275 = vlog2.pop %v2244
      %v2276 = vmul.f32 %v2275, 0.6931472
      %v2277 = vld [vmem:[#allocation2] sm:$0xff]
      %v2278 = vld [vmem:[#allocation2 + $0x8] sm:$0xff]
      %v2279 = vld [vmem:[#allocation2 + $0x10] sm:$0xff]
      %v2280 = vld [vmem:[#allocation2 + $0x18] sm:$0xff]
      %v2281 = vld [vmem:[#allocation2 + $0x20] sm:$0xff]
      %v2282 = vld [vmem:[#allocation2 + $0x28] sm:$0xff]
      %v2283 = vld [vmem:[#allocation2 + $0x30] sm:$0xff]
      %v2284 = vld [vmem:[#allocation2 + $0x38] sm:$0xff]
      %v2285 = vld [vmem:[#allocation2 + $0x40] sm:$0xff]
      %v2286 = vld [vmem:[#allocation2 + $0x48] sm:$0xff]
      %v2287 = vld [vmem:[#allocation2 + $0x50] sm:$0xff]
      %v2288 = vld [vmem:[#allocation2 + $0x58] sm:$0xff]
      %v2289 = vld [vmem:[#allocation2 + $0x60] sm:$0xff]
      %v2290 = vld [vmem:[#allocation2 + $0x68] sm:$0xff]
      %v2291 = vld [vmem:[#allocation2 + $0x70] sm:$0xff]
      %v2292 = vld [vmem:[#allocation2 + $0x78] sm:$0xff]
      %v2293 = vadd.f32 %v2277, %v2246
      %v2294 = vadd.f32 %v2278, %v2248
      %v2295 = vadd.f32 %v2279, %v2250
      %v2296 = vadd.f32 %v2280, %v2252
      %v2297 = vadd.f32 %v2281, %v2254
      %v2298 = vadd.f32 %v2282, %v2256
      %v2299 = vadd.f32 %v2283, %v2258
      %v2300 = vadd.f32 %v2284, %v2260
      %v2301 = vadd.f32 %v2285, %v2262
      %v2302 = vadd.f32 %v2286, %v2264
      %v2303 = vadd.f32 %v2287, %v2266
      %v2304 = vadd.f32 %v2288, %v2268
      %v2305 = vadd.f32 %v2289, %v2270
      %v2306 = vadd.f32 %v2290, %v2272
      %v2307 = vadd.f32 %v2291, %v2274
      %v2308 = vadd.f32 %v2292, %v2276
      %v2309 = vld [vmem:[#allocation4] sm:$0xff]
      %v2310 = vld [vmem:[#allocation4 + $0x8] sm:$0xff]
      %v2311 = vld [vmem:[#allocation4 + $0x10] sm:$0xff]
      %v2312 = vld [vmem:[#allocation4 + $0x18] sm:$0xff]
      %v2313 = vld [vmem:[#allocation4 + $0x20] sm:$0xff]
      %v2314 = vld [vmem:[#allocation4 + $0x28] sm:$0xff]
      %v2315 = vld [vmem:[#allocation4 + $0x30] sm:$0xff]
      %v2316 = vld [vmem:[#allocation4 + $0x38] sm:$0xff]
      %v2317 = vld [vmem:[#allocation4 + $0x40] sm:$0xff]
      %v2318 = vld [vmem:[#allocation4 + $0x48] sm:$0xff]
      %v2319 = vld [vmem:[#allocation4 + $0x50] sm:$0xff]
      %v2320 = vld [vmem:[#allocation4 + $0x58] sm:$0xff]
      %v2321 = vld [vmem:[#allocation4 + $0x60] sm:$0xff]
      %v2322 = vld [vmem:[#allocation4 + $0x68] sm:$0xff]
      %v2323 = vld [vmem:[#allocation4 + $0x70] sm:$0xff]
      %v2324 = vld [vmem:[#allocation4 + $0x78] sm:$0xff]
      %v2325 = vrcp.pop %v2229
      %v2326 = vmul.f32 %v2309, %v2325
      %v2327 = vrcp.pop %v2230
      %v2328 = vmul.f32 %v2310, %v2327
      %v2329 = vrcp.pop %v2231
      %v2330 = vmul.f32 %v2311, %v2329
      %v2331 = vrcp.pop %v2232
      %v2332 = vmul.f32 %v2312, %v2331
      %v2333 = vrcp.pop %v2233
      %v2334 = vmul.f32 %v2313, %v2333
      %v2335 = vrcp.pop %v2234
      %v2336 = vmul.f32 %v2314, %v2335
      %v2337 = vrcp.pop %v2235
      %v2338 = vmul.f32 %v2315, %v2337
      %v2339 = vrcp.pop %v2236
      %v2340 = vmul.f32 %v2316, %v2339
      %v2341 = vrcp.pop %v2237
      %v2342 = vmul.f32 %v2317, %v2341
      %v2343 = vrcp.pop %v2238
      %v2344 = vmul.f32 %v2318, %v2343
      %v2345 = vrcp.pop %v2239
      %v2346 = vmul.f32 %v2319, %v2345
      %v2347 = vrcp.pop %v2240
      %v2348 = vmul.f32 %v2320, %v2347
      %v2349 = vrcp.pop %v2241
      %v2350 = vmul.f32 %v2321, %v2349
      %v2351 = vrcp.pop %v2242
      %v2352 = vmul.f32 %v2322, %v2351
      %v2353 = vrcp.pop %v2243
      %v2354 = vmul.f32 %v2323, %v2353
      %v2355 = vrcp.pop %v2244
      %v2356 = vmul.f32 %v2324, %v2355
      %v2357 = vsub.f32 %v2326, %v2277
      %v2358 = vsub.f32 %v2328, %v2278
      %v2359 = vsub.f32 %v2330, %v2279
      %v2360 = vsub.f32 %v2332, %v2280
      %v2361 = vsub.f32 %v2334, %v2281
      %v2362 = vsub.f32 %v2336, %v2282
      %v2363 = vsub.f32 %v2338, %v2283
      %v2364 = vsub.f32 %v2340, %v2284
      %v2365 = vsub.f32 %v2342, %v2285
      %v2366 = vsub.f32 %v2344, %v2286
      %v2367 = vsub.f32 %v2346, %v2287
      %v2368 = vsub.f32 %v2348, %v2288
      %v2369 = vsub.f32 %v2350, %v2289
      %v2370 = vsub.f32 %v2352, %v2290
      %v2371 = vsub.f32 %v2354, %v2291
      %v2372 = vsub.f32 %v2356, %v2292
      %v2373 = vsub.f32 %v2246, %v2357
      %v2374 = vsub.f32 %v2248, %v2358
      %v2375 = vsub.f32 %v2250, %v2359
      %v2376 = vsub.f32 %v2252, %v2360
      %v2377 = vsub.f32 %v2254, %v2361
      %v2378 = vsub.f32 %v2256, %v2362
      %v2379 = vsub.f32 %v2258, %v2363
      %v2380 = vsub.f32 %v2260, %v2364
      %v2381 = vsub.f32 %v2262, %v2365
      %v2382 = vsub.f32 %v2264, %v2366
      %v2383 = vsub.f32 %v2266, %v2367
      %v2384 = vsub.f32 %v2268, %v2368
      %v2385 = vsub.f32 %v2270, %v2369
      %v2386 = vsub.f32 %v2272, %v2370
      %v2387 = vsub.f32 %v2274, %v2371
      %v2388 = vsub.f32 %v2276, %v2372
      %v2389 = vld [vmem:[#allocation5] sm:$0xff]
      %v2390 = vld [vmem:[#allocation5 + $0x8] sm:$0xff]
      %v2391 = vld [vmem:[#allocation5 + $0x10] sm:$0xff]
      %v2392 = vld [vmem:[#allocation5 + $0x18] sm:$0xff]
      %v2393 = vld [vmem:[#allocation5 + $0x20] sm:$0xff]
      %v2394 = vld [vmem:[#allocation5 + $0x28] sm:$0xff]
      %v2395 = vld [vmem:[#allocation5 + $0x30] sm:$0xff]
      %v2396 = vld [vmem:[#allocation5 + $0x38] sm:$0xff]
      %v2397 = vld [vmem:[#allocation5 + $0x40] sm:$0xff]
      %v2398 = vld [vmem:[#allocation5 + $0x48] sm:$0xff]
      %v2399 = vld [vmem:[#allocation5 + $0x50] sm:$0xff]
      %v2400 = vld [vmem:[#allocation5 + $0x58] sm:$0xff]
      %v2401 = vld [vmem:[#allocation5 + $0x60] sm:$0xff]
      %v2402 = vld [vmem:[#allocation5 + $0x68] sm:$0xff]
      %v2403 = vld [vmem:[#allocation5 + $0x70] sm:$0xff]
      %v2404 = vld [vmem:[#allocation5 + $0x78] sm:$0xff]
      %v2405 = vld [vmem:[#allocation6] sm:$0xff]
      %v2406 = vld [vmem:[#allocation6 + $0x8] sm:$0xff]
      %v2407 = vld [vmem:[#allocation6 + $0x10] sm:$0xff]
      %v2408 = vld [vmem:[#allocation6 + $0x18] sm:$0xff]
      %v2409 = vld [vmem:[#allocation6 + $0x20] sm:$0xff]
      %v2410 = vld [vmem:[#allocation6 + $0x28] sm:$0xff]
      %v2411 = vld [vmem:[#allocation6 + $0x30] sm:$0xff]
      %v2412 = vld [vmem:[#allocation6 + $0x38] sm:$0xff]
      %v2413 = vld [vmem:[#allocation6 + $0x40] sm:$0xff]
      %v2414 = vld [vmem:[#allocation6 + $0x48] sm:$0xff]
      %v2415 = vld [vmem:[#allocation6 + $0x50] sm:$0xff]
      %v2416 = vld [vmem:[#allocation6 + $0x58] sm:$0xff]
      %v2417 = vld [vmem:[#allocation6 + $0x60] sm:$0xff]
      %v2418 = vld [vmem:[#allocation6 + $0x68] sm:$0xff]
      %v2419 = vld [vmem:[#allocation6 + $0x70] sm:$0xff]
      %v2420 = vld [vmem:[#allocation6 + $0x78] sm:$0xff]
      %v2421 = vlog2.pop %v2405
      %v2422 = vmul.f32 %v2421, 0.6931472
      %v2423 = vlog2.pop %v2406
      %v2424 = vmul.f32 %v2423, 0.6931472
      %v2425 = vlog2.pop %v2407
      %v2426 = vmul.f32 %v2425, 0.6931472
      %v2427 = vlog2.pop %v2408
      %v2428 = vmul.f32 %v2427, 0.6931472
      %v2429 = vlog2.pop %v2409
      %v2430 = vmul.f32 %v2429, 0.6931472
      %v2431 = vlog2.pop %v2410
      %v2432 = vmul.f32 %v2431, 0.6931472
      %v2433 = vlog2.pop %v2411
      %v2434 = vmul.f32 %v2433, 0.6931472
      %v2435 = vlog2.pop %v2412
      %v2436 = vmul.f32 %v2435, 0.6931472
      %v2437 = vlog2.pop %v2413
      %v2438 = vmul.f32 %v2437, 0.6931472
      %v2439 = vlog2.pop %v2414
      %v2440 = vmul.f32 %v2439, 0.6931472
      %v2441 = vlog2.pop %v2415
      %v2442 = vmul.f32 %v2441, 0.6931472
      %v2443 = vlog2.pop %v2416
      %v2444 = vmul.f32 %v2443, 0.6931472
      %v2445 = vlog2.pop %v2417
      %v2446 = vmul.f32 %v2445, 0.6931472
      %v2447 = vlog2.pop %v2418
      %v2448 = vmul.f32 %v2447, 0.6931472
      %v2449 = vlog2.pop %v2419
      %v2450 = vmul.f32 %v2449, 0.6931472
      %v2451 = vlog2.pop %v2420
      %v2452 = vmul.f32 %v2451, 0.6931472
      %v2453 = vadd.f32 %v2389, %v2422
      %v2454 = vadd.f32 %v2390, %v2424
      %v2455 = vadd.f32 %v2391, %v2426
      %v2456 = vadd.f32 %v2392, %v2428
      %v2457 = vadd.f32 %v2393, %v2430
      %v2458 = vadd.f32 %v2394, %v2432
      %v2459 = vadd.f32 %v2395, %v2434
      %v2460 = vadd.f32 %v2396, %v2436
      %v2461 = vadd.f32 %v2397, %v2438
      %v2462 = vadd.f32 %v2398, %v2440
      %v2463 = vadd.f32 %v2399, %v2442
      %v2464 = vadd.f32 %v2400, %v2444
      %v2465 = vadd.f32 %v2401, %v2446
      %v2466 = vadd.f32 %v2402, %v2448
      %v2467 = vadd.f32 %v2403, %v2450
      %v2468 = vadd.f32 %v2404, %v2452
      %v2469 = vld [vmem:[#allocation7] sm:$0xff]
      %v2470 = vld [vmem:[#allocation7 + $0x8] sm:$0xff]
      %v2471 = vld [vmem:[#allocation7 + $0x10] sm:$0xff]
      %v2472 = vld [vmem:[#allocation7 + $0x18] sm:$0xff]
      %v2473 = vld [vmem:[#allocation7 + $0x20] sm:$0xff]
      %v2474 = vld [vmem:[#allocation7 + $0x28] sm:$0xff]
      %v2475 = vld [vmem:[#allocation7 + $0x30] sm:$0xff]
      %v2476 = vld [vmem:[#allocation7 + $0x38] sm:$0xff]
      %v2477 = vld [vmem:[#allocation7 + $0x40] sm:$0xff]
      %v2478 = vld [vmem:[#allocation7 + $0x48] sm:$0xff]
      %v2479 = vld [vmem:[#allocation7 + $0x50] sm:$0xff]
      %v2480 = vld [vmem:[#allocation7 + $0x58] sm:$0xff]
      %v2481 = vld [vmem:[#allocation7 + $0x60] sm:$0xff]
      %v2482 = vld [vmem:[#allocation7 + $0x68] sm:$0xff]
      %v2483 = vld [vmem:[#allocation7 + $0x70] sm:$0xff]
      %v2484 = vld [vmem:[#allocation7 + $0x78] sm:$0xff]
      %v2485 = vsub.f32 %v2293, %v2453
      %v2486 = vsub.f32 %v2294, %v2454
      %v2487 = vsub.f32 %v2295, %v2455
      %v2488 = vsub.f32 %v2296, %v2456
      %v2489 = vsub.f32 %v2297, %v2457
      %v2490 = vsub.f32 %v2298, %v2458
      %v2491 = vsub.f32 %v2299, %v2459
      %v2492 = vsub.f32 %v2300, %v2460
      %v2493 = vsub.f32 %v2301, %v2461
      %v2494 = vsub.f32 %v2302, %v2462
      %v2495 = vsub.f32 %v2303, %v2463
      %v2496 = vsub.f32 %v2304, %v2464
      %v2497 = vsub.f32 %v2305, %v2465
      %v2498 = vsub.f32 %v2306, %v2466
      %v2499 = vsub.f32 %v2307, %v2467
      %v2500 = vsub.f32 %v2308, %v2468
      %v2501 = vsub.f32 %v2469, %v2485
      %v2502 = vsub.f32 %v2470, %v2486
      %v2503 = vsub.f32 %v2471, %v2487
      %v2504 = vsub.f32 %v2472, %v2488
      %v2505 = vsub.f32 %v2473, %v2489
      %v2506 = vsub.f32 %v2474, %v2490
      %v2507 = vsub.f32 %v2475, %v2491
      %v2508 = vsub.f32 %v2476, %v2492
      %v2509 = vsub.f32 %v2477, %v2493
      %v2510 = vsub.f32 %v2478, %v2494
      %v2511 = vsub.f32 %v2479, %v2495
      %v2512 = vsub.f32 %v2480, %v2496
      %v2513 = vsub.f32 %v2481, %v2497
      %v2514 = vsub.f32 %v2482, %v2498
      %v2515 = vsub.f32 %v2483, %v2499
      %v2516 = vsub.f32 %v2484, %v2500
      %v2517 = vmul.f32 %v2501, 1.442695
      %v2518 = vpow.pop %v2517
      %v2519 = vmul.f32 %v2502, 1.442695
      %v2520 = vpow.pop %v2519
      %v2521 = vmul.f32 %v2503, 1.442695
      %v2522 = vpow.pop %v2521
      %v2523 = vmul.f32 %v2504, 1.442695
      %v2524 = vpow.pop %v2523
      %v2525 = vmul.f32 %v2505, 1.442695
      %v2526 = vpow.pop %v2525
      %v2527 = vmul.f32 %v2506, 1.442695
      %v2528 = vpow.pop %v2527
      %v2529 = vmul.f32 %v2507, 1.442695
      %v2530 = vpow.pop %v2529
      %v2531 = vmul.f32 %v2508, 1.442695
      %v2532 = vpow.pop %v2531
      %v2533 = vmul.f32 %v2509, 1.442695
      %v2534 = vpow.pop %v2533
      %v2535 = vmul.f32 %v2510, 1.442695
      %v2536 = vpow.pop %v2535
      %v2537 = vmul.f32 %v2511, 1.442695
      %v2538 = vpow.pop %v2537
      %v2539 = vmul.f32 %v2512, 1.442695
      %v2540 = vpow.pop %v2539
      %v2541 = vmul.f32 %v2513, 1.442695
      %v2542 = vpow.pop %v2541
      %v2543 = vmul.f32 %v2514, 1.442695
      %v2544 = vpow.pop %v2543
      %v2545 = vmul.f32 %v2515, 1.442695
      %v2546 = vpow.pop %v2545
      %v2547 = vmul.f32 %v2516, 1.442695
      %v2548 = vpow.pop %v2547
      %v2549 = vld [vmem:[%s108] sm:$0xff]
      %v2550 = vld [vmem:[%s108 + $0x8] sm:$0xff]
      %v2551 = vld [vmem:[%s108 + $0x10] sm:$0xff]
      %v2552 = vld [vmem:[%s108 + $0x18] sm:$0xff]
      %v2553 = vld [vmem:[%s108 + $0x20] sm:$0xff]
      %v2554 = vld [vmem:[%s108 + $0x28] sm:$0xff]
      %v2555 = vld [vmem:[%s108 + $0x30] sm:$0xff]
      %v2556 = vld [vmem:[%s108 + $0x38] sm:$0xff]
      %v2557 = vld [vmem:[%s108 + $0x40] sm:$0xff]
      %v2558 = vld [vmem:[%s108 + $0x48] sm:$0xff]
      %v2559 = vld [vmem:[%s108 + $0x50] sm:$0xff]
      %v2560 = vld [vmem:[%s108 + $0x58] sm:$0xff]
      %v2561 = vld [vmem:[%s108 + $0x60] sm:$0xff]
      %v2562 = vld [vmem:[%s108 + $0x68] sm:$0xff]
      %v2563 = vld [vmem:[%s108 + $0x70] sm:$0xff]
      %v2564 = vld [vmem:[%s108 + $0x78] sm:$0xff]
      %vm2565 = vcmp.gt.f32.partialorder %v2549, 0.0
      %vm2566 = vcmp.gt.f32.partialorder %v2550, 0.0
      %vm2567 = vcmp.gt.f32.partialorder %v2551, 0.0
      %vm2568 = vcmp.gt.f32.partialorder %v2552, 0.0
      %vm2569 = vcmp.gt.f32.partialorder %v2553, 0.0
      %vm2570 = vcmp.gt.f32.partialorder %v2554, 0.0
      %vm2571 = vcmp.gt.f32.partialorder %v2555, 0.0
      %vm2572 = vcmp.gt.f32.partialorder %v2556, 0.0
      %vm2573 = vcmp.gt.f32.partialorder %v2557, 0.0
      %vm2574 = vcmp.gt.f32.partialorder %v2558, 0.0
      %vm2575 = vcmp.gt.f32.partialorder %v2559, 0.0
      %vm2576 = vcmp.gt.f32.partialorder %v2560, 0.0
      %vm2577 = vcmp.gt.f32.partialorder %v2561, 0.0
      %vm2578 = vcmp.gt.f32.partialorder %v2562, 0.0
      %vm2579 = vcmp.gt.f32.partialorder %v2563, 0.0
      %vm2580 = vcmp.gt.f32.partialorder %v2564, 0.0
      %v2581 = vmax.f32 %v2518, 0.2
      %v2582 = vmax.f32 %v2520, 0.2
      %v2583 = vmax.f32 %v2522, 0.2
      %v2584 = vmax.f32 %v2524, 0.2
      %v2585 = vmax.f32 %v2526, 0.2
      %v2586 = vmax.f32 %v2528, 0.2
      %v2587 = vmax.f32 %v2530, 0.2
      %v2588 = vmax.f32 %v2532, 0.2
      %v2589 = vmax.f32 %v2534, 0.2
      %v2590 = vmax.f32 %v2536, 0.2
      %v2591 = vmax.f32 %v2538, 0.2
      %v2592 = vmax.f32 %v2540, 0.2
      %v2593 = vmax.f32 %v2542, 0.2
      %v2594 = vmax.f32 %v2544, 0.2
      %v2595 = vmax.f32 %v2546, 0.2
      %v2596 = vmax.f32 %v2548, 0.2
      %v2597 = vmin.f32 %v2581, 2.28
      %v2598 = vmin.f32 %v2582, 2.28
      %v2599 = vmin.f32 %v2583, 2.28
      %v2600 = vmin.f32 %v2584, 2.28
      %v2601 = vmin.f32 %v2585, 2.28
      %v2602 = vmin.f32 %v2586, 2.28
      %v2603 = vmin.f32 %v2587, 2.28
      %v2604 = vmin.f32 %v2588, 2.28
      %v2605 = vmin.f32 %v2589, 2.28
      %v2606 = vmin.f32 %v2590, 2.28
      %v2607 = vmin.f32 %v2591, 2.28
      %v2608 = vmin.f32 %v2592, 2.28
      %v2609 = vmin.f32 %v2593, 2.28
      %v2610 = vmin.f32 %v2594, 2.28
      %v2611 = vmin.f32 %v2595, 2.28
      %v2612 = vmin.f32 %v2596, 2.28
      %v2613 = vmin.f32 %v2581, 1.8
      %v2614 = vmin.f32 %v2582, 1.8
      %v2615 = vmin.f32 %v2583, 1.8
      %v2616 = vmin.f32 %v2584, 1.8
      %v2617 = vmin.f32 %v2585, 1.8
      %v2618 = vmin.f32 %v2586, 1.8
      %v2619 = vmin.f32 %v2587, 1.8
      %v2620 = vmin.f32 %v2588, 1.8
      %v2621 = vmin.f32 %v2589, 1.8
      %v2622 = vmin.f32 %v2590, 1.8
      %v2623 = vmin.f32 %v2591, 1.8
      %v2624 = vmin.f32 %v2592, 1.8
      %v2625 = vmin.f32 %v2593, 1.8
      %v2626 = vmin.f32 %v2594, 1.8
      %v2627 = vmin.f32 %v2595, 1.8
      %v2628 = vmin.f32 %v2596, 1.8
      %v2629 = vsel %vm2565, %v2597, %v2613
      %v2630 = vsel %vm2566, %v2598, %v2614
      %v2631 = vsel %vm2567, %v2599, %v2615
      %v2632 = vsel %vm2568, %v2600, %v2616
      %v2633 = vsel %vm2569, %v2601, %v2617
      %v2634 = vsel %vm2570, %v2602, %v2618
      %v2635 = vsel %vm2571, %v2603, %v2619
      %v2636 = vsel %vm2572, %v2604, %v2620
      %v2637 = vsel %vm2573, %v2605, %v2621
      %v2638 = vsel %vm2574, %v2606, %v2622
      %v2639 = vsel %vm2575, %v2607, %v2623
      %v2640 = vsel %vm2576, %v2608, %v2624
      %v2641 = vsel %vm2577, %v2609, %v2625
      %v2642 = vsel %vm2578, %v2610, %v2626
      %v2643 = vsel %vm2579, %v2611, %v2627
      %v2644 = vsel %vm2580, %v2612, %v2628
      %v2645 = vsub.f32 0.0, %v2549
      %v2646 = vsub.f32 0.0, %v2550
      %v2647 = vsub.f32 0.0, %v2551
      %v2648 = vsub.f32 0.0, %v2552
      %v2649 = vsub.f32 0.0, %v2553
      %v2650 = vsub.f32 0.0, %v2554
      %v2651 = vsub.f32 0.0, %v2555
      %v2652 = vsub.f32 0.0, %v2556
      %v2653 = vsub.f32 0.0, %v2557
      %v2654 = vsub.f32 0.0, %v2558
      %v2655 = vsub.f32 0.0, %v2559
      %v2656 = vsub.f32 0.0, %v2560
      %v2657 = vsub.f32 0.0, %v2561
      %v2658 = vsub.f32 0.0, %v2562
      %v2659 = vsub.f32 0.0, %v2563
      %v2660 = vsub.f32 0.0, %v2564
      %v2661 = vmul.f32 %v2645, %v2518
      %v2662 = vmul.f32 %v2646, %v2520
      %v2663 = vmul.f32 %v2647, %v2522
      %v2664 = vmul.f32 %v2648, %v2524
      %v2665 = vmul.f32 %v2649, %v2526
      %v2666 = vmul.f32 %v2650, %v2528
      %v2667 = vmul.f32 %v2651, %v2530
      %v2668 = vmul.f32 %v2652, %v2532
      %v2669 = vmul.f32 %v2653, %v2534
      %v2670 = vmul.f32 %v2654, %v2536
      %v2671 = vmul.f32 %v2655, %v2538
      %v2672 = vmul.f32 %v2656, %v2540
      %v2673 = vmul.f32 %v2657, %v2542
      %v2674 = vmul.f32 %v2658, %v2544
      %v2675 = vmul.f32 %v2659, %v2546
      %v2676 = vmul.f32 %v2660, %v2548
      %v2677 = vmul.f32 %v2645, %v2629
      %v2678 = vmul.f32 %v2646, %v2630
      %v2679 = vmul.f32 %v2647, %v2631
      %v2680 = vmul.f32 %v2648, %v2632
      %v2681 = vmul.f32 %v2649, %v2633
      %v2682 = vmul.f32 %v2650, %v2634
      %v2683 = vmul.f32 %v2651, %v2635
      %v2684 = vmul.f32 %v2652, %v2636
      %v2685 = vmul.f32 %v2653, %v2637
      %v2686 = vmul.f32 %v2654, %v2638
      %v2687 = vmul.f32 %v2655, %v2639
      %v2688 = vmul.f32 %v2656, %v2640
      %v2689 = vmul.f32 %v2657, %v2641
      %v2690 = vmul.f32 %v2658, %v2642
      %v2691 = vmul.f32 %v2659, %v2643
      %v2692 = vmul.f32 %v2660, %v2644
      %v2693 = vmax.f32 %v2661, %v2677
      %v2694 = vmax.f32 %v2662, %v2678
      %v2695 = vmax.f32 %v2663, %v2679
      %v2696 = vmax.f32 %v2664, %v2680
      %v2697 = vmax.f32 %v2665, %v2681
      %v2698 = vmax.f32 %v2666, %v2682
      %v2699 = vmax.f32 %v2667, %v2683
      %v2700 = vmax.f32 %v2668, %v2684
      %v2701 = vmax.f32 %v2669, %v2685
      %v2702 = vmax.f32 %v2670, %v2686
      %v2703 = vmax.f32 %v2671, %v2687
      %v2704 = vmax.f32 %v2672, %v2688
      %v2705 = vmax.f32 %v2673, %v2689
      %v2706 = vmax.f32 %v2674, %v2690
      %v2707 = vmax.f32 %v2675, %v2691
      %v2708 = vmax.f32 %v2676, %v2692
      %2725 = vrot.lane.b32.xlu0 %v2549, 125
      %v2726 = vpop.permute.xlu0 %2725
      %2727 = vrot.lane.b32.xlu0 %v2550, 125
      %v2728 = vpop.permute.xlu0 %2727
      %2729 = vrot.lane.b32.xlu0 %v2551, 125
      %v2730 = vpop.permute.xlu0 %2729
      %2731 = vrot.lane.b32.xlu0 %v2552, 125
      %v2732 = vpop.permute.xlu0 %2731
      %2733 = vrot.lane.b32.xlu0 %v2553, 125
      %v2734 = vpop.permute.xlu0 %2733
      %2735 = vrot.lane.b32.xlu0 %v2554, 125
      %v2736 = vpop.permute.xlu0 %2735
      %2737 = vrot.lane.b32.xlu0 %v2555, 125
      %v2738 = vpop.permute.xlu0 %2737
      %2739 = vrot.lane.b32.xlu0 %v2556, 125
      %v2740 = vpop.permute.xlu0 %2739
      %2741 = vrot.lane.b32.xlu0 %v2557, 125
      %v2742 = vpop.permute.xlu0 %2741
      %2743 = vrot.lane.b32.xlu0 %v2558, 125
      %v2744 = vpop.permute.xlu0 %2743
      %2745 = vrot.lane.b32.xlu0 %v2559, 125
      %v2746 = vpop.permute.xlu0 %2745
      %2747 = vrot.lane.b32.xlu0 %v2560, 125
      %v2748 = vpop.permute.xlu0 %2747
      %2749 = vrot.lane.b32.xlu0 %v2561, 125
      %v2750 = vpop.permute.xlu0 %2749
      %2751 = vrot.lane.b32.xlu0 %v2562, 125
      %v2752 = vpop.permute.xlu0 %2751
      %2753 = vrot.lane.b32.xlu0 %v2563, 125
      %v2754 = vpop.permute.xlu0 %2753
      %2755 = vrot.lane.b32.xlu0 %v2564, 125
      %v2756 = vpop.permute.xlu0 %2755
      %v2773 = vmul.f32 %v2693, %v2726
      %v2774 = vmul.f32 %v2694, %v2728
      %v2775 = vmul.f32 %v2695, %v2730
      %v2776 = vmul.f32 %v2696, %v2732
      %v2777 = vmul.f32 %v2697, %v2734
      %v2778 = vmul.f32 %v2698, %v2736
      %v2779 = vmul.f32 %v2699, %v2738
      %v2780 = vmul.f32 %v2700, %v2740
      %v2781 = vmul.f32 %v2701, %v2742
      %v2782 = vmul.f32 %v2702, %v2744
      %v2783 = vmul.f32 %v2703, %v2746
      %v2784 = vmul.f32 %v2704, %v2748
      %v2785 = vmul.f32 %v2705, %v2750
      %v2786 = vmul.f32 %v2706, %v2752
      %v2787 = vmul.f32 %v2707, %v2754
      %v2788 = vmul.f32 %v2708, %v2756
      %v2789 = vld [vmem:[#allocation8] sm:$0xff]
      %v2790 = vld [vmem:[#allocation8 + $0x8] sm:$0xff]
      %v2791 = vld [vmem:[#allocation8 + $0x10] sm:$0xff]
      %v2792 = vld [vmem:[#allocation8 + $0x18] sm:$0xff]
      %v2793 = vld [vmem:[#allocation8 + $0x20] sm:$0xff]
      %v2794 = vld [vmem:[#allocation8 + $0x28] sm:$0xff]
      %v2795 = vld [vmem:[#allocation8 + $0x30] sm:$0xff]
      %v2796 = vld [vmem:[#allocation8 + $0x38] sm:$0xff]
      %v2797 = vld [vmem:[#allocation8 + $0x40] sm:$0xff]
      %v2798 = vld [vmem:[#allocation8 + $0x48] sm:$0xff]
      %v2799 = vld [vmem:[#allocation8 + $0x50] sm:$0xff]
      %v2800 = vld [vmem:[#allocation8 + $0x58] sm:$0xff]
      %v2801 = vld [vmem:[#allocation8 + $0x60] sm:$0xff]
      %v2802 = vld [vmem:[#allocation8 + $0x68] sm:$0xff]
      %v2803 = vld [vmem:[#allocation8 + $0x70] sm:$0xff]
      %v2804 = vld [vmem:[#allocation8 + $0x78] sm:$0xff]
      %v2805 = vadd.f32 %v2789, %v2773
      %v2806 = vadd.f32 %v2790, %v2774
      %v2807 = vadd.f32 %v2791, %v2775
      %v2808 = vadd.f32 %v2792, %v2776
      %v2809 = vadd.f32 %v2793, %v2777
      %v2810 = vadd.f32 %v2794, %v2778
      %v2811 = vadd.f32 %v2795, %v2779
      %v2812 = vadd.f32 %v2796, %v2780
      %v2813 = vadd.f32 %v2797, %v2781
      %v2814 = vadd.f32 %v2798, %v2782
      %v2815 = vadd.f32 %v2799, %v2783
      %v2816 = vadd.f32 %v2800, %v2784
      %v2817 = vadd.f32 %v2801, %v2785
      %v2818 = vadd.f32 %v2802, %v2786
      %v2819 = vadd.f32 %v2803, %v2787
      %v2820 = vadd.f32 %v2804, %v2788
      %2821 = vst.msk [vmem:[#allocation8] sm:$0xff] %vm817, %v2805
      %2822 = vst.msk [vmem:[#allocation8 + $0x8] sm:$0xff] %vm817, %v2806
      %2823 = vst.msk [vmem:[#allocation8 + $0x10] sm:$0xff] %vm817, %v2807
      %2824 = vst.msk [vmem:[#allocation8 + $0x18] sm:$0xff] %vm817, %v2808
      %2825 = vst.msk [vmem:[#allocation8 + $0x20] sm:$0xff] %vm817, %v2809
      %2826 = vst.msk [vmem:[#allocation8 + $0x28] sm:$0xff] %vm817, %v2810
      %2827 = vst.msk [vmem:[#allocation8 + $0x30] sm:$0xff] %vm817, %v2811
      %2828 = vst.msk [vmem:[#allocation8 + $0x38] sm:$0xff] %vm817, %v2812
      %2829 = vst.msk [vmem:[#allocation8 + $0x40] sm:$0xff] %vm817, %v2813
      %2830 = vst.msk [vmem:[#allocation8 + $0x48] sm:$0xff] %vm817, %v2814
      %2831 = vst.msk [vmem:[#allocation8 + $0x50] sm:$0xff] %vm817, %v2815
      %2832 = vst.msk [vmem:[#allocation8 + $0x58] sm:$0xff] %vm817, %v2816
      %2833 = vst.msk [vmem:[#allocation8 + $0x60] sm:$0xff] %vm817, %v2817
      %2834 = vst.msk [vmem:[#allocation8 + $0x68] sm:$0xff] %vm817, %v2818
      %2835 = vst.msk [vmem:[#allocation8 + $0x70] sm:$0xff] %vm817, %v2819
      %2836 = vst.msk [vmem:[#allocation8 + $0x78] sm:$0xff] %vm817, %v2820
      %v2837 = vld [vmem:[#allocation9] sm:$0xff]
      %v2838 = vld [vmem:[#allocation9 + $0x8] sm:$0xff]
      %v2839 = vld [vmem:[#allocation9 + $0x10] sm:$0xff]
      %v2840 = vld [vmem:[#allocation9 + $0x18] sm:$0xff]
      %v2841 = vld [vmem:[#allocation9 + $0x20] sm:$0xff]
      %v2842 = vld [vmem:[#allocation9 + $0x28] sm:$0xff]
      %v2843 = vld [vmem:[#allocation9 + $0x30] sm:$0xff]
      %v2844 = vld [vmem:[#allocation9 + $0x38] sm:$0xff]
      %v2845 = vld [vmem:[#allocation9 + $0x40] sm:$0xff]
      %v2846 = vld [vmem:[#allocation9 + $0x48] sm:$0xff]
      %v2847 = vld [vmem:[#allocation9 + $0x50] sm:$0xff]
      %v2848 = vld [vmem:[#allocation9 + $0x58] sm:$0xff]
      %v2849 = vld [vmem:[#allocation9 + $0x60] sm:$0xff]
      %v2850 = vld [vmem:[#allocation9 + $0x68] sm:$0xff]
      %v2851 = vld [vmem:[#allocation9 + $0x70] sm:$0xff]
      %v2852 = vld [vmem:[#allocation9 + $0x78] sm:$0xff]
      %v2853 = vadd.f32 %v2837, %v2726
      %v2854 = vadd.f32 %v2838, %v2728
      %v2855 = vadd.f32 %v2839, %v2730
      %v2856 = vadd.f32 %v2840, %v2732
      %v2857 = vadd.f32 %v2841, %v2734
      %v2858 = vadd.f32 %v2842, %v2736
      %v2859 = vadd.f32 %v2843, %v2738
      %v2860 = vadd.f32 %v2844, %v2740
      %v2861 = vadd.f32 %v2845, %v2742
      %v2862 = vadd.f32 %v2846, %v2744
      %v2863 = vadd.f32 %v2847, %v2746
      %v2864 = vadd.f32 %v2848, %v2748
      %v2865 = vadd.f32 %v2849, %v2750
      %v2866 = vadd.f32 %v2850, %v2752
      %v2867 = vadd.f32 %v2851, %v2754
      %v2868 = vadd.f32 %v2852, %v2756
      %2869 = vst.msk [vmem:[#allocation9] sm:$0xff] %vm817, %v2853
      %2870 = vst.msk [vmem:[#allocation9 + $0x8] sm:$0xff] %vm817, %v2854
      %2871 = vst.msk [vmem:[#allocation9 + $0x10] sm:$0xff] %vm817, %v2855
      %2872 = vst.msk [vmem:[#allocation9 + $0x18] sm:$0xff] %vm817, %v2856
      %2873 = vst.msk [vmem:[#allocation9 + $0x20] sm:$0xff] %vm817, %v2857
      %2874 = vst.msk [vmem:[#allocation9 + $0x28] sm:$0xff] %vm817, %v2858
      %2875 = vst.msk [vmem:[#allocation9 + $0x30] sm:$0xff] %vm817, %v2859
      %2876 = vst.msk [vmem:[#allocation9 + $0x38] sm:$0xff] %vm817, %v2860
      %2877 = vst.msk [vmem:[#allocation9 + $0x40] sm:$0xff] %vm817, %v2861
      %2878 = vst.msk [vmem:[#allocation9 + $0x48] sm:$0xff] %vm817, %v2862
      %2879 = vst.msk [vmem:[#allocation9 + $0x50] sm:$0xff] %vm817, %v2863
      %2880 = vst.msk [vmem:[#allocation9 + $0x58] sm:$0xff] %vm817, %v2864
      %2881 = vst.msk [vmem:[#allocation9 + $0x60] sm:$0xff] %vm817, %v2865
      %2882 = vst.msk [vmem:[#allocation9 + $0x68] sm:$0xff] %vm817, %v2866
      %2883 = vst.msk [vmem:[#allocation9 + $0x70] sm:$0xff] %vm817, %v2867
      %2884 = vst.msk [vmem:[#allocation9 + $0x78] sm:$0xff] %vm817, %v2868
      %v2885 = vld [vmem:[#allocation10] sm:$0xff]
      %v2886 = vld [vmem:[#allocation10 + $0x8] sm:$0xff]
      %v2887 = vld [vmem:[#allocation10 + $0x10] sm:$0xff]
      %v2888 = vld [vmem:[#allocation10 + $0x18] sm:$0xff]
      %v2889 = vld [vmem:[#allocation10 + $0x20] sm:$0xff]
      %v2890 = vld [vmem:[#allocation10 + $0x28] sm:$0xff]
      %v2891 = vld [vmem:[#allocation10 + $0x30] sm:$0xff]
      %v2892 = vld [vmem:[#allocation10 + $0x38] sm:$0xff]
      %v2893 = vld [vmem:[#allocation10 + $0x40] sm:$0xff]
      %v2894 = vld [vmem:[#allocation10 + $0x48] sm:$0xff]
      %v2895 = vld [vmem:[#allocation10 + $0x50] sm:$0xff]
      %v2896 = vld [vmem:[#allocation10 + $0x58] sm:$0xff]
      %v2897 = vld [vmem:[#allocation10 + $0x60] sm:$0xff]
      %v2898 = vld [vmem:[#allocation10 + $0x68] sm:$0xff]
      %v2899 = vld [vmem:[#allocation10 + $0x70] sm:$0xff]
      %v2900 = vld [vmem:[#allocation10 + $0x78] sm:$0xff]
      %2901 = vrot.lane.b32.xlu0 %v2549, 1
      %v2902 = vpop.permute.xlu0 %2901
      %2903 = vrot.lane.b32.xlu0 %v2550, 1
      %v2904 = vpop.permute.xlu0 %2903
      %2905 = vrot.lane.b32.xlu0 %v2551, 1
      %v2906 = vpop.permute.xlu0 %2905
      %2907 = vrot.lane.b32.xlu0 %v2552, 1
      %v2908 = vpop.permute.xlu0 %2907
      %2909 = vrot.lane.b32.xlu0 %v2553, 1
      %v2910 = vpop.permute.xlu0 %2909
      %2911 = vrot.lane.b32.xlu0 %v2554, 1
      %v2912 = vpop.permute.xlu0 %2911
      %2913 = vrot.lane.b32.xlu0 %v2555, 1
      %v2914 = vpop.permute.xlu0 %2913
      %2915 = vrot.lane.b32.xlu0 %v2556, 1
      %v2916 = vpop.permute.xlu0 %2915
      %2917 = vrot.lane.b32.xlu0 %v2557, 1
      %v2918 = vpop.permute.xlu0 %2917
      %2919 = vrot.lane.b32.xlu0 %v2558, 1
      %v2920 = vpop.permute.xlu0 %2919
      %2921 = vrot.lane.b32.xlu0 %v2559, 1
      %v2922 = vpop.permute.xlu0 %2921
      %2923 = vrot.lane.b32.xlu0 %v2560, 1
      %v2924 = vpop.permute.xlu0 %2923
      %2925 = vrot.lane.b32.xlu0 %v2561, 1
      %v2926 = vpop.permute.xlu0 %2925
      %2927 = vrot.lane.b32.xlu0 %v2562, 1
      %v2928 = vpop.permute.xlu0 %2927
      %2929 = vrot.lane.b32.xlu0 %v2563, 1
      %v2930 = vpop.permute.xlu0 %2929
      %2931 = vrot.lane.b32.xlu0 %v2564, 1
      %v2932 = vpop.permute.xlu0 %2931
      %v2949 = vsub.f32 %v2549, %v2902
      %v2950 = vsub.f32 %v2550, %v2904
      %v2951 = vsub.f32 %v2551, %v2906
      %v2952 = vsub.f32 %v2552, %v2908
      %v2953 = vsub.f32 %v2553, %v2910
      %v2954 = vsub.f32 %v2554, %v2912
      %v2955 = vsub.f32 %v2555, %v2914
      %v2956 = vsub.f32 %v2556, %v2916
      %v2957 = vsub.f32 %v2557, %v2918
      %v2958 = vsub.f32 %v2558, %v2920
      %v2959 = vsub.f32 %v2559, %v2922
      %v2960 = vsub.f32 %v2560, %v2924
      %v2961 = vsub.f32 %v2561, %v2926
      %v2962 = vsub.f32 %v2562, %v2928
      %v2963 = vsub.f32 %v2563, %v2930
      %v2964 = vsub.f32 %v2564, %v2932
      %v2965 = vmul.f32 %v2949, %v2949
      %v2966 = vmul.f32 %v2950, %v2950
      %v2967 = vmul.f32 %v2951, %v2951
      %v2968 = vmul.f32 %v2952, %v2952
      %v2969 = vmul.f32 %v2953, %v2953
      %v2970 = vmul.f32 %v2954, %v2954
      %v2971 = vmul.f32 %v2955, %v2955
      %v2972 = vmul.f32 %v2956, %v2956
      %v2973 = vmul.f32 %v2957, %v2957
      %v2974 = vmul.f32 %v2958, %v2958
      %v2975 = vmul.f32 %v2959, %v2959
      %v2976 = vmul.f32 %v2960, %v2960
      %v2977 = vmul.f32 %v2961, %v2961
      %v2978 = vmul.f32 %v2962, %v2962
      %v2979 = vmul.f32 %v2963, %v2963
      %v2980 = vmul.f32 %v2964, %v2964
      %2981 = vrot.lane.b32.xlu0 %v2549, 127
      %v2982 = vpop.permute.xlu0 %2981
      %2983 = vrot.lane.b32.xlu0 %v2550, 127
      %v2984 = vpop.permute.xlu0 %2983
      %2985 = vrot.lane.b32.xlu0 %v2551, 127
      %v2986 = vpop.permute.xlu0 %2985
      %2987 = vrot.lane.b32.xlu0 %v2552, 127
      %v2988 = vpop.permute.xlu0 %2987
      %2989 = vrot.lane.b32.xlu0 %v2553, 127
      %v2990 = vpop.permute.xlu0 %2989
      %2991 = vrot.lane.b32.xlu0 %v2554, 127
      %v2992 = vpop.permute.xlu0 %2991
      %2993 = vrot.lane.b32.xlu0 %v2555, 127
      %v2994 = vpop.permute.xlu0 %2993
      %2995 = vrot.lane.b32.xlu0 %v2556, 127
      %v2996 = vpop.permute.xlu0 %2995
      %2997 = vrot.lane.b32.xlu0 %v2557, 127
      %v2998 = vpop.permute.xlu0 %2997
      %2999 = vrot.lane.b32.xlu0 %v2558, 127
      %v3000 = vpop.permute.xlu0 %2999
      %3001 = vrot.lane.b32.xlu0 %v2559, 127
      %v3002 = vpop.permute.xlu0 %3001
      %3003 = vrot.lane.b32.xlu0 %v2560, 127
      %v3004 = vpop.permute.xlu0 %3003
      %3005 = vrot.lane.b32.xlu0 %v2561, 127
      %v3006 = vpop.permute.xlu0 %3005
      %3007 = vrot.lane.b32.xlu0 %v2562, 127
      %v3008 = vpop.permute.xlu0 %3007
      %3009 = vrot.lane.b32.xlu0 %v2563, 127
      %v3010 = vpop.permute.xlu0 %3009
      %3011 = vrot.lane.b32.xlu0 %v2564, 127
      %v3012 = vpop.permute.xlu0 %3011
      %v3029 = vmul.f32 %v2965, %v2982
      %v3030 = vmul.f32 %v2966, %v2984
      %v3031 = vmul.f32 %v2967, %v2986
      %v3032 = vmul.f32 %v2968, %v2988
      %v3033 = vmul.f32 %v2969, %v2990
      %v3034 = vmul.f32 %v2970, %v2992
      %v3035 = vmul.f32 %v2971, %v2994
      %v3036 = vmul.f32 %v2972, %v2996
      %v3037 = vmul.f32 %v2973, %v2998
      %v3038 = vmul.f32 %v2974, %v3000
      %v3039 = vmul.f32 %v2975, %v3002
      %v3040 = vmul.f32 %v2976, %v3004
      %v3041 = vmul.f32 %v2977, %v3006
      %v3042 = vmul.f32 %v2978, %v3008
      %v3043 = vmul.f32 %v2979, %v3010
      %v3044 = vmul.f32 %v2980, %v3012
      %3061 = vrot.lane.b32.xlu0 %v3029, 126
      %v3062 = vpop.permute.xlu0 %3061
      %3063 = vrot.lane.b32.xlu0 %v3030, 126
      %v3064 = vpop.permute.xlu0 %3063
      %3065 = vrot.lane.b32.xlu0 %v3031, 126
      %v3066 = vpop.permute.xlu0 %3065
      %3067 = vrot.lane.b32.xlu0 %v3032, 126
      %v3068 = vpop.permute.xlu0 %3067
      %3069 = vrot.lane.b32.xlu0 %v3033, 126
      %v3070 = vpop.permute.xlu0 %3069
      %3071 = vrot.lane.b32.xlu0 %v3034, 126
      %v3072 = vpop.permute.xlu0 %3071
      %3073 = vrot.lane.b32.xlu0 %v3035, 126
      %v3074 = vpop.permute.xlu0 %3073
      %3075 = vrot.lane.b32.xlu0 %v3036, 126
      %v3076 = vpop.permute.xlu0 %3075
      %3077 = vrot.lane.b32.xlu0 %v3037, 126
      %v3078 = vpop.permute.xlu0 %3077
      %3079 = vrot.lane.b32.xlu0 %v3038, 126
      %v3080 = vpop.permute.xlu0 %3079
      %3081 = vrot.lane.b32.xlu0 %v3039, 126
      %v3082 = vpop.permute.xlu0 %3081
      %3083 = vrot.lane.b32.xlu0 %v3040, 126
      %v3084 = vpop.permute.xlu0 %3083
      %3085 = vrot.lane.b32.xlu0 %v3041, 126
      %v3086 = vpop.permute.xlu0 %3085
      %3087 = vrot.lane.b32.xlu0 %v3042, 126
      %v3088 = vpop.permute.xlu0 %3087
      %3089 = vrot.lane.b32.xlu0 %v3043, 126
      %v3090 = vpop.permute.xlu0 %3089
      %3091 = vrot.lane.b32.xlu0 %v3044, 126
      %v3092 = vpop.permute.xlu0 %3091
      %v3109 = vadd.f32 %v2885, %v3062
      %v3110 = vadd.f32 %v2886, %v3064
      %v3111 = vadd.f32 %v2887, %v3066
      %v3112 = vadd.f32 %v2888, %v3068
      %v3113 = vadd.f32 %v2889, %v3070
      %v3114 = vadd.f32 %v2890, %v3072
      %v3115 = vadd.f32 %v2891, %v3074
      %v3116 = vadd.f32 %v2892, %v3076
      %v3117 = vadd.f32 %v2893, %v3078
      %v3118 = vadd.f32 %v2894, %v3080
      %v3119 = vadd.f32 %v2895, %v3082
      %v3120 = vadd.f32 %v2896, %v3084
      %v3121 = vadd.f32 %v2897, %v3086
      %v3122 = vadd.f32 %v2898, %v3088
      %v3123 = vadd.f32 %v2899, %v3090
      %v3124 = vadd.f32 %v2900, %v3092
      %3125 = vst.msk [vmem:[#allocation10] sm:$0xff] %vm817, %v3109
      %3126 = vst.msk [vmem:[#allocation10 + $0x8] sm:$0xff] %vm817, %v3110
      %3127 = vst.msk [vmem:[#allocation10 + $0x10] sm:$0xff] %vm817, %v3111
      %3128 = vst.msk [vmem:[#allocation10 + $0x18] sm:$0xff] %vm817, %v3112
      %3129 = vst.msk [vmem:[#allocation10 + $0x20] sm:$0xff] %vm817, %v3113
      %3130 = vst.msk [vmem:[#allocation10 + $0x28] sm:$0xff] %vm817, %v3114
      %3131 = vst.msk [vmem:[#allocation10 + $0x30] sm:$0xff] %vm817, %v3115
      %3132 = vst.msk [vmem:[#allocation10 + $0x38] sm:$0xff] %vm817, %v3116
      %3133 = vst.msk [vmem:[#allocation10 + $0x40] sm:$0xff] %vm817, %v3117
      %3134 = vst.msk [vmem:[#allocation10 + $0x48] sm:$0xff] %vm817, %v3118
      %3135 = vst.msk [vmem:[#allocation10 + $0x50] sm:$0xff] %vm817, %v3119
      %3136 = vst.msk [vmem:[#allocation10 + $0x58] sm:$0xff] %vm817, %v3120
      %3137 = vst.msk [vmem:[#allocation10 + $0x60] sm:$0xff] %vm817, %v3121
      %3138 = vst.msk [vmem:[#allocation10 + $0x68] sm:$0xff] %vm817, %v3122
      %3139 = vst.msk [vmem:[#allocation10 + $0x70] sm:$0xff] %vm817, %v3123
      %3140 = vst.msk [vmem:[#allocation10 + $0x78] sm:$0xff] %vm817, %v3124
      %v3141 = vld [vmem:[#allocation11] sm:$0xff]
      %v3142 = vld [vmem:[#allocation11 + $0x8] sm:$0xff]
      %v3143 = vld [vmem:[#allocation11 + $0x10] sm:$0xff]
      %v3144 = vld [vmem:[#allocation11 + $0x18] sm:$0xff]
      %v3145 = vld [vmem:[#allocation11 + $0x20] sm:$0xff]
      %v3146 = vld [vmem:[#allocation11 + $0x28] sm:$0xff]
      %v3147 = vld [vmem:[#allocation11 + $0x30] sm:$0xff]
      %v3148 = vld [vmem:[#allocation11 + $0x38] sm:$0xff]
      %v3149 = vld [vmem:[#allocation11 + $0x40] sm:$0xff]
      %v3150 = vld [vmem:[#allocation11 + $0x48] sm:$0xff]
      %v3151 = vld [vmem:[#allocation11 + $0x50] sm:$0xff]
      %v3152 = vld [vmem:[#allocation11 + $0x58] sm:$0xff]
      %v3153 = vld [vmem:[#allocation11 + $0x60] sm:$0xff]
      %v3154 = vld [vmem:[#allocation11 + $0x68] sm:$0xff]
      %v3155 = vld [vmem:[#allocation11 + $0x70] sm:$0xff]
      %v3156 = vld [vmem:[#allocation11 + $0x78] sm:$0xff]
      %v3157 = vmul.f32 %v2373, %v2726
      %v3158 = vmul.f32 %v2374, %v2728
      %v3159 = vmul.f32 %v2375, %v2730
      %v3160 = vmul.f32 %v2376, %v2732
      %v3161 = vmul.f32 %v2377, %v2734
      %v3162 = vmul.f32 %v2378, %v2736
      %v3163 = vmul.f32 %v2379, %v2738
      %v3164 = vmul.f32 %v2380, %v2740
      %v3165 = vmul.f32 %v2381, %v2742
      %v3166 = vmul.f32 %v2382, %v2744
      %v3167 = vmul.f32 %v2383, %v2746
      %v3168 = vmul.f32 %v2384, %v2748
      %v3169 = vmul.f32 %v2385, %v2750
      %v3170 = vmul.f32 %v2386, %v2752
      %v3171 = vmul.f32 %v2387, %v2754
      %v3172 = vmul.f32 %v2388, %v2756
      %v3173 = vadd.f32 %v3141, %v3157
      %v3174 = vadd.f32 %v3142, %v3158
      %v3175 = vadd.f32 %v3143, %v3159
      %v3176 = vadd.f32 %v3144, %v3160
      %v3177 = vadd.f32 %v3145, %v3161
      %v3178 = vadd.f32 %v3146, %v3162
      %v3179 = vadd.f32 %v3147, %v3163
      %v3180 = vadd.f32 %v3148, %v3164
      %v3181 = vadd.f32 %v3149, %v3165
      %v3182 = vadd.f32 %v3150, %v3166
      %v3183 = vadd.f32 %v3151, %v3167
      %v3184 = vadd.f32 %v3152, %v3168
      %v3185 = vadd.f32 %v3153, %v3169
      %v3186 = vadd.f32 %v3154, %v3170
      %v3187 = vadd.f32 %v3155, %v3171
      %v3188 = vadd.f32 %v3156, %v3172
      %3189 = vst.msk [vmem:[#allocation11] sm:$0xff] %vm817, %v3173
      %3190 = vst.msk [vmem:[#allocation11 + $0x8] sm:$0xff] %vm817, %v3174
      %3191 = vst.msk [vmem:[#allocation11 + $0x10] sm:$0xff] %vm817, %v3175
      %3192 = vst.msk [vmem:[#allocation11 + $0x18] sm:$0xff] %vm817, %v3176
      %3193 = vst.msk [vmem:[#allocation11 + $0x20] sm:$0xff] %vm817, %v3177
      %3194 = vst.msk [vmem:[#allocation11 + $0x28] sm:$0xff] %vm817, %v3178
      %3195 = vst.msk [vmem:[#allocation11 + $0x30] sm:$0xff] %vm817, %v3179
      %3196 = vst.msk [vmem:[#allocation11 + $0x38] sm:$0xff] %vm817, %v3180
      %3197 = vst.msk [vmem:[#allocation11 + $0x40] sm:$0xff] %vm817, %v3181
      %3198 = vst.msk [vmem:[#allocation11 + $0x48] sm:$0xff] %vm817, %v3182
      %3199 = vst.msk [vmem:[#allocation11 + $0x50] sm:$0xff] %vm817, %v3183
      %3200 = vst.msk [vmem:[#allocation11 + $0x58] sm:$0xff] %vm817, %v3184
      %3201 = vst.msk [vmem:[#allocation11 + $0x60] sm:$0xff] %vm817, %v3185
      %3202 = vst.msk [vmem:[#allocation11 + $0x68] sm:$0xff] %vm817, %v3186
      %3203 = vst.msk [vmem:[#allocation11 + $0x70] sm:$0xff] %vm817, %v3187
      %3204 = vst.msk [vmem:[#allocation11 + $0x78] sm:$0xff] %vm817, %v3188
      %v3205 = vld [vmem:[#allocation12] sm:$0xff]
      %v3206 = vld [vmem:[#allocation12 + $0x8] sm:$0xff]
      %v3207 = vld [vmem:[#allocation12 + $0x10] sm:$0xff]
      %v3208 = vld [vmem:[#allocation12 + $0x18] sm:$0xff]
      %v3209 = vld [vmem:[#allocation12 + $0x20] sm:$0xff]
      %v3210 = vld [vmem:[#allocation12 + $0x28] sm:$0xff]
      %v3211 = vld [vmem:[#allocation12 + $0x30] sm:$0xff]
      %v3212 = vld [vmem:[#allocation12 + $0x38] sm:$0xff]
      %v3213 = vld [vmem:[#allocation12 + $0x40] sm:$0xff]
      %v3214 = vld [vmem:[#allocation12 + $0x48] sm:$0xff]
      %v3215 = vld [vmem:[#allocation12 + $0x50] sm:$0xff]
      %v3216 = vld [vmem:[#allocation12 + $0x58] sm:$0xff]
      %v3217 = vld [vmem:[#allocation12 + $0x60] sm:$0xff]
      %v3218 = vld [vmem:[#allocation12 + $0x68] sm:$0xff]
      %v3219 = vld [vmem:[#allocation12 + $0x70] sm:$0xff]
      %v3220 = vld [vmem:[#allocation12 + $0x78] sm:$0xff]
      %v3221 = vsub.f32 %v2518, 1.0
      %v3222 = vsub.f32 %v2520, 1.0
      %v3223 = vsub.f32 %v2522, 1.0
      %v3224 = vsub.f32 %v2524, 1.0
      %v3225 = vsub.f32 %v2526, 1.0
      %v3226 = vsub.f32 %v2528, 1.0
      %v3227 = vsub.f32 %v2530, 1.0
      %v3228 = vsub.f32 %v2532, 1.0
      %v3229 = vsub.f32 %v2534, 1.0
      %v3230 = vsub.f32 %v2536, 1.0
      %v3231 = vsub.f32 %v2538, 1.0
      %v3232 = vsub.f32 %v2540, 1.0
      %v3233 = vsub.f32 %v2542, 1.0
      %v3234 = vsub.f32 %v2544, 1.0
      %v3235 = vsub.f32 %v2546, 1.0
      %v3236 = vsub.f32 %v2548, 1.0
      %v3237 = vsub.f32 %v3221, %v2501
      %v3238 = vsub.f32 %v3222, %v2502
      %v3239 = vsub.f32 %v3223, %v2503
      %v3240 = vsub.f32 %v3224, %v2504
      %v3241 = vsub.f32 %v3225, %v2505
      %v3242 = vsub.f32 %v3226, %v2506
      %v3243 = vsub.f32 %v3227, %v2507
      %v3244 = vsub.f32 %v3228, %v2508
      %v3245 = vsub.f32 %v3229, %v2509
      %v3246 = vsub.f32 %v3230, %v2510
      %v3247 = vsub.f32 %v3231, %v2511
      %v3248 = vsub.f32 %v3232, %v2512
      %v3249 = vsub.f32 %v3233, %v2513
      %v3250 = vsub.f32 %v3234, %v2514
      %v3251 = vsub.f32 %v3235, %v2515
      %v3252 = vsub.f32 %v3236, %v2516
      %v3253 = vadd.f32 %v3205, %v3237
      %v3254 = vadd.f32 %v3206, %v3238
      %v3255 = vadd.f32 %v3207, %v3239
      %v3256 = vadd.f32 %v3208, %v3240
      %v3257 = vadd.f32 %v3209, %v3241
      %v3258 = vadd.f32 %v3210, %v3242
      %v3259 = vadd.f32 %v3211, %v3243
      %v3260 = vadd.f32 %v3212, %v3244
      %v3261 = vadd.f32 %v3213, %v3245
      %v3262 = vadd.f32 %v3214, %v3246
      %v3263 = vadd.f32 %v3215, %v3247
      %v3264 = vadd.f32 %v3216, %v3248
      %v3265 = vadd.f32 %v3217, %v3249
      %v3266 = vadd.f32 %v3218, %v3250
      %v3267 = vadd.f32 %v3219, %v3251
      %v3268 = vadd.f32 %v3220, %v3252
      %3269 = vst.msk [vmem:[#allocation12] sm:$0xff] %vm817, %v3253
      %3270 = vst.msk [vmem:[#allocation12 + $0x8] sm:$0xff] %vm817, %v3254
      %3271 = vst.msk [vmem:[#allocation12 + $0x10] sm:$0xff] %vm817, %v3255
      %3272 = vst.msk [vmem:[#allocation12 + $0x18] sm:$0xff] %vm817, %v3256
      %3273 = vst.msk [vmem:[#allocation12 + $0x20] sm:$0xff] %vm817, %v3257
      %3274 = vst.msk [vmem:[#allocation12 + $0x28] sm:$0xff] %vm817, %v3258
      %3275 = vst.msk [vmem:[#allocation12 + $0x30] sm:$0xff] %vm817, %v3259
      %3276 = vst.msk [vmem:[#allocation12 + $0x38] sm:$0xff] %vm817, %v3260
      %3277 = vst.msk [vmem:[#allocation12 + $0x40] sm:$0xff] %vm817, %v3261
      %3278 = vst.msk [vmem:[#allocation12 + $0x48] sm:$0xff] %vm817, %v3262
      %3279 = vst.msk [vmem:[#allocation12 + $0x50] sm:$0xff] %vm817, %v3263
      %3280 = vst.msk [vmem:[#allocation12 + $0x58] sm:$0xff] %vm817, %v3264
      %3281 = vst.msk [vmem:[#allocation12 + $0x60] sm:$0xff] %vm817, %v3265
      %3282 = vst.msk [vmem:[#allocation12 + $0x68] sm:$0xff] %vm817, %v3266
      %3283 = vst.msk [vmem:[#allocation12 + $0x70] sm:$0xff] %vm817, %v3267
      %3284 = vst.msk [vmem:[#allocation12 + $0x78] sm:$0xff] %vm817, %v3268
    $region37: #{tpu_custom_call.1} parent=1 // pred_fallthru
      _
    // Predicated region
    $region38: #{tpu_custom_call.1} parent=1 // pred_check
      _
    $region39: #{tpu_custom_call.1} parent=1 // pred_check_branch
      %3286 = sbr.rel (%p113) target = $region41
    $region40: #{tpu_custom_call.1} parent=1 // pred_region
      %v3287 = vld [vmem:[#allocation8] sm:$0xff]
      %v3288 = vld [vmem:[#allocation8 + $0x8] sm:$0xff]
      %v3289 = vld [vmem:[#allocation8 + $0x10] sm:$0xff]
      %v3290 = vld [vmem:[#allocation8 + $0x18] sm:$0xff]
      %v3291 = vld [vmem:[#allocation8 + $0x20] sm:$0xff]
      %v3292 = vld [vmem:[#allocation8 + $0x28] sm:$0xff]
      %v3293 = vld [vmem:[#allocation8 + $0x30] sm:$0xff]
      %v3294 = vld [vmem:[#allocation8 + $0x38] sm:$0xff]
      %v3295 = vld [vmem:[#allocation8 + $0x40] sm:$0xff]
      %v3296 = vld [vmem:[#allocation8 + $0x48] sm:$0xff]
      %v3297 = vld [vmem:[#allocation8 + $0x50] sm:$0xff]
      %v3298 = vld [vmem:[#allocation8 + $0x58] sm:$0xff]
      %v3299 = vld [vmem:[#allocation8 + $0x60] sm:$0xff]
      %v3300 = vld [vmem:[#allocation8 + $0x68] sm:$0xff]
      %v3301 = vld [vmem:[#allocation8 + $0x70] sm:$0xff]
      %v3302 = vld [vmem:[#allocation8 + $0x78] sm:$0xff]
      %v3303 = vsel %vm817, %v3287, 0.0
      %v3304 = vsel %vm817, %v3288, 0.0
      %v3305 = vadd.f32 %v3303, %v3304
      %v3306 = vsel %vm817, %v3289, 0.0
      %v3307 = vadd.f32 %v3305, %v3306
      %v3308 = vsel %vm817, %v3290, 0.0
      %v3309 = vadd.f32 %v3307, %v3308
      %v3310 = vsel %vm817, %v3291, 0.0
      %v3311 = vadd.f32 %v3309, %v3310
      %v3312 = vsel %vm817, %v3292, 0.0
      %v3313 = vadd.f32 %v3311, %v3312
      %v3314 = vsel %vm817, %v3293, 0.0
      %v3315 = vadd.f32 %v3313, %v3314
      %v3316 = vsel %vm817, %v3294, 0.0
      %v3317 = vadd.f32 %v3315, %v3316
      %v3318 = vsel %vm817, %v3295, 0.0
      %v3319 = vadd.f32 %v3317, %v3318
      %v3320 = vsel %vm817, %v3296, 0.0
      %v3321 = vadd.f32 %v3319, %v3320
      %v3322 = vsel %vm817, %v3297, 0.0
      %v3323 = vadd.f32 %v3321, %v3322
      %v3324 = vsel %vm817, %v3298, 0.0
      %v3325 = vadd.f32 %v3323, %v3324
      %v3326 = vsel %vm817, %v3299, 0.0
      %v3327 = vadd.f32 %v3325, %v3326
      %v3328 = vsel %vm817, %v3300, 0.0
      %v3329 = vadd.f32 %v3327, %v3328
      %v3330 = vsel %vm817, %v3301, 0.0
      %v3331 = vadd.f32 %v3329, %v3330
      %v3332 = vsel %vm817, %v3302, 0.0
      %v3333 = vadd.f32 %v3331, %v3332
      %v3334 = vrot.slane %v3333, 4
      %v3335 = vadd.f32 %v3333, %v3334
      %v3336 = vrot.slane %v3335, 2
      %v3337 = vadd.f32 %v3335, %v3336
      %v3338 = vrot.slane %v3337, 1
      %v3339 = vadd.f32 %v3337, %v3338
      %vm3340 = vcmask 0
      %3341 = vst.msk [vmem:[#allocation18] sm:$0x1] %vm3340, %v3339
      %v3342 = vld [vmem:[#allocation9] sm:$0xff]
      %v3343 = vld [vmem:[#allocation9 + $0x8] sm:$0xff]
      %v3344 = vld [vmem:[#allocation9 + $0x10] sm:$0xff]
      %v3345 = vld [vmem:[#allocation9 + $0x18] sm:$0xff]
      %v3346 = vld [vmem:[#allocation9 + $0x20] sm:$0xff]
      %v3347 = vld [vmem:[#allocation9 + $0x28] sm:$0xff]
      %v3348 = vld [vmem:[#allocation9 + $0x30] sm:$0xff]
      %v3349 = vld [vmem:[#allocation9 + $0x38] sm:$0xff]
      %v3350 = vld [vmem:[#allocation9 + $0x40] sm:$0xff]
      %v3351 = vld [vmem:[#allocation9 + $0x48] sm:$0xff]
      %v3352 = vld [vmem:[#allocation9 + $0x50] sm:$0xff]
      %v3353 = vld [vmem:[#allocation9 + $0x58] sm:$0xff]
      %v3354 = vld [vmem:[#allocation9 + $0x60] sm:$0xff]
      %v3355 = vld [vmem:[#allocation9 + $0x68] sm:$0xff]
      %v3356 = vld [vmem:[#allocation9 + $0x70] sm:$0xff]
      %v3357 = vld [vmem:[#allocation9 + $0x78] sm:$0xff]
      %v3358 = vsel %vm817, %v3342, 0.0
      %v3359 = vsel %vm817, %v3343, 0.0
      %v3360 = vadd.f32 %v3358, %v3359
      %v3361 = vsel %vm817, %v3344, 0.0
      %v3362 = vadd.f32 %v3360, %v3361
      %v3363 = vsel %vm817, %v3345, 0.0
      %v3364 = vadd.f32 %v3362, %v3363
      %v3365 = vsel %vm817, %v3346, 0.0
      %v3366 = vadd.f32 %v3364, %v3365
      %v3367 = vsel %vm817, %v3347, 0.0
      %v3368 = vadd.f32 %v3366, %v3367
      %v3369 = vsel %vm817, %v3348, 0.0
      %v3370 = vadd.f32 %v3368, %v3369
      %v3371 = vsel %vm817, %v3349, 0.0
      %v3372 = vadd.f32 %v3370, %v3371
      %v3373 = vsel %vm817, %v3350, 0.0
      %v3374 = vadd.f32 %v3372, %v3373
      %v3375 = vsel %vm817, %v3351, 0.0
      %v3376 = vadd.f32 %v3374, %v3375
      %v3377 = vsel %vm817, %v3352, 0.0
      %v3378 = vadd.f32 %v3376, %v3377
      %v3379 = vsel %vm817, %v3353, 0.0
      %v3380 = vadd.f32 %v3378, %v3379
      %v3381 = vsel %vm817, %v3354, 0.0
      %v3382 = vadd.f32 %v3380, %v3381
      %v3383 = vsel %vm817, %v3355, 0.0
      %v3384 = vadd.f32 %v3382, %v3383
      %v3385 = vsel %vm817, %v3356, 0.0
      %v3386 = vadd.f32 %v3384, %v3385
      %v3387 = vsel %vm817, %v3357, 0.0
      %v3388 = vadd.f32 %v3386, %v3387
      %v3389 = vrot.slane %v3388, 4
      %v3390 = vadd.f32 %v3388, %v3389
      %v3391 = vrot.slane %v3390, 2
      %v3392 = vadd.f32 %v3390, %v3391
      %v3393 = vrot.slane %v3392, 1
      %v3394 = vadd.f32 %v3392, %v3393
      %3395 = vst.msk [vmem:[#allocation19] sm:$0x1] %vm3340, %v3394
      %v3396 = vld [vmem:[#allocation10] sm:$0xff]
      %v3397 = vld [vmem:[#allocation10 + $0x8] sm:$0xff]
      %v3398 = vld [vmem:[#allocation10 + $0x10] sm:$0xff]
      %v3399 = vld [vmem:[#allocation10 + $0x18] sm:$0xff]
      %v3400 = vld [vmem:[#allocation10 + $0x20] sm:$0xff]
      %v3401 = vld [vmem:[#allocation10 + $0x28] sm:$0xff]
      %v3402 = vld [vmem:[#allocation10 + $0x30] sm:$0xff]
      %v3403 = vld [vmem:[#allocation10 + $0x38] sm:$0xff]
      %v3404 = vld [vmem:[#allocation10 + $0x40] sm:$0xff]
      %v3405 = vld [vmem:[#allocation10 + $0x48] sm:$0xff]
      %v3406 = vld [vmem:[#allocation10 + $0x50] sm:$0xff]
      %v3407 = vld [vmem:[#allocation10 + $0x58] sm:$0xff]
      %v3408 = vld [vmem:[#allocation10 + $0x60] sm:$0xff]
      %v3409 = vld [vmem:[#allocation10 + $0x68] sm:$0xff]
      %v3410 = vld [vmem:[#allocation10 + $0x70] sm:$0xff]
      %v3411 = vld [vmem:[#allocation10 + $0x78] sm:$0xff]
      %v3412 = vsel %vm817, %v3396, 0.0
      %v3413 = vsel %vm817, %v3397, 0.0
      %v3414 = vadd.f32 %v3412, %v3413
      %v3415 = vsel %vm817, %v3398, 0.0
      %v3416 = vadd.f32 %v3414, %v3415
      %v3417 = vsel %vm817, %v3399, 0.0
      %v3418 = vadd.f32 %v3416, %v3417
      %v3419 = vsel %vm817, %v3400, 0.0
      %v3420 = vadd.f32 %v3418, %v3419
      %v3421 = vsel %vm817, %v3401, 0.0
      %v3422 = vadd.f32 %v3420, %v3421
      %v3423 = vsel %vm817, %v3402, 0.0
      %v3424 = vadd.f32 %v3422, %v3423
      %v3425 = vsel %vm817, %v3403, 0.0
      %v3426 = vadd.f32 %v3424, %v3425
      %v3427 = vsel %vm817, %v3404, 0.0
      %v3428 = vadd.f32 %v3426, %v3427
      %v3429 = vsel %vm817, %v3405, 0.0
      %v3430 = vadd.f32 %v3428, %v3429
      %v3431 = vsel %vm817, %v3406, 0.0
      %v3432 = vadd.f32 %v3430, %v3431
      %v3433 = vsel %vm817, %v3407, 0.0
      %v3434 = vadd.f32 %v3432, %v3433
      %v3435 = vsel %vm817, %v3408, 0.0
      %v3436 = vadd.f32 %v3434, %v3435
      %v3437 = vsel %vm817, %v3409, 0.0
      %v3438 = vadd.f32 %v3436, %v3437
      %v3439 = vsel %vm817, %v3410, 0.0
      %v3440 = vadd.f32 %v3438, %v3439
      %v3441 = vsel %vm817, %v3411, 0.0
      %v3442 = vadd.f32 %v3440, %v3441
      %v3443 = vrot.slane %v3442, 4
      %v3444 = vadd.f32 %v3442, %v3443
      %v3445 = vrot.slane %v3444, 2
      %v3446 = vadd.f32 %v3444, %v3445
      %v3447 = vrot.slane %v3446, 1
      %v3448 = vadd.f32 %v3446, %v3447
      %3449 = vst.msk [vmem:[#allocation21] sm:$0x1] %vm3340, %v3448
      %v3450 = vld [vmem:[#allocation11] sm:$0xff]
      %v3451 = vld [vmem:[#allocation11 + $0x8] sm:$0xff]
      %v3452 = vld [vmem:[#allocation11 + $0x10] sm:$0xff]
      %v3453 = vld [vmem:[#allocation11 + $0x18] sm:$0xff]
      %v3454 = vld [vmem:[#allocation11 + $0x20] sm:$0xff]
      %v3455 = vld [vmem:[#allocation11 + $0x28] sm:$0xff]
      %v3456 = vld [vmem:[#allocation11 + $0x30] sm:$0xff]
      %v3457 = vld [vmem:[#allocation11 + $0x38] sm:$0xff]
      %v3458 = vld [vmem:[#allocation11 + $0x40] sm:$0xff]
      %v3459 = vld [vmem:[#allocation11 + $0x48] sm:$0xff]
      %v3460 = vld [vmem:[#allocation11 + $0x50] sm:$0xff]
      %v3461 = vld [vmem:[#allocation11 + $0x58] sm:$0xff]
      %v3462 = vld [vmem:[#allocation11 + $0x60] sm:$0xff]
      %v3463 = vld [vmem:[#allocation11 + $0x68] sm:$0xff]
      %v3464 = vld [vmem:[#allocation11 + $0x70] sm:$0xff]
      %v3465 = vld [vmem:[#allocation11 + $0x78] sm:$0xff]
      %v3466 = vsel %vm817, %v3450, 0.0
      %v3467 = vsel %vm817, %v3451, 0.0
      %v3468 = vadd.f32 %v3466, %v3467
      %v3469 = vsel %vm817, %v3452, 0.0
      %v3470 = vadd.f32 %v3468, %v3469
      %v3471 = vsel %vm817, %v3453, 0.0
      %v3472 = vadd.f32 %v3470, %v3471
      %v3473 = vsel %vm817, %v3454, 0.0
      %v3474 = vadd.f32 %v3472, %v3473
      %v3475 = vsel %vm817, %v3455, 0.0
      %v3476 = vadd.f32 %v3474, %v3475
      %v3477 = vsel %vm817, %v3456, 0.0
      %v3478 = vadd.f32 %v3476, %v3477
      %v3479 = vsel %vm817, %v3457, 0.0
      %v3480 = vadd.f32 %v3478, %v3479
      %v3481 = vsel %vm817, %v3458, 0.0
      %v3482 = vadd.f32 %v3480, %v3481
      %v3483 = vsel %vm817, %v3459, 0.0
      %v3484 = vadd.f32 %v3482, %v3483
      %v3485 = vsel %vm817, %v3460, 0.0
      %v3486 = vadd.f32 %v3484, %v3485
      %v3487 = vsel %vm817, %v3461, 0.0
      %v3488 = vadd.f32 %v3486, %v3487
      %v3489 = vsel %vm817, %v3462, 0.0
      %v3490 = vadd.f32 %v3488, %v3489
      %v3491 = vsel %vm817, %v3463, 0.0
      %v3492 = vadd.f32 %v3490, %v3491
      %v3493 = vsel %vm817, %v3464, 0.0
      %v3494 = vadd.f32 %v3492, %v3493
      %v3495 = vsel %vm817, %v3465, 0.0
      %v3496 = vadd.f32 %v3494, %v3495
      %v3497 = vrot.slane %v3496, 4
      %v3498 = vadd.f32 %v3496, %v3497
      %v3499 = vrot.slane %v3498, 2
      %v3500 = vadd.f32 %v3498, %v3499
      %v3501 = vrot.slane %v3500, 1
      %v3502 = vadd.f32 %v3500, %v3501
      %3503 = vst.msk [vmem:[#allocation22] sm:$0x1] %vm3340, %v3502
      %v3504 = vld [vmem:[#allocation12] sm:$0xff]
      %v3505 = vld [vmem:[#allocation12 + $0x8] sm:$0xff]
      %v3506 = vld [vmem:[#allocation12 + $0x10] sm:$0xff]
      %v3507 = vld [vmem:[#allocation12 + $0x18] sm:$0xff]
      %v3508 = vld [vmem:[#allocation12 + $0x20] sm:$0xff]
      %v3509 = vld [vmem:[#allocation12 + $0x28] sm:$0xff]
      %v3510 = vld [vmem:[#allocation12 + $0x30] sm:$0xff]
      %v3511 = vld [vmem:[#allocation12 + $0x38] sm:$0xff]
      %v3512 = vld [vmem:[#allocation12 + $0x40] sm:$0xff]
      %v3513 = vld [vmem:[#allocation12 + $0x48] sm:$0xff]
      %v3514 = vld [vmem:[#allocation12 + $0x50] sm:$0xff]
      %v3515 = vld [vmem:[#allocation12 + $0x58] sm:$0xff]
      %v3516 = vld [vmem:[#allocation12 + $0x60] sm:$0xff]
      %v3517 = vld [vmem:[#allocation12 + $0x68] sm:$0xff]
      %v3518 = vld [vmem:[#allocation12 + $0x70] sm:$0xff]
      %v3519 = vld [vmem:[#allocation12 + $0x78] sm:$0xff]
      %v3520 = vsel %vm817, %v3504, 0.0
      %v3521 = vsel %vm817, %v3505, 0.0
      %v3522 = vadd.f32 %v3520, %v3521
      %v3523 = vsel %vm817, %v3506, 0.0
      %v3524 = vadd.f32 %v3522, %v3523
      %v3525 = vsel %vm817, %v3507, 0.0
      %v3526 = vadd.f32 %v3524, %v3525
      %v3527 = vsel %vm817, %v3508, 0.0
      %v3528 = vadd.f32 %v3526, %v3527
      %v3529 = vsel %vm817, %v3509, 0.0
      %v3530 = vadd.f32 %v3528, %v3529
      %v3531 = vsel %vm817, %v3510, 0.0
      %v3532 = vadd.f32 %v3530, %v3531
      %v3533 = vsel %vm817, %v3511, 0.0
      %v3534 = vadd.f32 %v3532, %v3533
      %v3535 = vsel %vm817, %v3512, 0.0
      %v3536 = vadd.f32 %v3534, %v3535
      %v3537 = vsel %vm817, %v3513, 0.0
      %v3538 = vadd.f32 %v3536, %v3537
      %v3539 = vsel %vm817, %v3514, 0.0
      %v3540 = vadd.f32 %v3538, %v3539
      %v3541 = vsel %vm817, %v3515, 0.0
      %v3542 = vadd.f32 %v3540, %v3541
      %v3543 = vsel %vm817, %v3516, 0.0
      %v3544 = vadd.f32 %v3542, %v3543
      %v3545 = vsel %vm817, %v3517, 0.0
      %v3546 = vadd.f32 %v3544, %v3545
      %v3547 = vsel %vm817, %v3518, 0.0
      %v3548 = vadd.f32 %v3546, %v3547
      %v3549 = vsel %vm817, %v3519, 0.0
      %v3550 = vadd.f32 %v3548, %v3549
      %v3551 = vrot.slane %v3550, 4
      %v3552 = vadd.f32 %v3550, %v3551
      %v3553 = vrot.slane %v3552, 2
      %v3554 = vadd.f32 %v3552, %v3553
      %v3555 = vrot.slane %v3554, 1
      %v3556 = vadd.f32 %v3554, %v3555
      %3557 = vst.msk [vmem:[#allocation24] sm:$0x1] %vm3340, %v3556
    $region41: #{tpu_custom_call.1} parent=1 // pred_fallthru
      _
    // Predicated region
    $region42: #{tpu_custom_call.1} parent=1 // pred_check
      _
    $region43: #{tpu_custom_call.1} parent=1 // pred_check_branch
      %3559 = sbr.rel (0) target = $region45
    $region44: #{tpu_custom_call.1} parent=1 // pred_region
      %s3561 = ssub.s32 16, 16
      %3562 = vsyncadd [#allocation15], %s3561
      %s3564 = sshll.u32 [#allocation18], 4
      %s3565 = int_to_ptr.vmem [resolvable:$true] %s3564
      %3567 = dma.vmem_to_hbm [thread:$0]  %s3565, 16, %s4, [#allocation15]
    $region45: #{tpu_custom_call.1} parent=1 // pred_fallthru
      _
    // Predicated region
    $region46: #{tpu_custom_call.1} parent=1 // pred_check
      _
    $region47: #{tpu_custom_call.1} parent=1 // pred_check_branch
      %3569 = sbr.rel (0) target = $region49
    $region48: #{tpu_custom_call.1} parent=1 // pred_region
      %s3571 = ssub.s32 16, 16
      %3572 = vsyncadd [#allocation20], %s3571
      %s3574 = sshll.u32 [#allocation19], 4
      %s3575 = int_to_ptr.vmem [resolvable:$true] %s3574
      %3577 = dma.vmem_to_hbm [thread:$0]  %s3575, 16, %s5, [#allocation20]
    $region49: #{tpu_custom_call.1} parent=1 // pred_fallthru
      _
    // Predicated region
    $region50: #{tpu_custom_call.1} parent=1 // pred_check
      _
    $region51: #{tpu_custom_call.1} parent=1 // pred_check_branch
      %3579 = sbr.rel (0) target = $region53
    $region52: #{tpu_custom_call.1} parent=1 // pred_region
      %s3581 = ssub.s32 16, 16
      %3582 = vsyncadd [#allocation20], %s3581
      %s3584 = sshll.u32 [#allocation21], 4
      %s3585 = int_to_ptr.vmem [resolvable:$true] %s3584
      %3587 = dma.vmem_to_hbm [thread:$0]  %s3585, 16, %s6, [#allocation20]
    $region53: #{tpu_custom_call.1} parent=1 // pred_fallthru
      _
    // Predicated region
    $region54: #{tpu_custom_call.1} parent=1 // pred_check
      _
    $region55: #{tpu_custom_call.1} parent=1 // pred_check_branch
      %3589 = sbr.rel (0) target = $region57
    $region56: #{tpu_custom_call.1} parent=1 // pred_region
      %s3591 = ssub.s32 16, 16
      %3592 = vsyncadd [#allocation23], %s3591
      %s3594 = sshll.u32 [#allocation22], 4
      %s3595 = int_to_ptr.vmem [resolvable:$true] %s3594
      %3597 = dma.vmem_to_hbm [thread:$0]  %s3595, 16, %s7, [#allocation23]
    $region57: #{tpu_custom_call.1} parent=1 // pred_fallthru
      _
    // Predicated region
    $region58: #{tpu_custom_call.1} parent=1 // pred_check
      _
    $region59: #{tpu_custom_call.1} parent=1 // pred_check_branch
      %3599 = sbr.rel (0) target = $region61
    $region60: #{tpu_custom_call.1} parent=1 // pred_region
      %s3601 = ssub.s32 16, 16
      %3602 = vsyncadd [#allocation23], %s3601
      %s3604 = sshll.u32 [#allocation24], 4
      %s3605 = int_to_ptr.vmem [resolvable:$true] %s3604
      %3607 = dma.vmem_to_hbm [thread:$0]  %s3605, 16, %s8, [#allocation23]
    $region61: #{tpu_custom_call.1} parent=1 // pred_fallthru
      _
    // Predicated region
    $region62: #{tpu_custom_call.1} parent=1 // pred_check
      _
    $region63: #{tpu_custom_call.1} parent=1 // pred_check_branch
      %3609 = sbr.rel (0) target = $region65
    $region64: #{tpu_custom_call.1} parent=1 // pred_region
      %3610 = dma.done [#allocation15], 16
    $region65: #{tpu_custom_call.1} parent=1 // pred_fallthru
      _
    // Predicated region
    $region66: #{tpu_custom_call.1} parent=1 // pred_check
      _
    $region67: #{tpu_custom_call.1} parent=1 // pred_check_branch
      %3612 = sbr.rel (0) target = $region69
    $region68: #{tpu_custom_call.1} parent=1 // pred_region
      %3613 = dma.done [#allocation20], 16
    $region69: #{tpu_custom_call.1} parent=1 // pred_fallthru
      _
    // Predicated region
    $region70: #{tpu_custom_call.1} parent=1 // pred_check
      _
    $region71: #{tpu_custom_call.1} parent=1 // pred_check_branch
      %3615 = sbr.rel (0) target = $region73
    $region72: #{tpu_custom_call.1} parent=1 // pred_region
      %3616 = dma.done [#allocation20], 16
    $region73: #{tpu_custom_call.1} parent=1 // pred_fallthru
      _
    // Predicated region
    $region74: #{tpu_custom_call.1} parent=1 // pred_check
      _
    $region75: #{tpu_custom_call.1} parent=1 // pred_check_branch
      %3618 = sbr.rel (0) target = $region77
    $region76: #{tpu_custom_call.1} parent=1 // pred_region
      %3619 = dma.done [#allocation23], 16
    $region77: #{tpu_custom_call.1} parent=1 // pred_fallthru
      _
    // Predicated region
    $region78: #{tpu_custom_call.1} parent=1 // pred_check
      _
    $region79: #{tpu_custom_call.1} parent=1 // pred_check_branch
      %3621 = sbr.rel (0) target = $region81
    $region80: #{tpu_custom_call.1} parent=1 // pred_region
      %3622 = dma.done [#allocation23], 16
    $region81: #{tpu_custom_call.1} parent=1 // pred_fallthru
      _
    %3623 = vsyncpa [#allocation14], 1
    %3624 = vsyncpa [#allocation17], 1
    %3625 = vsyncpa [#allocation15], 1
    %3626 = vsyncpa [#allocation20], 1
    %3627 = vsyncpa [#allocation23], 1

</llo_original>
